<compile_context>
chip_gen: v6e
topology: v6e:2x2x1
jax: 0.10.0
libtpu: 0.0.40
codegen_flags: <defaults>
</compile_context>

<pallas_src>
import functools

import jax
import jax.numpy as jnp
from jax import lax
from jax.experimental import pallas as pl
from jax.experimental.pallas import tpu as pltpu


_UNROLL_MAX_S = 64  # fully unroll the serial recurrences for short sequences


def deepbeats_kernel(S, BP, H, mm_dtype, gx_dtype,
                     x_ref, emb_ref,
                     wd_ref, bd_ref,
                     wih_f_ref, whh_f_ref, b_f_ref,
                     wih_b_ref, whh_b_ref, b_b_ref,
                     wc_ref, bc_ref,
                     wih_d_ref, whh_d_ref, b_d_ref,
                     wo_ref, bo_ref,
                     out_ref,
                     gx_f, gx_b, gx_d, ctx_f, ctx_b, hdec):
    f32 = jnp.float32

    def mm(a, w):
        # MXU matmul with (optionally) reduced-precision inputs, f32 accum.
        return jnp.dot(a.astype(mm_dtype), w, preferred_element_type=f32)

    # ---- duration_fc (K=2): two VPU broadcast FMAs, no padded MXU pass -----
    x2d = x_ref[0].astype(f32)                       # (S*BP, 2)
    wd = wd_ref[...]                                 # (2, H) f32
    xe2d = (x2d[:, 0:1] * wd[0:1, :]
            + x2d[:, 1:2] * wd[1:2, :]
            + bd_ref[...])                           # (S*BP, H) f32
    xe_mm = xe2d.astype(mm_dtype)

    # ---- hoisted input-side gate pre-activations: fused (S*BP, 4H) slabs ---
    gx_f[...] = (mm(xe_mm, wih_f_ref[...]) + b_f_ref[...]).astype(gx_dtype)
    gx_b[...] = (mm(xe_mm, wih_b_ref[...]) + b_b_ref[...]).astype(gx_dtype)

    # ---- one fused lane-dense (BP,H)@(H,4H=128) matmul per serial step -----
    def lstm_step(h, c, whh, gx_rows):
        pre = (jnp.dot(h.astype(mm_dtype), whh, preferred_element_type=f32)
               + gx_rows.astype(f32))                # (BP, 4H) f32
        sg = 0.5 * (jnp.tanh(0.5 * pre) + 1.0)       # sigmoid via tanh (EUP)
        th = jnp.tanh(pre)
        gi = sg[:, 0 * H:1 * H]
        gf = sg[:, 1 * H:2 * H]
        gg = th[:, 2 * H:3 * H]
        go = sg[:, 3 * H:4 * H]
        c_new = gf * c + gi * gg
        h_new = go * jnp.tanh(c_new)
        return h_new, c_new

    whh_f = whh_f_ref[...]                           # hoisted weight loads
    whh_b = whh_b_ref[...]
    zeros = jnp.zeros((BP, H), f32)

    # ---- interleaved fwd/bwd encoder recurrences (independent chains) ------
    if S <= _UNROLL_MAX_S:
        hF, cF, hB, cB = zeros, zeros, zeros, zeros
        for s in range(S):
            rf = pl.ds(s * BP, BP)
            rb = pl.ds((S - 1 - s) * BP, BP)
            hF, cF = lstm_step(hF, cF, whh_f, gx_f[rf, :])
            hB, cB = lstm_step(hB, cB, whh_b, gx_b[rb, :])
            ctx_f[rf, :] = hF.astype(ctx_f.dtype)
            ctx_b[rb, :] = hB.astype(ctx_b.dtype)
    else:
        def enc_body(s, carry):
            hF, cF, hB, cB = carry
            tf = pl.multiple_of(s * BP, BP)
            tb = pl.multiple_of((S - 1 - s) * BP, BP)
            rf = pl.ds(tf, BP)
            rb = pl.ds(tb, BP)
            hF, cF = lstm_step(hF, cF, whh_f, gx_f[rf, :])
            hB, cB = lstm_step(hB, cB, whh_b, gx_b[rb, :])
            ctx_f[rf, :] = hF.astype(ctx_f.dtype)
            ctx_b[rb, :] = hB.astype(ctx_b.dtype)
            return hF, cF, hB, cB

        hF, cF, hB, cB = lax.fori_loop(
            0, S, enc_body, (zeros, zeros, zeros, zeros), unroll=min(S, 8))

    # ---- combine_fc + relu for all timesteps (hoisted out of decoder) ------
    d2d = (mm(emb_ref[0], wc_ref[0])
           + mm(ctx_f[...], wc_ref[1])
           + mm(ctx_b[...], wc_ref[2])
           + bc_ref[...])
    d2d = jnp.maximum(d2d, 0.0)
    # TODO(synk): Dropout(p=0.1) implemented as identity (eval mode only).

    # ---- decoder input-side gates (hoisted, fused slab) --------------------
    gx_d[...] = (mm(d2d, wih_d_ref[...]) + b_d_ref[...]).astype(gx_dtype)

    # ---- decoder LSTM seeded with encoder forward-direction final state ----
    whh_d = whh_d_ref[...]
    if S <= _UNROLL_MAX_S:
        h, c = hF, cF
        for s in range(S):
            r = pl.ds(s * BP, BP)
            h, c = lstm_step(h, c, whh_d, gx_d[r, :])
            hdec[r, :] = h.astype(hdec.dtype)
    else:
        def dec_body(s, carry):
            h, c = carry
            t = pl.multiple_of(s * BP, BP)
            r = pl.ds(t, BP)
            h, c = lstm_step(h, c, whh_d, gx_d[r, :])
            hdec[r, :] = h.astype(hdec.dtype)
            return h, c

        lax.fori_loop(0, S, dec_body, (hF, cF), unroll=min(S, 8))

    # ---- notes_output: lane-dense (H, NP>=128) matmul, single slab store ---
    out_ref[0] = mm(hdec[...], wo_ref[...]) + bo_ref[...]


def deepbeats_forward(params, x, tgt, *, num_batch_blocks=1,
                      mm_dtype=jnp.bfloat16):
    """x: (B, S, 2) float, tgt: (B, S) int32 -> logits (B, S, num_notes)."""
    B, S, _ = x.shape
    H = params["wd"].shape[1]
    N = params["wo"].shape[1]
    f32 = jnp.float32

    nb = num_batch_blocks
    per_block = -(-B // nb)
    BP = max(8, -(-per_block // 8) * 8)      # sublane-aligned padded batch
    pad = nb * BP - B
    NP = max(128, -(-N // 128) * 128)        # lane-dense padded logits dim
    gx_dtype = mm_dtype                      # bf16 scratch on the perf path

    # -- glue (plain JAX): pad batch, pack time-major flattened 2D slabs -----
    def pack(a_bsf):                          # (B, S, F) -> (nb, S*BP, F)
        feat = a_bsf.shape[-1]
        a = jnp.pad(a_bsf, ((0, pad), (0, 0), (0, 0)))
        a = a.reshape(nb, BP, S, feat)
        a = jnp.transpose(a, (0, 2, 1, 3))
        return a.reshape(nb, S * BP, feat)

    x_p = pack(x.astype(f32))
    emb_p = pack(params["emb"][tgt].astype(mm_dtype))   # FIX: no double pad

    wo_p = jnp.pad(params["wo"], ((0, 0), (0, NP - N))).astype(mm_dtype)
    bo_p = jnp.pad(params["bo"], ((0, 0), (0, NP - N))).astype(f32)

    args = [
        x_p, emb_p,
        params["wd"].astype(f32), params["bd"].astype(f32),
        params["wih_f"].astype(mm_dtype), params["whh_f"].astype(mm_dtype),
        params["b_f"].astype(f32),
        params["wih_b"].astype(mm_dtype), params["whh_b"].astype(mm_dtype),
        params["b_b"].astype(f32),
        params["wc"].reshape(3, H, H).astype(mm_dtype), params["bc"].astype(f32),
        params["wih_d"].astype(mm_dtype), params["whh_d"].astype(mm_dtype),
        params["b_d"].astype(f32),
        wo_p, bo_p,
    ]

    def batched_spec(feat):
        return pl.BlockSpec((1, S * BP, feat), lambda b: (b, 0, 0))

    def fixed_spec(a):
        r = a.ndim
        return pl.BlockSpec(a.shape, lambda b, r=r: (0,) * r)

    in_specs = [batched_spec(x_p.shape[-1]), batched_spec(H)]
    in_specs += [fixed_spec(a) for a in args[2:]]

    kernel = functools.partial(deepbeats_kernel, S, BP, H, mm_dtype, gx_dtype)

    out = pl.pallas_call(
        kernel,
        out_shape=jax.ShapeDtypeStruct((nb, S * BP, NP), f32),
        grid=(nb,),
        in_specs=in_specs,
        out_specs=pl.BlockSpec((1, S * BP, NP), lambda b: (b, 0, 0)),
        scratch_shapes=[
            pltpu.VMEM((S * BP, 4 * H), gx_dtype),   # gx_f (fused fwd-enc preacts)
            pltpu.VMEM((S * BP, 4 * H), gx_dtype),   # gx_b (bwd encoder)
            pltpu.VMEM((S * BP, 4 * H), gx_dtype),   # gx_d (decoder)
            pltpu.VMEM((S * BP, H), mm_dtype),       # ctx_f (fwd encoder outputs)
            pltpu.VMEM((S * BP, H), mm_dtype),       # ctx_b (bwd encoder outputs)
            pltpu.VMEM((S * BP, H), mm_dtype),       # hdec  (decoder hidden outputs)
        ],
        compiler_params=pltpu.CompilerParams(
            dimension_semantics=("parallel",),
            vmem_limit_bytes=32 * 1024 * 1024),
    )(*args)

    # Unpack: (nb, S*BP, NP) -> (B, S, N)
    o = out.reshape(nb, S, BP, NP)
    o = jnp.transpose(o, (0, 2, 1, 3)).reshape(nb * BP, S, NP)
    return o[:B, :, :N]


def reference_forward(params, x, tgt):
    """Pure-JAX f32 reference implementing the same math (sanity check)."""
    H = params["wd"].shape[1]
    B, S, _ = x.shape

    def cell(carry, inp, wih, whh, b):
        h, c = carry
        gates = inp @ wih + h @ whh + b
        i = jax.nn.sigmoid(gates[:, :H])
        f = jax.nn.sigmoid(gates[:, H:2 * H])
        g = jnp.tanh(gates[:, 2 * H:3 * H])
        o = jax.nn.sigmoid(gates[:, 3 * H:])
        c = f * c + i * g
        h = o * jnp.tanh(c)
        return (h, c), h

    xe = x @ params["wd"] + params["bd"]                 # (B, S, H)
    xe_t = jnp.transpose(xe, (1, 0, 2))                  # (S, B, H)
    z = (jnp.zeros((B, H), jnp.float32), jnp.zeros((B, H), jnp.float32))

    (hf, cf), ctx_f = lax.scan(
        lambda c_, e: cell(c_, e, params["wih_f"], params["whh_f"], params["b_f"]),
        z, xe_t)
    _, ctx_b_rev = lax.scan(
        lambda c_, e: cell(c_, e, params["wih_b"], params["whh_b"], params["b_b"]),
        z, xe_t[::-1])
    ctx_b = ctx_b_rev[::-1]

    emb_t = jnp.transpose(params["emb"][tgt], (1, 0, 2))  # (S, B, H)
    d = jnp.concatenate([emb_t, ctx_f, ctx_b], axis=-1) @ params["wc"] + params["bc"]
    d = jnp.maximum(d, 0.0)

    _, hs = lax.scan(
        lambda c_, e: cell(c_, e, params["wih_d"], params["whh_d"], params["b_d"]),
        (hf, cf), d)
    out = hs @ params["wo"] + params["bo"]               # (S, B, N)
    return jnp.transpose(out, (1, 0, 2))


def init_params(key, num_notes, hidden):
    H = hidden
    keys = jax.random.split(key, 16)

    def rnd(k, shape, scale=0.1):
        return (scale * jax.random.normal(k, shape)).astype(jnp.float32)

    return dict(
        emb=rnd(keys[0], (num_notes, H)),
        # duration_fc: Linear(2, H) — stored transposed (2, H)
        wd=rnd(keys[1], (2, H)), bd=rnd(keys[2], (1, H)),
        # encoder LSTM forward direction (W_ih/W_hh transposed, b = b_ih+b_hh)
        wih_f=rnd(keys[3], (H, 4 * H)), whh_f=rnd(keys[4], (H, 4 * H)),
        b_f=rnd(keys[5], (1, 4 * H)),
        # encoder LSTM backward direction
        wih_b=rnd(keys[6], (H, 4 * H)), whh_b=rnd(keys[7], (H, 4 * H)),
        b_b=rnd(keys[8], (1, 4 * H)),
        # combine_fc: Linear(3H, H) — stored transposed (3H, H)
        wc=rnd(keys[9], (3 * H, H)), bc=rnd(keys[10], (1, H)),
        # decoder LSTM
        wih_d=rnd(keys[11], (H, 4 * H)), whh_d=rnd(keys[12], (H, 4 * H)),
        b_d=rnd(keys[13], (1, 4 * H)),
        # notes_output: Linear(H, num_notes) — stored transposed (H, N)
        wo=rnd(keys[14], (H, num_notes)), bo=rnd(keys[15], (1, num_notes)),
    )


if __name__ == "__main__":
    B, S, H, N = 2, 8, 32, 64
    key = jax.random.PRNGKey(0)
    kp, kx, kt = jax.random.split(key, 3)

    params = init_params(kp, N, H)
    x = jax.random.normal(kx, (B, S, 2), dtype=jnp.float32)
    tgt = jax.random.randint(kt, (B, S), 0, N, dtype=jnp.int32)

    ref = reference_forward(params, x, tgt)

    # Strict check: pure-f32 matmul path must match the reference tightly.
    fwd_f32 = jax.jit(functools.partial(deepbeats_forward, mm_dtype=jnp.float32))
    out_f32 = jax.block_until_ready(fwd_f32(params, x, tgt))
    assert out_f32.shape == (B, S, N)
    err_f32 = float(jnp.max(jnp.abs(out_f32 - ref)))
    assert err_f32 < 2e-3, err_f32

    # Default performance path: bf16 matmul inputs, f32 accumulation/state.
    fwd = jax.jit(deepbeats_forward)
    out = jax.block_until_ready(fwd(params, x, tgt))
    assert out.shape == (B, S, N)
    err = float(jnp.max(jnp.abs(out - ref)))
    assert err < 5e-2, err

    print("KERNEL_OK")
</pallas_src>

<mosaic_0001>
module attributes {stable_mosaic.version = 11 : i64} {
  func.func @deepbeats_kernel(%arg0: i32, %arg1: memref<1x64x2xf32, #tpu.memory_space<vmem>>, %arg2: memref<1x64x32xf32, #tpu.memory_space<vmem>>, %arg3: memref<2x32xf32, #tpu.memory_space<vmem>>, %arg4: memref<1x32xf32, #tpu.memory_space<vmem>>, %arg5: memref<32x128xf32, #tpu.memory_space<vmem>>, %arg6: memref<32x128xf32, #tpu.memory_space<vmem>>, %arg7: memref<1x128xf32, #tpu.memory_space<vmem>>, %arg8: memref<32x128xf32, #tpu.memory_space<vmem>>, %arg9: memref<32x128xf32, #tpu.memory_space<vmem>>, %arg10: memref<1x128xf32, #tpu.memory_space<vmem>>, %arg11: memref<3x32x32xf32, #tpu.memory_space<vmem>>, %arg12: memref<1x32xf32, #tpu.memory_space<vmem>>, %arg13: memref<32x128xf32, #tpu.memory_space<vmem>>, %arg14: memref<32x128xf32, #tpu.memory_space<vmem>>, %arg15: memref<1x128xf32, #tpu.memory_space<vmem>>, %arg16: memref<32x128xf32, #tpu.memory_space<vmem>>, %arg17: memref<1x128xf32, #tpu.memory_space<vmem>>, %arg18: memref<1x64x128xf32, #tpu.memory_space<vmem>>, %arg19: memref<64x128xf32, #tpu.memory_space<vmem>>, %arg20: memref<64x128xf32, #tpu.memory_space<vmem>>, %arg21: memref<64x128xf32, #tpu.memory_space<vmem>>, %arg22: memref<64x32xf32, #tpu.memory_space<vmem>>, %arg23: memref<64x32xf32, #tpu.memory_space<vmem>>, %arg24: memref<64x32xf32, #tpu.memory_space<vmem>>) attributes {dimension_semantics = [#tpu.dimension_semantics<parallel>], iteration_bounds = array<i64: 1>, scalar_prefetch = 0 : i64, scratch_operands = 6 : i64, tpu.core_type = #tpu.core_type<tc>, window_params = [{transform_indices = @transform_0, window_bounds = array<i64: 1, 64, 2>}, {transform_indices = @transform_1, window_bounds = array<i64: 1, 64, 32>}, {pipeline_mode = #tpu.pipeline_mode<synchronous>, transform_indices = @transform_2, window_bounds = array<i64: 2, 32>}, {pipeline_mode = #tpu.pipeline_mode<synchronous>, transform_indices = @transform_3, window_bounds = array<i64: 1, 32>}, {pipeline_mode = #tpu.pipeline_mode<synchronous>, transform_indices = @transform_4, window_bounds = array<i64: 32, 128>}, {pipeline_mode = #tpu.pipeline_mode<synchronous>, transform_indices = @transform_5, window_bounds = array<i64: 32, 128>}, {pipeline_mode = #tpu.pipeline_mode<synchronous>, transform_indices = @transform_6, window_bounds = array<i64: 1, 128>}, {pipeline_mode = #tpu.pipeline_mode<synchronous>, transform_indices = @transform_7, window_bounds = array<i64: 32, 128>}, {pipeline_mode = #tpu.pipeline_mode<synchronous>, transform_indices = @transform_8, window_bounds = array<i64: 32, 128>}, {pipeline_mode = #tpu.pipeline_mode<synchronous>, transform_indices = @transform_9, window_bounds = array<i64: 1, 128>}, {pipeline_mode = #tpu.pipeline_mode<synchronous>, transform_indices = @transform_10, window_bounds = array<i64: 3, 32, 32>}, {pipeline_mode = #tpu.pipeline_mode<synchronous>, transform_indices = @transform_11, window_bounds = array<i64: 1, 32>}, {pipeline_mode = #tpu.pipeline_mode<synchronous>, transform_indices = @transform_12, window_bounds = array<i64: 32, 128>}, {pipeline_mode = #tpu.pipeline_mode<synchronous>, transform_indices = @transform_13, window_bounds = array<i64: 32, 128>}, {pipeline_mode = #tpu.pipeline_mode<synchronous>, transform_indices = @transform_14, window_bounds = array<i64: 1, 128>}, {pipeline_mode = #tpu.pipeline_mode<synchronous>, transform_indices = @transform_15, window_bounds = array<i64: 32, 128>}, {pipeline_mode = #tpu.pipeline_mode<synchronous>, transform_indices = @transform_16, window_bounds = array<i64: 1, 128>}, {transform_indices = @transform_17, window_bounds = array<i64: 1, 64, 128>}]} {
    %c0 = arith.constant 0 : index
    %c0_0 = arith.constant 0 : index
    %c0_1 = arith.constant 0 : index
    %0 = vector.load %arg1[%c0, %c0_0, %c0_1] : memref<1x64x2xf32, #tpu.memory_space<vmem>>, vector<1x64x2xf32>
    %1 = vector.shape_cast %0 : vector<1x64x2xf32> to vector<64x2xf32>
    %c0_2 = arith.constant 0 : index
    %c0_3 = arith.constant 0 : index
    %2 = vector.load %arg3[%c0_2, %c0_3] : memref<2x32xf32, #tpu.memory_space<vmem>>, vector<2x32xf32>
    %3 = vector.extract_strided_slice %1 {offsets = [0, 0], sizes = [64, 1], strides = [1, 1]} : vector<64x2xf32> to vector<64x1xf32>
    %4 = vector.extract_strided_slice %2 {offsets = [0, 0], sizes = [1, 32], strides = [1, 1]} : vector<2x32xf32> to vector<1x32xf32>
    %5 = vector.broadcast %3 : vector<64x1xf32> to vector<64x32xf32>
    %6 = vector.broadcast %4 : vector<1x32xf32> to vector<64x32xf32>
    %7 = arith.mulf %5, %6 : vector<64x32xf32>
    %8 = vector.extract_strided_slice %1 {offsets = [0, 1], sizes = [64, 1], strides = [1, 1]} : vector<64x2xf32> to vector<64x1xf32>
    %9 = vector.extract_strided_slice %2 {offsets = [1, 0], sizes = [1, 32], strides = [1, 1]} : vector<2x32xf32> to vector<1x32xf32>
    %10 = vector.broadcast %8 : vector<64x1xf32> to vector<64x32xf32>
    %11 = vector.broadcast %9 : vector<1x32xf32> to vector<64x32xf32>
    %12 = arith.mulf %10, %11 : vector<64x32xf32>
    %13 = arith.addf %7, %12 : vector<64x32xf32>
    %c0_4 = arith.constant 0 : index
    %c0_5 = arith.constant 0 : index
    %14 = vector.load %arg4[%c0_4, %c0_5] : memref<1x32xf32, #tpu.memory_space<vmem>>, vector<1x32xf32>
    %15 = vector.broadcast %14 : vector<1x32xf32> to vector<64x32xf32>
    %16 = arith.addf %13, %15 : vector<64x32xf32>
    %c0_6 = arith.constant 0 : index
    %c0_7 = arith.constant 0 : index
    %17 = vector.load %arg5[%c0_6, %c0_7] : memref<32x128xf32, #tpu.memory_space<vmem>>, vector<32x128xf32>
    %cst = arith.constant dense<0.000000e+00> : vector<64x128xf32>
    %18 = tpu.matmul %16, %17, %cst {dimension_numbers = #tpu.dot_dimension_numbers<[1], [0], [0], [1], [0, 0, 1, 1], [], []>} : vector<64x32xf32>, vector<32x128xf32>, vector<64x128xf32> -> vector<64x128xf32>
    %c0_8 = arith.constant 0 : index
    %c0_9 = arith.constant 0 : index
    %19 = vector.load %arg7[%c0_8, %c0_9] : memref<1x128xf32, #tpu.memory_space<vmem>>, vector<1x128xf32>
    %20 = vector.broadcast %19 : vector<1x128xf32> to vector<64x128xf32>
    %21 = arith.addf %18, %20 : vector<64x128xf32>
    %c0_10 = arith.constant 0 : index
    %c0_11 = arith.constant 0 : index
    %22 = vector.load %arg19[%c0_10, %c0_11] : memref<64x128xf32, #tpu.memory_space<vmem>>, vector<64x128xf32>
    tpu.vector_store %arg19[%c0_10, %c0_11], %21 {strides = array<i32>} : memref<64x128xf32, #tpu.memory_space<vmem>>, vector<64x128xf32>,
    %c0_12 = arith.constant 0 : index
    %c0_13 = arith.constant 0 : index
    %23 = vector.load %arg8[%c0_12, %c0_13] : memref<32x128xf32, #tpu.memory_space<vmem>>, vector<32x128xf32>
    %cst_14 = arith.constant dense<0.000000e+00> : vector<64x128xf32>
    %24 = tpu.matmul %16, %23, %cst_14 {dimension_numbers = #tpu.dot_dimension_numbers<[1], [0], [0], [1], [0, 0, 1, 1], [], []>} : vector<64x32xf32>, vector<32x128xf32>, vector<64x128xf32> -> vector<64x128xf32>
    %c0_15 = arith.constant 0 : index
    %c0_16 = arith.constant 0 : index
    %25 = vector.load %arg10[%c0_15, %c0_16] : memref<1x128xf32, #tpu.memory_space<vmem>>, vector<1x128xf32>
    %26 = vector.broadcast %25 : vector<1x128xf32> to vector<64x128xf32>
    %27 = arith.addf %24, %26 : vector<64x128xf32>
    %c0_17 = arith.constant 0 : index
    %c0_18 = arith.constant 0 : index
    %28 = vector.load %arg20[%c0_17, %c0_18] : memref<64x128xf32, #tpu.memory_space<vmem>>, vector<64x128xf32>
    tpu.vector_store %arg20[%c0_17, %c0_18], %27 {strides = array<i32>} : memref<64x128xf32, #tpu.memory_space<vmem>>, vector<64x128xf32>,
    %c0_19 = arith.constant 0 : index
    %c0_20 = arith.constant 0 : index
    %29 = vector.load %arg6[%c0_19, %c0_20] : memref<32x128xf32, #tpu.memory_space<vmem>>, vector<32x128xf32>
    %c0_21 = arith.constant 0 : index
    %c0_22 = arith.constant 0 : index
    %30 = vector.load %arg9[%c0_21, %c0_22] : memref<32x128xf32, #tpu.memory_space<vmem>>, vector<32x128xf32>
    %cst_23 = arith.constant 0.000000e+00 : f32
    %31 = vector.broadcast %cst_23 : f32 to vector<8x32xf32>
    %c0_24 = arith.constant 0 : index
    %c0_25 = arith.constant 0 : index
    %32 = vector.load %arg19[%c0_24, %c0_25] : memref<64x128xf32, #tpu.memory_space<vmem>>, vector<8x128xf32>
    %cst_26 = arith.constant dense<0.000000e+00> : vector<8x128xf32>
    %33 = tpu.matmul %31, %29, %cst_26 {dimension_numbers = #tpu.dot_dimension_numbers<[1], [0], [0], [1], [0, 0, 1, 1], [], []>} : vector<8x32xf32>, vector<32x128xf32>, vector<8x128xf32> -> vector<8x128xf32>
    %34 = arith.addf %33, %32 : vector<8x128xf32>
    %cst_27 = arith.constant 5.000000e-01 : f32
    %35 = vector.broadcast %cst_27 : f32 to vector<8x128xf32>
    %36 = arith.mulf %35, %34 : vector<8x128xf32>
    %37 = math.tanh %36 : vector<8x128xf32>
    %cst_28 = arith.constant 1.000000e+00 : f32
    %38 = vector.broadcast %cst_28 : f32 to vector<8x128xf32>
    %39 = arith.addf %37, %38 : vector<8x128xf32>
    %cst_29 = arith.constant 5.000000e-01 : f32
    %40 = vector.broadcast %cst_29 : f32 to vector<8x128xf32>
    %41 = arith.mulf %40, %39 : vector<8x128xf32>
    %42 = math.tanh %34 : vector<8x128xf32>
    %43 = vector.extract_strided_slice %41 {offsets = [0, 0], sizes = [8, 32], strides = [1, 1]} : vector<8x128xf32> to vector<8x32xf32>
    %44 = vector.extract_strided_slice %41 {offsets = [0, 32], sizes = [8, 32], strides = [1, 1]} : vector<8x128xf32> to vector<8x32xf32>
    %45 = vector.extract_strided_slice %42 {offsets = [0, 64], sizes = [8, 32], strides = [1, 1]} : vector<8x128xf32> to vector<8x32xf32>
    %46 = vector.extract_strided_slice %41 {offsets = [0, 96], sizes = [8, 32], strides = [1, 1]} : vector<8x128xf32> to vector<8x32xf32>
    %47 = arith.mulf %44, %31 : vector<8x32xf32>
    %48 = arith.mulf %43, %45 : vector<8x32xf32>
    %49 = arith.addf %47, %48 : vector<8x32xf32>
    %50 = math.tanh %49 : vector<8x32xf32>
    %51 = arith.mulf %46, %50 : vector<8x32xf32>
    %c56 = arith.constant 56 : index
    %c0_30 = arith.constant 0 : index
    %52 = vector.load %arg20[%c56, %c0_30] : memref<64x128xf32, #tpu.memory_space<vmem>>, vector<8x128xf32>
    %cst_31 = arith.constant dense<0.000000e+00> : vector<8x128xf32>
    %53 = tpu.matmul %31, %30, %cst_31 {dimension_numbers = #tpu.dot_dimension_numbers<[1], [0], [0], [1], [0, 0, 1, 1], [], []>} : vector<8x32xf32>, vector<32x128xf32>, vector<8x128xf32> -> vector<8x128xf32>
    %54 = arith.addf %53, %52 : vector<8x128xf32>
    %cst_32 = arith.constant 5.000000e-01 : f32
    %55 = vector.broadcast %cst_32 : f32 to vector<8x128xf32>
    %56 = arith.mulf %55, %54 : vector<8x128xf32>
    %57 = math.tanh %56 : vector<8x128xf32>
    %cst_33 = arith.constant 1.000000e+00 : f32
    %58 = vector.broadcast %cst_33 : f32 to vector<8x128xf32>
    %59 = arith.addf %57, %58 : vector<8x128xf32>
    %cst_34 = arith.constant 5.000000e-01 : f32
    %60 = vector.broadcast %cst_34 : f32 to vector<8x128xf32>
    %61 = arith.mulf %60, %59 : vector<8x128xf32>
    %62 = math.tanh %54 : vector<8x128xf32>
    %63 = vector.extract_strided_slice %61 {offsets = [0, 0], sizes = [8, 32], strides = [1, 1]} : vector<8x128xf32> to vector<8x32xf32>
    %64 = vector.extract_strided_slice %61 {offsets = [0, 32], sizes = [8, 32], strides = [1, 1]} : vector<8x128xf32> to vector<8x32xf32>
    %65 = vector.extract_strided_slice %62 {offsets = [0, 64], sizes = [8, 32], strides = [1, 1]} : vector<8x128xf32> to vector<8x32xf32>
    %66 = vector.extract_strided_slice %61 {offsets = [0, 96], sizes = [8, 32], strides = [1, 1]} : vector<8x128xf32> to vector<8x32xf32>
    %67 = arith.mulf %64, %31 : vector<8x32xf32>
    %68 = arith.mulf %63, %65 : vector<8x32xf32>
    %69 = arith.addf %67, %68 : vector<8x32xf32>
    %70 = math.tanh %69 : vector<8x32xf32>
    %71 = arith.mulf %66, %70 : vector<8x32xf32>
    %c0_35 = arith.constant 0 : index
    %c0_36 = arith.constant 0 : index
    %72 = vector.load %arg22[%c0_35, %c0_36] : memref<64x32xf32, #tpu.memory_space<vmem>>, vector<8x32xf32>
    tpu.vector_store %arg22[%c0_35, %c0_36], %51 {strides = array<i32>} : memref<64x32xf32, #tpu.memory_space<vmem>>, vector<8x32xf32>,
    %c56_37 = arith.constant 56 : index
    %c0_38 = arith.constant 0 : index
    %73 = vector.load %arg23[%c56_37, %c0_38] : memref<64x32xf32, #tpu.memory_space<vmem>>, vector<8x32xf32>
    tpu.vector_store %arg23[%c56_37, %c0_38], %71 {strides = array<i32>} : memref<64x32xf32, #tpu.memory_space<vmem>>, vector<8x32xf32>,
    %c8 = arith.constant 8 : index
    %c0_39 = arith.constant 0 : index
    %74 = vector.load %arg19[%c8, %c0_39] : memref<64x128xf32, #tpu.memory_space<vmem>>, vector<8x128xf32>
    %cst_40 = arith.constant dense<0.000000e+00> : vector<8x128xf32>
    %75 = tpu.matmul %51, %29, %cst_40 {dimension_numbers = #tpu.dot_dimension_numbers<[1], [0], [0], [1], [0, 0, 1, 1], [], []>} : vector<8x32xf32>, vector<32x128xf32>, vector<8x128xf32> -> vector<8x128xf32>
    %76 = arith.addf %75, %74 : vector<8x128xf32>
    %cst_41 = arith.constant 5.000000e-01 : f32
    %77 = vector.broadcast %cst_41 : f32 to vector<8x128xf32>
    %78 = arith.mulf %77, %76 : vector<8x128xf32>
    %79 = math.tanh %78 : vector<8x128xf32>
    %cst_42 = arith.constant 1.000000e+00 : f32
    %80 = vector.broadcast %cst_42 : f32 to vector<8x128xf32>
    %81 = arith.addf %79, %80 : vector<8x128xf32>
    %cst_43 = arith.constant 5.000000e-01 : f32
    %82 = vector.broadcast %cst_43 : f32 to vector<8x128xf32>
    %83 = arith.mulf %82, %81 : vector<8x128xf32>
    %84 = math.tanh %76 : vector<8x128xf32>
    %85 = vector.extract_strided_slice %83 {offsets = [0, 0], sizes = [8, 32], strides = [1, 1]} : vector<8x128xf32> to vector<8x32xf32>
    %86 = vector.extract_strided_slice %83 {offsets = [0, 32], sizes = [8, 32], strides = [1, 1]} : vector<8x128xf32> to vector<8x32xf32>
    %87 = vector.extract_strided_slice %84 {offsets = [0, 64], sizes = [8, 32], strides = [1, 1]} : vector<8x128xf32> to vector<8x32xf32>
    %88 = vector.extract_strided_slice %83 {offsets = [0, 96], sizes = [8, 32], strides = [1, 1]} : vector<8x128xf32> to vector<8x32xf32>
    %89 = arith.mulf %86, %49 : vector<8x32xf32>
    %90 = arith.mulf %85, %87 : vector<8x32xf32>
    %91 = arith.addf %89, %90 : vector<8x32xf32>
    %92 = math.tanh %91 : vector<8x32xf32>
    %93 = arith.mulf %88, %92 : vector<8x32xf32>
    %c48 = arith.constant 48 : index
    %c0_44 = arith.constant 0 : index
    %94 = vector.load %arg20[%c48, %c0_44] : memref<64x128xf32, #tpu.memory_space<vmem>>, vector<8x128xf32>
    %cst_45 = arith.constant dense<0.000000e+00> : vector<8x128xf32>
    %95 = tpu.matmul %71, %30, %cst_45 {dimension_numbers = #tpu.dot_dimension_numbers<[1], [0], [0], [1], [0, 0, 1, 1], [], []>} : vector<8x32xf32>, vector<32x128xf32>, vector<8x128xf32> -> vector<8x128xf32>
    %96 = arith.addf %95, %94 : vector<8x128xf32>
    %cst_46 = arith.constant 5.000000e-01 : f32
    %97 = vector.broadcast %cst_46 : f32 to vector<8x128xf32>
    %98 = arith.mulf %97, %96 : vector<8x128xf32>
    %99 = math.tanh %98 : vector<8x128xf32>
    %cst_47 = arith.constant 1.000000e+00 : f32
    %100 = vector.broadcast %cst_47 : f32 to vector<8x128xf32>
    %101 = arith.addf %99, %100 : vector<8x128xf32>
    %cst_48 = arith.constant 5.000000e-01 : f32
    %102 = vector.broadcast %cst_48 : f32 to vector<8x128xf32>
    %103 = arith.mulf %102, %101 : vector<8x128xf32>
    %104 = math.tanh %96 : vector<8x128xf32>
    %105 = vector.extract_strided_slice %103 {offsets = [0, 0], sizes = [8, 32], strides = [1, 1]} : vector<8x128xf32> to vector<8x32xf32>
    %106 = vector.extract_strided_slice %103 {offsets = [0, 32], sizes = [8, 32], strides = [1, 1]} : vector<8x128xf32> to vector<8x32xf32>
    %107 = vector.extract_strided_slice %104 {offsets = [0, 64], sizes = [8, 32], strides = [1, 1]} : vector<8x128xf32> to vector<8x32xf32>
    %108 = vector.extract_strided_slice %103 {offsets = [0, 96], sizes = [8, 32], strides = [1, 1]} : vector<8x128xf32> to vector<8x32xf32>
    %109 = arith.mulf %106, %69 : vector<8x32xf32>
    %110 = arith.mulf %105, %107 : vector<8x32xf32>
    %111 = arith.addf %109, %110 : vector<8x32xf32>
    %112 = math.tanh %111 : vector<8x32xf32>
    %113 = arith.mulf %108, %112 : vector<8x32xf32>
    %c8_49 = arith.constant 8 : index
    %c0_50 = arith.constant 0 : index
    %114 = vector.load %arg22[%c8_49, %c0_50] : memref<64x32xf32, #tpu.memory_space<vmem>>, vector<8x32xf32>
    tpu.vector_store %arg22[%c8_49, %c0_50], %93 {strides = array<i32>} : memref<64x32xf32, #tpu.memory_space<vmem>>, vector<8x32xf32>,
    %c48_51 = arith.constant 48 : index
    %c0_52 = arith.constant 0 : index
    %115 = vector.load %arg23[%c48_51, %c0_52] : memref<64x32xf32, #tpu.memory_space<vmem>>, vector<8x32xf32>
    tpu.vector_store %arg23[%c48_51, %c0_52], %113 {strides = array<i32>} : memref<64x32xf32, #tpu.memory_space<vmem>>, vector<8x32xf32>,
    %c16 = arith.constant 16 : index
    %c0_53 = arith.constant 0 : index
    %116 = vector.load %arg19[%c16, %c0_53] : memref<64x128xf32, #tpu.memory_space<vmem>>, vector<8x128xf32>
    %cst_54 = arith.constant dense<0.000000e+00> : vector<8x128xf32>
    %117 = tpu.matmul %93, %29, %cst_54 {dimension_numbers = #tpu.dot_dimension_numbers<[1], [0], [0], [1], [0, 0, 1, 1], [], []>} : vector<8x32xf32>, vector<32x128xf32>, vector<8x128xf32> -> vector<8x128xf32>
    %118 = arith.addf %117, %116 : vector<8x128xf32>
    %cst_55 = arith.constant 5.000000e-01 : f32
    %119 = vector.broadcast %cst_55 : f32 to vector<8x128xf32>
    %120 = arith.mulf %119, %118 : vector<8x128xf32>
    %121 = math.tanh %120 : vector<8x128xf32>
    %cst_56 = arith.constant 1.000000e+00 : f32
    %122 = vector.broadcast %cst_56 : f32 to vector<8x128xf32>
    %123 = arith.addf %121, %122 : vector<8x128xf32>
    %cst_57 = arith.constant 5.000000e-01 : f32
    %124 = vector.broadcast %cst_57 : f32 to vector<8x128xf32>
    %125 = arith.mulf %124, %123 : vector<8x128xf32>
    %126 = math.tanh %118 : vector<8x128xf32>
    %127 = vector.extract_strided_slice %125 {offsets = [0, 0], sizes = [8, 32], strides = [1, 1]} : vector<8x128xf32> to vector<8x32xf32>
    %128 = vector.extract_strided_slice %125 {offsets = [0, 32], sizes = [8, 32], strides = [1, 1]} : vector<8x128xf32> to vector<8x32xf32>
    %129 = vector.extract_strided_slice %126 {offsets = [0, 64], sizes = [8, 32], strides = [1, 1]} : vector<8x128xf32> to vector<8x32xf32>
    %130 = vector.extract_strided_slice %125 {offsets = [0, 96], sizes = [8, 32], strides = [1, 1]} : vector<8x128xf32> to vector<8x32xf32>
    %131 = arith.mulf %128, %91 : vector<8x32xf32>
    %132 = arith.mulf %127, %129 : vector<8x32xf32>
    %133 = arith.addf %131, %132 : vector<8x32xf32>
    %134 = math.tanh %133 : vector<8x32xf32>
    %135 = arith.mulf %130, %134 : vector<8x32xf32>
    %c40 = arith.constant 40 : index
    %c0_58 = arith.constant 0 : index
    %136 = vector.load %arg20[%c40, %c0_58] : memref<64x128xf32, #tpu.memory_space<vmem>>, vector<8x128xf32>
    %cst_59 = arith.constant dense<0.000000e+00> : vector<8x128xf32>
    %137 = tpu.matmul %113, %30, %cst_59 {dimension_numbers = #tpu.dot_dimension_numbers<[1], [0], [0], [1], [0, 0, 1, 1], [], []>} : vector<8x32xf32>, vector<32x128xf32>, vector<8x128xf32> -> vector<8x128xf32>
    %138 = arith.addf %137, %136 : vector<8x128xf32>
    %cst_60 = arith.constant 5.000000e-01 : f32
    %139 = vector.broadcast %cst_60 : f32 to vector<8x128xf32>
    %140 = arith.mulf %139, %138 : vector<8x128xf32>
    %141 = math.tanh %140 : vector<8x128xf32>
    %cst_61 = arith.constant 1.000000e+00 : f32
    %142 = vector.broadcast %cst_61 : f32 to vector<8x128xf32>
    %143 = arith.addf %141, %142 : vector<8x128xf32>
    %cst_62 = arith.constant 5.000000e-01 : f32
    %144 = vector.broadcast %cst_62 : f32 to vector<8x128xf32>
    %145 = arith.mulf %144, %143 : vector<8x128xf32>
    %146 = math.tanh %138 : vector<8x128xf32>
    %147 = vector.extract_strided_slice %145 {offsets = [0, 0], sizes = [8, 32], strides = [1, 1]} : vector<8x128xf32> to vector<8x32xf32>
    %148 = vector.extract_strided_slice %145 {offsets = [0, 32], sizes = [8, 32], strides = [1, 1]} : vector<8x128xf32> to vector<8x32xf32>
    %149 = vector.extract_strided_slice %146 {offsets = [0, 64], sizes = [8, 32], strides = [1, 1]} : vector<8x128xf32> to vector<8x32xf32>
    %150 = vector.extract_strided_slice %145 {offsets = [0, 96], sizes = [8, 32], strides = [1, 1]} : vector<8x128xf32> to vector<8x32xf32>
    %151 = arith.mulf %148, %111 : vector<8x32xf32>
    %152 = arith.mulf %147, %149 : vector<8x32xf32>
    %153 = arith.addf %151, %152 : vector<8x32xf32>
    %154 = math.tanh %153 : vector<8x32xf32>
    %155 = arith.mulf %150, %154 : vector<8x32xf32>
    %c16_63 = arith.constant 16 : index
    %c0_64 = arith.constant 0 : index
    %156 = vector.load %arg22[%c16_63, %c0_64] : memref<64x32xf32, #tpu.memory_space<vmem>>, vector<8x32xf32>
    tpu.vector_store %arg22[%c16_63, %c0_64], %135 {strides = array<i32>} : memref<64x32xf32, #tpu.memory_space<vmem>>, vector<8x32xf32>,
    %c40_65 = arith.constant 40 : index
    %c0_66 = arith.constant 0 : index
    %157 = vector.load %arg23[%c40_65, %c0_66] : memref<64x32xf32, #tpu.memory_space<vmem>>, vector<8x32xf32>
    tpu.vector_store %arg23[%c40_65, %c0_66], %155 {strides = array<i32>} : memref<64x32xf32, #tpu.memory_space<vmem>>, vector<8x32xf32>,
    %c24 = arith.constant 24 : index
    %c0_67 = arith.constant 0 : index
    %158 = vector.load %arg19[%c24, %c0_67] : memref<64x128xf32, #tpu.memory_space<vmem>>, vector<8x128xf32>
    %cst_68 = arith.constant dense<0.000000e+00> : vector<8x128xf32>
    %159 = tpu.matmul %135, %29, %cst_68 {dimension_numbers = #tpu.dot_dimension_numbers<[1], [0], [0], [1], [0, 0, 1, 1], [], []>} : vector<8x32xf32>, vector<32x128xf32>, vector<8x128xf32> -> vector<8x128xf32>
    %160 = arith.addf %159, %158 : vector<8x128xf32>
    %cst_69 = arith.constant 5.000000e-01 : f32
    %161 = vector.broadcast %cst_69 : f32 to vector<8x128xf32>
    %162 = arith.mulf %161, %160 : vector<8x128xf32>
    %163 = math.tanh %162 : vector<8x128xf32>
    %cst_70 = arith.constant 1.000000e+00 : f32
    %164 = vector.broadcast %cst_70 : f32 to vector<8x128xf32>
    %165 = arith.addf %163, %164 : vector<8x128xf32>
    %cst_71 = arith.constant 5.000000e-01 : f32
    %166 = vector.broadcast %cst_71 : f32 to vector<8x128xf32>
    %167 = arith.mulf %166, %165 : vector<8x128xf32>
    %168 = math.tanh %160 : vector<8x128xf32>
    %169 = vector.extract_strided_slice %167 {offsets = [0, 0], sizes = [8, 32], strides = [1, 1]} : vector<8x128xf32> to vector<8x32xf32>
    %170 = vector.extract_strided_slice %167 {offsets = [0, 32], sizes = [8, 32], strides = [1, 1]} : vector<8x128xf32> to vector<8x32xf32>
    %171 = vector.extract_strided_slice %168 {offsets = [0, 64], sizes = [8, 32], strides = [1, 1]} : vector<8x128xf32> to vector<8x32xf32>
    %172 = vector.extract_strided_slice %167 {offsets = [0, 96], sizes = [8, 32], strides = [1, 1]} : vector<8x128xf32> to vector<8x32xf32>
    %173 = arith.mulf %170, %133 : vector<8x32xf32>
    %174 = arith.mulf %169, %171 : vector<8x32xf32>
    %175 = arith.addf %173, %174 : vector<8x32xf32>
    %176 = math.tanh %175 : vector<8x32xf32>
    %177 = arith.mulf %172, %176 : vector<8x32xf32>
    %c32 = arith.constant 32 : index
    %c0_72 = arith.constant 0 : index
    %178 = vector.load %arg20[%c32, %c0_72] : memref<64x128xf32, #tpu.memory_space<vmem>>, vector<8x128xf32>
    %cst_73 = arith.constant dense<0.000000e+00> : vector<8x128xf32>
    %179 = tpu.matmul %155, %30, %cst_73 {dimension_numbers = #tpu.dot_dimension_numbers<[1], [0], [0], [1], [0, 0, 1, 1], [], []>} : vector<8x32xf32>, vector<32x128xf32>, vector<8x128xf32> -> vector<8x128xf32>
    %180 = arith.addf %179, %178 : vector<8x128xf32>
    %cst_74 = arith.constant 5.000000e-01 : f32
    %181 = vector.broadcast %cst_74 : f32 to vector<8x128xf32>
    %182 = arith.mulf %181, %180 : vector<8x128xf32>
    %183 = math.tanh %182 : vector<8x128xf32>
    %cst_75 = arith.constant 1.000000e+00 : f32
    %184 = vector.broadcast %cst_75 : f32 to vector<8x128xf32>
    %185 = arith.addf %183, %184 : vector<8x128xf32>
    %cst_76 = arith.constant 5.000000e-01 : f32
    %186 = vector.broadcast %cst_76 : f32 to vector<8x128xf32>
    %187 = arith.mulf %186, %185 : vector<8x128xf32>
    %188 = math.tanh %180 : vector<8x128xf32>
    %189 = vector.extract_strided_slice %187 {offsets = [0, 0], sizes = [8, 32], strides = [1, 1]} : vector<8x128xf32> to vector<8x32xf32>
    %190 = vector.extract_strided_slice %187 {offsets = [0, 32], sizes = [8, 32], strides = [1, 1]} : vector<8x128xf32> to vector<8x32xf32>
    %191 = vector.extract_strided_slice %188 {offsets = [0, 64], sizes = [8, 32], strides = [1, 1]} : vector<8x128xf32> to vector<8x32xf32>
    %192 = vector.extract_strided_slice %187 {offsets = [0, 96], sizes = [8, 32], strides = [1, 1]} : vector<8x128xf32> to vector<8x32xf32>
    %193 = arith.mulf %190, %153 : vector<8x32xf32>
    %194 = arith.mulf %189, %191 : vector<8x32xf32>
    %195 = arith.addf %193, %194 : vector<8x32xf32>
    %196 = math.tanh %195 : vector<8x32xf32>
    %197 = arith.mulf %192, %196 : vector<8x32xf32>
    %c24_77 = arith.constant 24 : index
    %c0_78 = arith.constant 0 : index
    %198 = vector.load %arg22[%c24_77, %c0_78] : memref<64x32xf32, #tpu.memory_space<vmem>>, vector<8x32xf32>
    tpu.vector_store %arg22[%c24_77, %c0_78], %177 {strides = array<i32>} : memref<64x32xf32, #tpu.memory_space<vmem>>, vector<8x32xf32>,
    %c32_79 = arith.constant 32 : index
    %c0_80 = arith.constant 0 : index
    %199 = vector.load %arg23[%c32_79, %c0_80] : memref<64x32xf32, #tpu.memory_space<vmem>>, vector<8x32xf32>
    tpu.vector_store %arg23[%c32_79, %c0_80], %197 {strides = array<i32>} : memref<64x32xf32, #tpu.memory_space<vmem>>, vector<8x32xf32>,
    %c32_81 = arith.constant 32 : index
    %c0_82 = arith.constant 0 : index
    %200 = vector.load %arg19[%c32_81, %c0_82] : memref<64x128xf32, #tpu.memory_space<vmem>>, vector<8x128xf32>
    %cst_83 = arith.constant dense<0.000000e+00> : vector<8x128xf32>
    %201 = tpu.matmul %177, %29, %cst_83 {dimension_numbers = #tpu.dot_dimension_numbers<[1], [0], [0], [1], [0, 0, 1, 1], [], []>} : vector<8x32xf32>, vector<32x128xf32>, vector<8x128xf32> -> vector<8x128xf32>
    %202 = arith.addf %201, %200 : vector<8x128xf32>
    %cst_84 = arith.constant 5.000000e-01 : f32
    %203 = vector.broadcast %cst_84 : f32 to vector<8x128xf32>
    %204 = arith.mulf %203, %202 : vector<8x128xf32>
    %205 = math.tanh %204 : vector<8x128xf32>
    %cst_85 = arith.constant 1.000000e+00 : f32
    %206 = vector.broadcast %cst_85 : f32 to vector<8x128xf32>
    %207 = arith.addf %205, %206 : vector<8x128xf32>
    %cst_86 = arith.constant 5.000000e-01 : f32
    %208 = vector.broadcast %cst_86 : f32 to vector<8x128xf32>
    %209 = arith.mulf %208, %207 : vector<8x128xf32>
    %210 = math.tanh %202 : vector<8x128xf32>
    %211 = vector.extract_strided_slice %209 {offsets = [0, 0], sizes = [8, 32], strides = [1, 1]} : vector<8x128xf32> to vector<8x32xf32>
    %212 = vector.extract_strided_slice %209 {offsets = [0, 32], sizes = [8, 32], strides = [1, 1]} : vector<8x128xf32> to vector<8x32xf32>
    %213 = vector.extract_strided_slice %210 {offsets = [0, 64], sizes = [8, 32], strides = [1, 1]} : vector<8x128xf32> to vector<8x32xf32>
    %214 = vector.extract_strided_slice %209 {offsets = [0, 96], sizes = [8, 32], strides = [1, 1]} : vector<8x128xf32> to vector<8x32xf32>
    %215 = arith.mulf %212, %175 : vector<8x32xf32>
    %216 = arith.mulf %211, %213 : vector<8x32xf32>
    %217 = arith.addf %215, %216 : vector<8x32xf32>
    %218 = math.tanh %217 : vector<8x32xf32>
    %219 = arith.mulf %214, %218 : vector<8x32xf32>
    %c24_87 = arith.constant 24 : index
    %c0_88 = arith.constant 0 : index
    %220 = vector.load %arg20[%c24_87, %c0_88] : memref<64x128xf32, #tpu.memory_space<vmem>>, vector<8x128xf32>
    %cst_89 = arith.constant dense<0.000000e+00> : vector<8x128xf32>
    %221 = tpu.matmul %197, %30, %cst_89 {dimension_numbers = #tpu.dot_dimension_numbers<[1], [0], [0], [1], [0, 0, 1, 1], [], []>} : vector<8x32xf32>, vector<32x128xf32>, vector<8x128xf32> -> vector<8x128xf32>
    %222 = arith.addf %221, %220 : vector<8x128xf32>
    %cst_90 = arith.constant 5.000000e-01 : f32
    %223 = vector.broadcast %cst_90 : f32 to vector<8x128xf32>
    %224 = arith.mulf %223, %222 : vector<8x128xf32>
    %225 = math.tanh %224 : vector<8x128xf32>
    %cst_91 = arith.constant 1.000000e+00 : f32
    %226 = vector.broadcast %cst_91 : f32 to vector<8x128xf32>
    %227 = arith.addf %225, %226 : vector<8x128xf32>
    %cst_92 = arith.constant 5.000000e-01 : f32
    %228 = vector.broadcast %cst_92 : f32 to vector<8x128xf32>
    %229 = arith.mulf %228, %227 : vector<8x128xf32>
    %230 = math.tanh %222 : vector<8x128xf32>
    %231 = vector.extract_strided_slice %229 {offsets = [0, 0], sizes = [8, 32], strides = [1, 1]} : vector<8x128xf32> to vector<8x32xf32>
    %232 = vector.extract_strided_slice %229 {offsets = [0, 32], sizes = [8, 32], strides = [1, 1]} : vector<8x128xf32> to vector<8x32xf32>
    %233 = vector.extract_strided_slice %230 {offsets = [0, 64], sizes = [8, 32], strides = [1, 1]} : vector<8x128xf32> to vector<8x32xf32>
    %234 = vector.extract_strided_slice %229 {offsets = [0, 96], sizes = [8, 32], strides = [1, 1]} : vector<8x128xf32> to vector<8x32xf32>
    %235 = arith.mulf %232, %195 : vector<8x32xf32>
    %236 = arith.mulf %231, %233 : vector<8x32xf32>
    %237 = arith.addf %235, %236 : vector<8x32xf32>
    %238 = math.tanh %237 : vector<8x32xf32>
    %239 = arith.mulf %234, %238 : vector<8x32xf32>
    %c32_93 = arith.constant 32 : index
    %c0_94 = arith.constant 0 : index
    %240 = vector.load %arg22[%c32_93, %c0_94] : memref<64x32xf32, #tpu.memory_space<vmem>>, vector<8x32xf32>
    tpu.vector_store %arg22[%c32_93, %c0_94], %219 {strides = array<i32>} : memref<64x32xf32, #tpu.memory_space<vmem>>, vector<8x32xf32>,
    %c24_95 = arith.constant 24 : index
    %c0_96 = arith.constant 0 : index
    %241 = vector.load %arg23[%c24_95, %c0_96] : memref<64x32xf32, #tpu.memory_space<vmem>>, vector<8x32xf32>
    tpu.vector_store %arg23[%c24_95, %c0_96], %239 {strides = array<i32>} : memref<64x32xf32, #tpu.memory_space<vmem>>, vector<8x32xf32>,
    %c40_97 = arith.constant 40 : index
    %c0_98 = arith.constant 0 : index
    %242 = vector.load %arg19[%c40_97, %c0_98] : memref<64x128xf32, #tpu.memory_space<vmem>>, vector<8x128xf32>
    %cst_99 = arith.constant dense<0.000000e+00> : vector<8x128xf32>
    %243 = tpu.matmul %219, %29, %cst_99 {dimension_numbers = #tpu.dot_dimension_numbers<[1], [0], [0], [1], [0, 0, 1, 1], [], []>} : vector<8x32xf32>, vector<32x128xf32>, vector<8x128xf32> -> vector<8x128xf32>
    %244 = arith.addf %243, %242 : vector<8x128xf32>
    %cst_100 = arith.constant 5.000000e-01 : f32
    %245 = vector.broadcast %cst_100 : f32 to vector<8x128xf32>
    %246 = arith.mulf %245, %244 : vector<8x128xf32>
    %247 = math.tanh %246 : vector<8x128xf32>
    %cst_101 = arith.constant 1.000000e+00 : f32
    %248 = vector.broadcast %cst_101 : f32 to vector<8x128xf32>
    %249 = arith.addf %247, %248 : vector<8x128xf32>
    %cst_102 = arith.constant 5.000000e-01 : f32
    %250 = vector.broadcast %cst_102 : f32 to vector<8x128xf32>
    %251 = arith.mulf %250, %249 : vector<8x128xf32>
    %252 = math.tanh %244 : vector<8x128xf32>
    %253 = vector.extract_strided_slice %251 {offsets = [0, 0], sizes = [8, 32], strides = [1, 1]} : vector<8x128xf32> to vector<8x32xf32>
    %254 = vector.extract_strided_slice %251 {offsets = [0, 32], sizes = [8, 32], strides = [1, 1]} : vector<8x128xf32> to vector<8x32xf32>
    %255 = vector.extract_strided_slice %252 {offsets = [0, 64], sizes = [8, 32], strides = [1, 1]} : vector<8x128xf32> to vector<8x32xf32>
    %256 = vector.extract_strided_slice %251 {offsets = [0, 96], sizes = [8, 32], strides = [1, 1]} : vector<8x128xf32> to vector<8x32xf32>
    %257 = arith.mulf %254, %217 : vector<8x32xf32>
    %258 = arith.mulf %253, %255 : vector<8x32xf32>
    %259 = arith.addf %257, %258 : vector<8x32xf32>
    %260 = math.tanh %259 : vector<8x32xf32>
    %261 = arith.mulf %256, %260 : vector<8x32xf32>
    %c16_103 = arith.constant 16 : index
    %c0_104 = arith.constant 0 : index
    %262 = vector.load %arg20[%c16_103, %c0_104] : memref<64x128xf32, #tpu.memory_space<vmem>>, vector<8x128xf32>
    %cst_105 = arith.constant dense<0.000000e+00> : vector<8x128xf32>
    %263 = tpu.matmul %239, %30, %cst_105 {dimension_numbers = #tpu.dot_dimension_numbers<[1], [0], [0], [1], [0, 0, 1, 1], [], []>} : vector<8x32xf32>, vector<32x128xf32>, vector<8x128xf32> -> vector<8x128xf32>
    %264 = arith.addf %263, %262 : vector<8x128xf32>
    %cst_106 = arith.constant 5.000000e-01 : f32
    %265 = vector.broadcast %cst_106 : f32 to vector<8x128xf32>
    %266 = arith.mulf %265, %264 : vector<8x128xf32>
    %267 = math.tanh %266 : vector<8x128xf32>
    %cst_107 = arith.constant 1.000000e+00 : f32
    %268 = vector.broadcast %cst_107 : f32 to vector<8x128xf32>
    %269 = arith.addf %267, %268 : vector<8x128xf32>
    %cst_108 = arith.constant 5.000000e-01 : f32
    %270 = vector.broadcast %cst_108 : f32 to vector<8x128xf32>
    %271 = arith.mulf %270, %269 : vector<8x128xf32>
    %272 = math.tanh %264 : vector<8x128xf32>
    %273 = vector.extract_strided_slice %271 {offsets = [0, 0], sizes = [8, 32], strides = [1, 1]} : vector<8x128xf32> to vector<8x32xf32>
    %274 = vector.extract_strided_slice %271 {offsets = [0, 32], sizes = [8, 32], strides = [1, 1]} : vector<8x128xf32> to vector<8x32xf32>
    %275 = vector.extract_strided_slice %272 {offsets = [0, 64], sizes = [8, 32], strides = [1, 1]} : vector<8x128xf32> to vector<8x32xf32>
    %276 = vector.extract_strided_slice %271 {offsets = [0, 96], sizes = [8, 32], strides = [1, 1]} : vector<8x128xf32> to vector<8x32xf32>
    %277 = arith.mulf %274, %237 : vector<8x32xf32>
    %278 = arith.mulf %273, %275 : vector<8x32xf32>
    %279 = arith.addf %277, %278 : vector<8x32xf32>
    %280 = math.tanh %279 : vector<8x32xf32>
    %281 = arith.mulf %276, %280 : vector<8x32xf32>
    %c40_109 = arith.constant 40 : index
    %c0_110 = arith.constant 0 : index
    %282 = vector.load %arg22[%c40_109, %c0_110] : memref<64x32xf32, #tpu.memory_space<vmem>>, vector<8x32xf32>
    tpu.vector_store %arg22[%c40_109, %c0_110], %261 {strides = array<i32>} : memref<64x32xf32, #tpu.memory_space<vmem>>, vector<8x32xf32>,
    %c16_111 = arith.constant 16 : index
    %c0_112 = arith.constant 0 : index
    %283 = vector.load %arg23[%c16_111, %c0_112] : memref<64x32xf32, #tpu.memory_space<vmem>>, vector<8x32xf32>
    tpu.vector_store %arg23[%c16_111, %c0_112], %281 {strides = array<i32>} : memref<64x32xf32, #tpu.memory_space<vmem>>, vector<8x32xf32>,
    %c48_113 = arith.constant 48 : index
    %c0_114 = arith.constant 0 : index
    %284 = vector.load %arg19[%c48_113, %c0_114] : memref<64x128xf32, #tpu.memory_space<vmem>>, vector<8x128xf32>
    %cst_115 = arith.constant dense<0.000000e+00> : vector<8x128xf32>
    %285 = tpu.matmul %261, %29, %cst_115 {dimension_numbers = #tpu.dot_dimension_numbers<[1], [0], [0], [1], [0, 0, 1, 1], [], []>} : vector<8x32xf32>, vector<32x128xf32>, vector<8x128xf32> -> vector<8x128xf32>
    %286 = arith.addf %285, %284 : vector<8x128xf32>
    %cst_116 = arith.constant 5.000000e-01 : f32
    %287 = vector.broadcast %cst_116 : f32 to vector<8x128xf32>
    %288 = arith.mulf %287, %286 : vector<8x128xf32>
    %289 = math.tanh %288 : vector<8x128xf32>
    %cst_117 = arith.constant 1.000000e+00 : f32
    %290 = vector.broadcast %cst_117 : f32 to vector<8x128xf32>
    %291 = arith.addf %289, %290 : vector<8x128xf32>
    %cst_118 = arith.constant 5.000000e-01 : f32
    %292 = vector.broadcast %cst_118 : f32 to vector<8x128xf32>
    %293 = arith.mulf %292, %291 : vector<8x128xf32>
    %294 = math.tanh %286 : vector<8x128xf32>
    %295 = vector.extract_strided_slice %293 {offsets = [0, 0], sizes = [8, 32], strides = [1, 1]} : vector<8x128xf32> to vector<8x32xf32>
    %296 = vector.extract_strided_slice %293 {offsets = [0, 32], sizes = [8, 32], strides = [1, 1]} : vector<8x128xf32> to vector<8x32xf32>
    %297 = vector.extract_strided_slice %294 {offsets = [0, 64], sizes = [8, 32], strides = [1, 1]} : vector<8x128xf32> to vector<8x32xf32>
    %298 = vector.extract_strided_slice %293 {offsets = [0, 96], sizes = [8, 32], strides = [1, 1]} : vector<8x128xf32> to vector<8x32xf32>
    %299 = arith.mulf %296, %259 : vector<8x32xf32>
    %300 = arith.mulf %295, %297 : vector<8x32xf32>
    %301 = arith.addf %299, %300 : vector<8x32xf32>
    %302 = math.tanh %301 : vector<8x32xf32>
    %303 = arith.mulf %298, %302 : vector<8x32xf32>
    %c8_119 = arith.constant 8 : index
    %c0_120 = arith.constant 0 : index
    %304 = vector.load %arg20[%c8_119, %c0_120] : memref<64x128xf32, #tpu.memory_space<vmem>>, vector<8x128xf32>
    %cst_121 = arith.constant dense<0.000000e+00> : vector<8x128xf32>
    %305 = tpu.matmul %281, %30, %cst_121 {dimension_numbers = #tpu.dot_dimension_numbers<[1], [0], [0], [1], [0, 0, 1, 1], [], []>} : vector<8x32xf32>, vector<32x128xf32>, vector<8x128xf32> -> vector<8x128xf32>
    %306 = arith.addf %305, %304 : vector<8x128xf32>
    %cst_122 = arith.constant 5.000000e-01 : f32
    %307 = vector.broadcast %cst_122 : f32 to vector<8x128xf32>
    %308 = arith.mulf %307, %306 : vector<8x128xf32>
    %309 = math.tanh %308 : vector<8x128xf32>
    %cst_123 = arith.constant 1.000000e+00 : f32
    %310 = vector.broadcast %cst_123 : f32 to vector<8x128xf32>
    %311 = arith.addf %309, %310 : vector<8x128xf32>
    %cst_124 = arith.constant 5.000000e-01 : f32
    %312 = vector.broadcast %cst_124 : f32 to vector<8x128xf32>
    %313 = arith.mulf %312, %311 : vector<8x128xf32>
    %314 = math.tanh %306 : vector<8x128xf32>
    %315 = vector.extract_strided_slice %313 {offsets = [0, 0], sizes = [8, 32], strides = [1, 1]} : vector<8x128xf32> to vector<8x32xf32>
    %316 = vector.extract_strided_slice %313 {offsets = [0, 32], sizes = [8, 32], strides = [1, 1]} : vector<8x128xf32> to vector<8x32xf32>
    %317 = vector.extract_strided_slice %314 {offsets = [0, 64], sizes = [8, 32], strides = [1, 1]} : vector<8x128xf32> to vector<8x32xf32>
    %318 = vector.extract_strided_slice %313 {offsets = [0, 96], sizes = [8, 32], strides = [1, 1]} : vector<8x128xf32> to vector<8x32xf32>
    %319 = arith.mulf %316, %279 : vector<8x32xf32>
    %320 = arith.mulf %315, %317 : vector<8x32xf32>
    %321 = arith.addf %319, %320 : vector<8x32xf32>
    %322 = math.tanh %321 : vector<8x32xf32>
    %323 = arith.mulf %318, %322 : vector<8x32xf32>
    %c48_125 = arith.constant 48 : index
    %c0_126 = arith.constant 0 : index
    %324 = vector.load %arg22[%c48_125, %c0_126] : memref<64x32xf32, #tpu.memory_space<vmem>>, vector<8x32xf32>
    tpu.vector_store %arg22[%c48_125, %c0_126], %303 {strides = array<i32>} : memref<64x32xf32, #tpu.memory_space<vmem>>, vector<8x32xf32>,
    %c8_127 = arith.constant 8 : index
    %c0_128 = arith.constant 0 : index
    %325 = vector.load %arg23[%c8_127, %c0_128] : memref<64x32xf32, #tpu.memory_space<vmem>>, vector<8x32xf32>
    tpu.vector_store %arg23[%c8_127, %c0_128], %323 {strides = array<i32>} : memref<64x32xf32, #tpu.memory_space<vmem>>, vector<8x32xf32>,
    %c56_129 = arith.constant 56 : index
    %c0_130 = arith.constant 0 : index
    %326 = vector.load %arg19[%c56_129, %c0_130] : memref<64x128xf32, #tpu.memory_space<vmem>>, vector<8x128xf32>
    %cst_131 = arith.constant dense<0.000000e+00> : vector<8x128xf32>
    %327 = tpu.matmul %303, %29, %cst_131 {dimension_numbers = #tpu.dot_dimension_numbers<[1], [0], [0], [1], [0, 0, 1, 1], [], []>} : vector<8x32xf32>, vector<32x128xf32>, vector<8x128xf32> -> vector<8x128xf32>
    %328 = arith.addf %327, %326 : vector<8x128xf32>
    %cst_132 = arith.constant 5.000000e-01 : f32
    %329 = vector.broadcast %cst_132 : f32 to vector<8x128xf32>
    %330 = arith.mulf %329, %328 : vector<8x128xf32>
    %331 = math.tanh %330 : vector<8x128xf32>
    %cst_133 = arith.constant 1.000000e+00 : f32
    %332 = vector.broadcast %cst_133 : f32 to vector<8x128xf32>
    %333 = arith.addf %331, %332 : vector<8x128xf32>
    %cst_134 = arith.constant 5.000000e-01 : f32
    %334 = vector.broadcast %cst_134 : f32 to vector<8x128xf32>
    %335 = arith.mulf %334, %333 : vector<8x128xf32>
    %336 = math.tanh %328 : vector<8x128xf32>
    %337 = vector.extract_strided_slice %335 {offsets = [0, 0], sizes = [8, 32], strides = [1, 1]} : vector<8x128xf32> to vector<8x32xf32>
    %338 = vector.extract_strided_slice %335 {offsets = [0, 32], sizes = [8, 32], strides = [1, 1]} : vector<8x128xf32> to vector<8x32xf32>
    %339 = vector.extract_strided_slice %336 {offsets = [0, 64], sizes = [8, 32], strides = [1, 1]} : vector<8x128xf32> to vector<8x32xf32>
    %340 = vector.extract_strided_slice %335 {offsets = [0, 96], sizes = [8, 32], strides = [1, 1]} : vector<8x128xf32> to vector<8x32xf32>
    %341 = arith.mulf %338, %301 : vector<8x32xf32>
    %342 = arith.mulf %337, %339 : vector<8x32xf32>
    %343 = arith.addf %341, %342 : vector<8x32xf32>
    %344 = math.tanh %343 : vector<8x32xf32>
    %345 = arith.mulf %340, %344 : vector<8x32xf32>
    %c0_135 = arith.constant 0 : index
    %c0_136 = arith.constant 0 : index
    %346 = vector.load %arg20[%c0_135, %c0_136] : memref<64x128xf32, #tpu.memory_space<vmem>>, vector<8x128xf32>
    %cst_137 = arith.constant dense<0.000000e+00> : vector<8x128xf32>
    %347 = tpu.matmul %323, %30, %cst_137 {dimension_numbers = #tpu.dot_dimension_numbers<[1], [0], [0], [1], [0, 0, 1, 1], [], []>} : vector<8x32xf32>, vector<32x128xf32>, vector<8x128xf32> -> vector<8x128xf32>
    %348 = arith.addf %347, %346 : vector<8x128xf32>
    %cst_138 = arith.constant 5.000000e-01 : f32
    %349 = vector.broadcast %cst_138 : f32 to vector<8x128xf32>
    %350 = arith.mulf %349, %348 : vector<8x128xf32>
    %351 = math.tanh %350 : vector<8x128xf32>
    %cst_139 = arith.constant 1.000000e+00 : f32
    %352 = vector.broadcast %cst_139 : f32 to vector<8x128xf32>
    %353 = arith.addf %351, %352 : vector<8x128xf32>
    %cst_140 = arith.constant 5.000000e-01 : f32
    %354 = vector.broadcast %cst_140 : f32 to vector<8x128xf32>
    %355 = arith.mulf %354, %353 : vector<8x128xf32>
    %356 = math.tanh %348 : vector<8x128xf32>
    %357 = vector.extract_strided_slice %355 {offsets = [0, 0], sizes = [8, 32], strides = [1, 1]} : vector<8x128xf32> to vector<8x32xf32>
    %358 = vector.extract_strided_slice %355 {offsets = [0, 32], sizes = [8, 32], strides = [1, 1]} : vector<8x128xf32> to vector<8x32xf32>
    %359 = vector.extract_strided_slice %356 {offsets = [0, 64], sizes = [8, 32], strides = [1, 1]} : vector<8x128xf32> to vector<8x32xf32>
    %360 = vector.extract_strided_slice %355 {offsets = [0, 96], sizes = [8, 32], strides = [1, 1]} : vector<8x128xf32> to vector<8x32xf32>
    %361 = arith.mulf %358, %321 : vector<8x32xf32>
    %362 = arith.mulf %357, %359 : vector<8x32xf32>
    %363 = arith.addf %361, %362 : vector<8x32xf32>
    %364 = math.tanh %363 : vector<8x32xf32>
    %365 = arith.mulf %360, %364 : vector<8x32xf32>
    %c56_141 = arith.constant 56 : index
    %c0_142 = arith.constant 0 : index
    %366 = vector.load %arg22[%c56_141, %c0_142] : memref<64x32xf32, #tpu.memory_space<vmem>>, vector<8x32xf32>
    tpu.vector_store %arg22[%c56_141, %c0_142], %345 {strides = array<i32>} : memref<64x32xf32, #tpu.memory_space<vmem>>, vector<8x32xf32>,
    %c0_143 = arith.constant 0 : index
    %c0_144 = arith.constant 0 : index
    %367 = vector.load %arg23[%c0_143, %c0_144] : memref<64x32xf32, #tpu.memory_space<vmem>>, vector<8x32xf32>
    tpu.vector_store %arg23[%c0_143, %c0_144], %365 {strides = array<i32>} : memref<64x32xf32, #tpu.memory_space<vmem>>, vector<8x32xf32>,
    %c0_145 = arith.constant 0 : index
    %c0_146 = arith.constant 0 : index
    %c0_147 = arith.constant 0 : index
    %368 = vector.load %arg2[%c0_145, %c0_146, %c0_147] : memref<1x64x32xf32, #tpu.memory_space<vmem>>, vector<1x64x32xf32>
    %369 = vector.shape_cast %368 : vector<1x64x32xf32> to vector<64x32xf32>
    %c0_148 = arith.constant 0 : index
    %c0_149 = arith.constant 0 : index
    %c0_150 = arith.constant 0 : index
    %370 = vector.load %arg11[%c0_148, %c0_149, %c0_150] : memref<3x32x32xf32, #tpu.memory_space<vmem>>, vector<1x32x32xf32>
    %371 = vector.shape_cast %370 : vector<1x32x32xf32> to vector<32x32xf32>
    %cst_151 = arith.constant dense<0.000000e+00> : vector<64x32xf32>
    %372 = tpu.matmul %369, %371, %cst_151 {dimension_numbers = #tpu.dot_dimension_numbers<[1], [0], [0], [1], [0, 0, 1, 1], [], []>} : vector<64x32xf32>, vector<32x32xf32>, vector<64x32xf32> -> vector<64x32xf32>
    %c0_152 = arith.constant 0 : index
    %c0_153 = arith.constant 0 : index
    %373 = vector.load %arg22[%c0_152, %c0_153] : memref<64x32xf32, #tpu.memory_space<vmem>>, vector<64x32xf32>
    %c1 = arith.constant 1 : index
    %c0_154 = arith.constant 0 : index
    %c0_155 = arith.constant 0 : index
    %374 = vector.load %arg11[%c1, %c0_154, %c0_155] : memref<3x32x32xf32, #tpu.memory_space<vmem>>, vector<1x32x32xf32>
    %375 = vector.shape_cast %374 : vector<1x32x32xf32> to vector<32x32xf32>
    %cst_156 = arith.constant dense<0.000000e+00> : vector<64x32xf32>
    %376 = tpu.matmul %373, %375, %cst_156 {dimension_numbers = #tpu.dot_dimension_numbers<[1], [0], [0], [1], [0, 0, 1, 1], [], []>} : vector<64x32xf32>, vector<32x32xf32>, vector<64x32xf32> -> vector<64x32xf32>
    %377 = arith.addf %372, %376 : vector<64x32xf32>
    %c0_157 = arith.constant 0 : index
    %c0_158 = arith.constant 0 : index
    %378 = vector.load %arg23[%c0_157, %c0_158] : memref<64x32xf32, #tpu.memory_space<vmem>>, vector<64x32xf32>
    %c2 = arith.constant 2 : index
    %c0_159 = arith.constant 0 : index
    %c0_160 = arith.constant 0 : index
    %379 = vector.load %arg11[%c2, %c0_159, %c0_160] : memref<3x32x32xf32, #tpu.memory_space<vmem>>, vector<1x32x32xf32>
    %380 = vector.shape_cast %379 : vector<1x32x32xf32> to vector<32x32xf32>
    %cst_161 = arith.constant dense<0.000000e+00> : vector<64x32xf32>
    %381 = tpu.matmul %378, %380, %cst_161 {dimension_numbers = #tpu.dot_dimension_numbers<[1], [0], [0], [1], [0, 0, 1, 1], [], []>} : vector<64x32xf32>, vector<32x32xf32>, vector<64x32xf32> -> vector<64x32xf32>
    %382 = arith.addf %377, %381 : vector<64x32xf32>
    %c0_162 = arith.constant 0 : index
    %c0_163 = arith.constant 0 : index
    %383 = vector.load %arg12[%c0_162, %c0_163] : memref<1x32xf32, #tpu.memory_space<vmem>>, vector<1x32xf32>
    %384 = vector.broadcast %383 : vector<1x32xf32> to vector<64x32xf32>
    %385 = arith.addf %382, %384 : vector<64x32xf32>
    %cst_164 = arith.constant 0.000000e+00 : f32
    %386 = vector.broadcast %cst_164 : f32 to vector<64x32xf32>
    %387 = arith.maximumf %385, %386 : vector<64x32xf32>
    %c0_165 = arith.constant 0 : index
    %c0_166 = arith.constant 0 : index
    %388 = vector.load %arg13[%c0_165, %c0_166] : memref<32x128xf32, #tpu.memory_space<vmem>>, vector<32x128xf32>
    %cst_167 = arith.constant dense<0.000000e+00> : vector<64x128xf32>
    %389 = tpu.matmul %387, %388, %cst_167 {dimension_numbers = #tpu.dot_dimension_numbers<[1], [0], [0], [1], [0, 0, 1, 1], [], []>} : vector<64x32xf32>, vector<32x128xf32>, vector<64x128xf32> -> vector<64x128xf32>
    %c0_168 = arith.constant 0 : index
    %c0_169 = arith.constant 0 : index
    %390 = vector.load %arg15[%c0_168, %c0_169] : memref<1x128xf32, #tpu.memory_space<vmem>>, vector<1x128xf32>
    %391 = vector.broadcast %390 : vector<1x128xf32> to vector<64x128xf32>
    %392 = arith.addf %389, %391 : vector<64x128xf32>
    %c0_170 = arith.constant 0 : index
    %c0_171 = arith.constant 0 : index
    %393 = vector.load %arg21[%c0_170, %c0_171] : memref<64x128xf32, #tpu.memory_space<vmem>>, vector<64x128xf32>
    tpu.vector_store %arg21[%c0_170, %c0_171], %392 {strides = array<i32>} : memref<64x128xf32, #tpu.memory_space<vmem>>, vector<64x128xf32>,
    %c0_172 = arith.constant 0 : index
    %c0_173 = arith.constant 0 : index
    %394 = vector.load %arg14[%c0_172, %c0_173] : memref<32x128xf32, #tpu.memory_space<vmem>>, vector<32x128xf32>
    %c0_174 = arith.constant 0 : index
    %c0_175 = arith.constant 0 : index
    %395 = vector.load %arg21[%c0_174, %c0_175] : memref<64x128xf32, #tpu.memory_space<vmem>>, vector<8x128xf32>
    %cst_176 = arith.constant dense<0.000000e+00> : vector<8x128xf32>
    %396 = tpu.matmul %345, %394, %cst_176 {dimension_numbers = #tpu.dot_dimension_numbers<[1], [0], [0], [1], [0, 0, 1, 1], [], []>} : vector<8x32xf32>, vector<32x128xf32>, vector<8x128xf32> -> vector<8x128xf32>
    %397 = arith.addf %396, %395 : vector<8x128xf32>
    %cst_177 = arith.constant 5.000000e-01 : f32
    %398 = vector.broadcast %cst_177 : f32 to vector<8x128xf32>
    %399 = arith.mulf %398, %397 : vector<8x128xf32>
    %400 = math.tanh %399 : vector<8x128xf32>
    %cst_178 = arith.constant 1.000000e+00 : f32
    %401 = vector.broadcast %cst_178 : f32 to vector<8x128xf32>
    %402 = arith.addf %400, %401 : vector<8x128xf32>
    %cst_179 = arith.constant 5.000000e-01 : f32
    %403 = vector.broadcast %cst_179 : f32 to vector<8x128xf32>
    %404 = arith.mulf %403, %402 : vector<8x128xf32>
    %405 = math.tanh %397 : vector<8x128xf32>
    %406 = vector.extract_strided_slice %404 {offsets = [0, 0], sizes = [8, 32], strides = [1, 1]} : vector<8x128xf32> to vector<8x32xf32>
    %407 = vector.extract_strided_slice %404 {offsets = [0, 32], sizes = [8, 32], strides = [1, 1]} : vector<8x128xf32> to vector<8x32xf32>
    %408 = vector.extract_strided_slice %405 {offsets = [0, 64], sizes = [8, 32], strides = [1, 1]} : vector<8x128xf32> to vector<8x32xf32>
    %409 = vector.extract_strided_slice %404 {offsets = [0, 96], sizes = [8, 32], strides = [1, 1]} : vector<8x128xf32> to vector<8x32xf32>
    %410 = arith.mulf %407, %343 : vector<8x32xf32>
    %411 = arith.mulf %406, %408 : vector<8x32xf32>
    %412 = arith.addf %410, %411 : vector<8x32xf32>
    %413 = math.tanh %412 : vector<8x32xf32>
    %414 = arith.mulf %409, %413 : vector<8x32xf32>
    %c0_180 = arith.constant 0 : index
    %c0_181 = arith.constant 0 : index
    %415 = vector.load %arg24[%c0_180, %c0_181] : memref<64x32xf32, #tpu.memory_space<vmem>>, vector<8x32xf32>
    tpu.vector_store %arg24[%c0_180, %c0_181], %414 {strides = array<i32>} : memref<64x32xf32, #tpu.memory_space<vmem>>, vector<8x32xf32>,
    %c8_182 = arith.constant 8 : index
    %c0_183 = arith.constant 0 : index
    %416 = vector.load %arg21[%c8_182, %c0_183] : memref<64x128xf32, #tpu.memory_space<vmem>>, vector<8x128xf32>
    %cst_184 = arith.constant dense<0.000000e+00> : vector<8x128xf32>
    %417 = tpu.matmul %414, %394, %cst_184 {dimension_numbers = #tpu.dot_dimension_numbers<[1], [0], [0], [1], [0, 0, 1, 1], [], []>} : vector<8x32xf32>, vector<32x128xf32>, vector<8x128xf32> -> vector<8x128xf32>
    %418 = arith.addf %417, %416 : vector<8x128xf32>
    %cst_185 = arith.constant 5.000000e-01 : f32
    %419 = vector.broadcast %cst_185 : f32 to vector<8x128xf32>
    %420 = arith.mulf %419, %418 : vector<8x128xf32>
    %421 = math.tanh %420 : vector<8x128xf32>
    %cst_186 = arith.constant 1.000000e+00 : f32
    %422 = vector.broadcast %cst_186 : f32 to vector<8x128xf32>
    %423 = arith.addf %421, %422 : vector<8x128xf32>
    %cst_187 = arith.constant 5.000000e-01 : f32
    %424 = vector.broadcast %cst_187 : f32 to vector<8x128xf32>
    %425 = arith.mulf %424, %423 : vector<8x128xf32>
    %426 = math.tanh %418 : vector<8x128xf32>
    %427 = vector.extract_strided_slice %425 {offsets = [0, 0], sizes = [8, 32], strides = [1, 1]} : vector<8x128xf32> to vector<8x32xf32>
    %428 = vector.extract_strided_slice %425 {offsets = [0, 32], sizes = [8, 32], strides = [1, 1]} : vector<8x128xf32> to vector<8x32xf32>
    %429 = vector.extract_strided_slice %426 {offsets = [0, 64], sizes = [8, 32], strides = [1, 1]} : vector<8x128xf32> to vector<8x32xf32>
    %430 = vector.extract_strided_slice %425 {offsets = [0, 96], sizes = [8, 32], strides = [1, 1]} : vector<8x128xf32> to vector<8x32xf32>
    %431 = arith.mulf %428, %412 : vector<8x32xf32>
    %432 = arith.mulf %427, %429 : vector<8x32xf32>
    %433 = arith.addf %431, %432 : vector<8x32xf32>
    %434 = math.tanh %433 : vector<8x32xf32>
    %435 = arith.mulf %430, %434 : vector<8x32xf32>
    %c8_188 = arith.constant 8 : index
    %c0_189 = arith.constant 0 : index
    %436 = vector.load %arg24[%c8_188, %c0_189] : memref<64x32xf32, #tpu.memory_space<vmem>>, vector<8x32xf32>
    tpu.vector_store %arg24[%c8_188, %c0_189], %435 {strides = array<i32>} : memref<64x32xf32, #tpu.memory_space<vmem>>, vector<8x32xf32>,
    %c16_190 = arith.constant 16 : index
    %c0_191 = arith.constant 0 : index
    %437 = vector.load %arg21[%c16_190, %c0_191] : memref<64x128xf32, #tpu.memory_space<vmem>>, vector<8x128xf32>
    %cst_192 = arith.constant dense<0.000000e+00> : vector<8x128xf32>
    %438 = tpu.matmul %435, %394, %cst_192 {dimension_numbers = #tpu.dot_dimension_numbers<[1], [0], [0], [1], [0, 0, 1, 1], [], []>} : vector<8x32xf32>, vector<32x128xf32>, vector<8x128xf32> -> vector<8x128xf32>
    %439 = arith.addf %438, %437 : vector<8x128xf32>
    %cst_193 = arith.constant 5.000000e-01 : f32
    %440 = vector.broadcast %cst_193 : f32 to vector<8x128xf32>
    %441 = arith.mulf %440, %439 : vector<8x128xf32>
    %442 = math.tanh %441 : vector<8x128xf32>
    %cst_194 = arith.constant 1.000000e+00 : f32
    %443 = vector.broadcast %cst_194 : f32 to vector<8x128xf32>
    %444 = arith.addf %442, %443 : vector<8x128xf32>
    %cst_195 = arith.constant 5.000000e-01 : f32
    %445 = vector.broadcast %cst_195 : f32 to vector<8x128xf32>
    %446 = arith.mulf %445, %444 : vector<8x128xf32>
    %447 = math.tanh %439 : vector<8x128xf32>
    %448 = vector.extract_strided_slice %446 {offsets = [0, 0], sizes = [8, 32], strides = [1, 1]} : vector<8x128xf32> to vector<8x32xf32>
    %449 = vector.extract_strided_slice %446 {offsets = [0, 32], sizes = [8, 32], strides = [1, 1]} : vector<8x128xf32> to vector<8x32xf32>
    %450 = vector.extract_strided_slice %447 {offsets = [0, 64], sizes = [8, 32], strides = [1, 1]} : vector<8x128xf32> to vector<8x32xf32>
    %451 = vector.extract_strided_slice %446 {offsets = [0, 96], sizes = [8, 32], strides = [1, 1]} : vector<8x128xf32> to vector<8x32xf32>
    %452 = arith.mulf %449, %433 : vector<8x32xf32>
    %453 = arith.mulf %448, %450 : vector<8x32xf32>
    %454 = arith.addf %452, %453 : vector<8x32xf32>
    %455 = math.tanh %454 : vector<8x32xf32>
    %456 = arith.mulf %451, %455 : vector<8x32xf32>
    %c16_196 = arith.constant 16 : index
    %c0_197 = arith.constant 0 : index
    %457 = vector.load %arg24[%c16_196, %c0_197] : memref<64x32xf32, #tpu.memory_space<vmem>>, vector<8x32xf32>
    tpu.vector_store %arg24[%c16_196, %c0_197], %456 {strides = array<i32>} : memref<64x32xf32, #tpu.memory_space<vmem>>, vector<8x32xf32>,
    %c24_198 = arith.constant 24 : index
    %c0_199 = arith.constant 0 : index
    %458 = vector.load %arg21[%c24_198, %c0_199] : memref<64x128xf32, #tpu.memory_space<vmem>>, vector<8x128xf32>
    %cst_200 = arith.constant dense<0.000000e+00> : vector<8x128xf32>
    %459 = tpu.matmul %456, %394, %cst_200 {dimension_numbers = #tpu.dot_dimension_numbers<[1], [0], [0], [1], [0, 0, 1, 1], [], []>} : vector<8x32xf32>, vector<32x128xf32>, vector<8x128xf32> -> vector<8x128xf32>
    %460 = arith.addf %459, %458 : vector<8x128xf32>
    %cst_201 = arith.constant 5.000000e-01 : f32
    %461 = vector.broadcast %cst_201 : f32 to vector<8x128xf32>
    %462 = arith.mulf %461, %460 : vector<8x128xf32>
    %463 = math.tanh %462 : vector<8x128xf32>
    %cst_202 = arith.constant 1.000000e+00 : f32
    %464 = vector.broadcast %cst_202 : f32 to vector<8x128xf32>
    %465 = arith.addf %463, %464 : vector<8x128xf32>
    %cst_203 = arith.constant 5.000000e-01 : f32
    %466 = vector.broadcast %cst_203 : f32 to vector<8x128xf32>
    %467 = arith.mulf %466, %465 : vector<8x128xf32>
    %468 = math.tanh %460 : vector<8x128xf32>
    %469 = vector.extract_strided_slice %467 {offsets = [0, 0], sizes = [8, 32], strides = [1, 1]} : vector<8x128xf32> to vector<8x32xf32>
    %470 = vector.extract_strided_slice %467 {offsets = [0, 32], sizes = [8, 32], strides = [1, 1]} : vector<8x128xf32> to vector<8x32xf32>
    %471 = vector.extract_strided_slice %468 {offsets = [0, 64], sizes = [8, 32], strides = [1, 1]} : vector<8x128xf32> to vector<8x32xf32>
    %472 = vector.extract_strided_slice %467 {offsets = [0, 96], sizes = [8, 32], strides = [1, 1]} : vector<8x128xf32> to vector<8x32xf32>
    %473 = arith.mulf %470, %454 : vector<8x32xf32>
    %474 = arith.mulf %469, %471 : vector<8x32xf32>
    %475 = arith.addf %473, %474 : vector<8x32xf32>
    %476 = math.tanh %475 : vector<8x32xf32>
    %477 = arith.mulf %472, %476 : vector<8x32xf32>
    %c24_204 = arith.constant 24 : index
    %c0_205 = arith.constant 0 : index
    %478 = vector.load %arg24[%c24_204, %c0_205] : memref<64x32xf32, #tpu.memory_space<vmem>>, vector<8x32xf32>
    tpu.vector_store %arg24[%c24_204, %c0_205], %477 {strides = array<i32>} : memref<64x32xf32, #tpu.memory_space<vmem>>, vector<8x32xf32>,
    %c32_206 = arith.constant 32 : index
    %c0_207 = arith.constant 0 : index
    %479 = vector.load %arg21[%c32_206, %c0_207] : memref<64x128xf32, #tpu.memory_space<vmem>>, vector<8x128xf32>
    %cst_208 = arith.constant dense<0.000000e+00> : vector<8x128xf32>
    %480 = tpu.matmul %477, %394, %cst_208 {dimension_numbers = #tpu.dot_dimension_numbers<[1], [0], [0], [1], [0, 0, 1, 1], [], []>} : vector<8x32xf32>, vector<32x128xf32>, vector<8x128xf32> -> vector<8x128xf32>
    %481 = arith.addf %480, %479 : vector<8x128xf32>
    %cst_209 = arith.constant 5.000000e-01 : f32
    %482 = vector.broadcast %cst_209 : f32 to vector<8x128xf32>
    %483 = arith.mulf %482, %481 : vector<8x128xf32>
    %484 = math.tanh %483 : vector<8x128xf32>
    %cst_210 = arith.constant 1.000000e+00 : f32
    %485 = vector.broadcast %cst_210 : f32 to vector<8x128xf32>
    %486 = arith.addf %484, %485 : vector<8x128xf32>
    %cst_211 = arith.constant 5.000000e-01 : f32
    %487 = vector.broadcast %cst_211 : f32 to vector<8x128xf32>
    %488 = arith.mulf %487, %486 : vector<8x128xf32>
    %489 = math.tanh %481 : vector<8x128xf32>
    %490 = vector.extract_strided_slice %488 {offsets = [0, 0], sizes = [8, 32], strides = [1, 1]} : vector<8x128xf32> to vector<8x32xf32>
    %491 = vector.extract_strided_slice %488 {offsets = [0, 32], sizes = [8, 32], strides = [1, 1]} : vector<8x128xf32> to vector<8x32xf32>
    %492 = vector.extract_strided_slice %489 {offsets = [0, 64], sizes = [8, 32], strides = [1, 1]} : vector<8x128xf32> to vector<8x32xf32>
    %493 = vector.extract_strided_slice %488 {offsets = [0, 96], sizes = [8, 32], strides = [1, 1]} : vector<8x128xf32> to vector<8x32xf32>
    %494 = arith.mulf %491, %475 : vector<8x32xf32>
    %495 = arith.mulf %490, %492 : vector<8x32xf32>
    %496 = arith.addf %494, %495 : vector<8x32xf32>
    %497 = math.tanh %496 : vector<8x32xf32>
    %498 = arith.mulf %493, %497 : vector<8x32xf32>
    %c32_212 = arith.constant 32 : index
    %c0_213 = arith.constant 0 : index
    %499 = vector.load %arg24[%c32_212, %c0_213] : memref<64x32xf32, #tpu.memory_space<vmem>>, vector<8x32xf32>
    tpu.vector_store %arg24[%c32_212, %c0_213], %498 {strides = array<i32>} : memref<64x32xf32, #tpu.memory_space<vmem>>, vector<8x32xf32>,
    %c40_214 = arith.constant 40 : index
    %c0_215 = arith.constant 0 : index
    %500 = vector.load %arg21[%c40_214, %c0_215] : memref<64x128xf32, #tpu.memory_space<vmem>>, vector<8x128xf32>
    %cst_216 = arith.constant dense<0.000000e+00> : vector<8x128xf32>
    %501 = tpu.matmul %498, %394, %cst_216 {dimension_numbers = #tpu.dot_dimension_numbers<[1], [0], [0], [1], [0, 0, 1, 1], [], []>} : vector<8x32xf32>, vector<32x128xf32>, vector<8x128xf32> -> vector<8x128xf32>
    %502 = arith.addf %501, %500 : vector<8x128xf32>
    %cst_217 = arith.constant 5.000000e-01 : f32
    %503 = vector.broadcast %cst_217 : f32 to vector<8x128xf32>
    %504 = arith.mulf %503, %502 : vector<8x128xf32>
    %505 = math.tanh %504 : vector<8x128xf32>
    %cst_218 = arith.constant 1.000000e+00 : f32
    %506 = vector.broadcast %cst_218 : f32 to vector<8x128xf32>
    %507 = arith.addf %505, %506 : vector<8x128xf32>
    %cst_219 = arith.constant 5.000000e-01 : f32
    %508 = vector.broadcast %cst_219 : f32 to vector<8x128xf32>
    %509 = arith.mulf %508, %507 : vector<8x128xf32>
    %510 = math.tanh %502 : vector<8x128xf32>
    %511 = vector.extract_strided_slice %509 {offsets = [0, 0], sizes = [8, 32], strides = [1, 1]} : vector<8x128xf32> to vector<8x32xf32>
    %512 = vector.extract_strided_slice %509 {offsets = [0, 32], sizes = [8, 32], strides = [1, 1]} : vector<8x128xf32> to vector<8x32xf32>
    %513 = vector.extract_strided_slice %510 {offsets = [0, 64], sizes = [8, 32], strides = [1, 1]} : vector<8x128xf32> to vector<8x32xf32>
    %514 = vector.extract_strided_slice %509 {offsets = [0, 96], sizes = [8, 32], strides = [1, 1]} : vector<8x128xf32> to vector<8x32xf32>
    %515 = arith.mulf %512, %496 : vector<8x32xf32>
    %516 = arith.mulf %511, %513 : vector<8x32xf32>
    %517 = arith.addf %515, %516 : vector<8x32xf32>
    %518 = math.tanh %517 : vector<8x32xf32>
    %519 = arith.mulf %514, %518 : vector<8x32xf32>
    %c40_220 = arith.constant 40 : index
    %c0_221 = arith.constant 0 : index
    %520 = vector.load %arg24[%c40_220, %c0_221] : memref<64x32xf32, #tpu.memory_space<vmem>>, vector<8x32xf32>
    tpu.vector_store %arg24[%c40_220, %c0_221], %519 {strides = array<i32>} : memref<64x32xf32, #tpu.memory_space<vmem>>, vector<8x32xf32>,
    %c48_222 = arith.constant 48 : index
    %c0_223 = arith.constant 0 : index
    %521 = vector.load %arg21[%c48_222, %c0_223] : memref<64x128xf32, #tpu.memory_space<vmem>>, vector<8x128xf32>
    %cst_224 = arith.constant dense<0.000000e+00> : vector<8x128xf32>
    %522 = tpu.matmul %519, %394, %cst_224 {dimension_numbers = #tpu.dot_dimension_numbers<[1], [0], [0], [1], [0, 0, 1, 1], [], []>} : vector<8x32xf32>, vector<32x128xf32>, vector<8x128xf32> -> vector<8x128xf32>
    %523 = arith.addf %522, %521 : vector<8x128xf32>
    %cst_225 = arith.constant 5.000000e-01 : f32
    %524 = vector.broadcast %cst_225 : f32 to vector<8x128xf32>
    %525 = arith.mulf %524, %523 : vector<8x128xf32>
    %526 = math.tanh %525 : vector<8x128xf32>
    %cst_226 = arith.constant 1.000000e+00 : f32
    %527 = vector.broadcast %cst_226 : f32 to vector<8x128xf32>
    %528 = arith.addf %526, %527 : vector<8x128xf32>
    %cst_227 = arith.constant 5.000000e-01 : f32
    %529 = vector.broadcast %cst_227 : f32 to vector<8x128xf32>
    %530 = arith.mulf %529, %528 : vector<8x128xf32>
    %531 = math.tanh %523 : vector<8x128xf32>
    %532 = vector.extract_strided_slice %530 {offsets = [0, 0], sizes = [8, 32], strides = [1, 1]} : vector<8x128xf32> to vector<8x32xf32>
    %533 = vector.extract_strided_slice %530 {offsets = [0, 32], sizes = [8, 32], strides = [1, 1]} : vector<8x128xf32> to vector<8x32xf32>
    %534 = vector.extract_strided_slice %531 {offsets = [0, 64], sizes = [8, 32], strides = [1, 1]} : vector<8x128xf32> to vector<8x32xf32>
    %535 = vector.extract_strided_slice %530 {offsets = [0, 96], sizes = [8, 32], strides = [1, 1]} : vector<8x128xf32> to vector<8x32xf32>
    %536 = arith.mulf %533, %517 : vector<8x32xf32>
    %537 = arith.mulf %532, %534 : vector<8x32xf32>
    %538 = arith.addf %536, %537 : vector<8x32xf32>
    %539 = math.tanh %538 : vector<8x32xf32>
    %540 = arith.mulf %535, %539 : vector<8x32xf32>
    %c48_228 = arith.constant 48 : index
    %c0_229 = arith.constant 0 : index
    %541 = vector.load %arg24[%c48_228, %c0_229] : memref<64x32xf32, #tpu.memory_space<vmem>>, vector<8x32xf32>
    tpu.vector_store %arg24[%c48_228, %c0_229], %540 {strides = array<i32>} : memref<64x32xf32, #tpu.memory_space<vmem>>, vector<8x32xf32>,
    %c56_230 = arith.constant 56 : index
    %c0_231 = arith.constant 0 : index
    %542 = vector.load %arg21[%c56_230, %c0_231] : memref<64x128xf32, #tpu.memory_space<vmem>>, vector<8x128xf32>
    %cst_232 = arith.constant dense<0.000000e+00> : vector<8x128xf32>
    %543 = tpu.matmul %540, %394, %cst_232 {dimension_numbers = #tpu.dot_dimension_numbers<[1], [0], [0], [1], [0, 0, 1, 1], [], []>} : vector<8x32xf32>, vector<32x128xf32>, vector<8x128xf32> -> vector<8x128xf32>
    %544 = arith.addf %543, %542 : vector<8x128xf32>
    %cst_233 = arith.constant 5.000000e-01 : f32
    %545 = vector.broadcast %cst_233 : f32 to vector<8x128xf32>
    %546 = arith.mulf %545, %544 : vector<8x128xf32>
    %547 = math.tanh %546 : vector<8x128xf32>
    %cst_234 = arith.constant 1.000000e+00 : f32
    %548 = vector.broadcast %cst_234 : f32 to vector<8x128xf32>
    %549 = arith.addf %547, %548 : vector<8x128xf32>
    %cst_235 = arith.constant 5.000000e-01 : f32
    %550 = vector.broadcast %cst_235 : f32 to vector<8x128xf32>
    %551 = arith.mulf %550, %549 : vector<8x128xf32>
    %552 = math.tanh %544 : vector<8x128xf32>
    %553 = vector.extract_strided_slice %551 {offsets = [0, 0], sizes = [8, 32], strides = [1, 1]} : vector<8x128xf32> to vector<8x32xf32>
    %554 = vector.extract_strided_slice %551 {offsets = [0, 32], sizes = [8, 32], strides = [1, 1]} : vector<8x128xf32> to vector<8x32xf32>
    %555 = vector.extract_strided_slice %552 {offsets = [0, 64], sizes = [8, 32], strides = [1, 1]} : vector<8x128xf32> to vector<8x32xf32>
    %556 = vector.extract_strided_slice %551 {offsets = [0, 96], sizes = [8, 32], strides = [1, 1]} : vector<8x128xf32> to vector<8x32xf32>
    %557 = arith.mulf %554, %538 : vector<8x32xf32>
    %558 = arith.mulf %553, %555 : vector<8x32xf32>
    %559 = arith.addf %557, %558 : vector<8x32xf32>
    %560 = math.tanh %559 : vector<8x32xf32>
    %561 = arith.mulf %556, %560 : vector<8x32xf32>
    %c56_236 = arith.constant 56 : index
    %c0_237 = arith.constant 0 : index
    %562 = vector.load %arg24[%c56_236, %c0_237] : memref<64x32xf32, #tpu.memory_space<vmem>>, vector<8x32xf32>
    tpu.vector_store %arg24[%c56_236, %c0_237], %561 {strides = array<i32>} : memref<64x32xf32, #tpu.memory_space<vmem>>, vector<8x32xf32>,
    %c0_238 = arith.constant 0 : index
    %c0_239 = arith.constant 0 : index
    %563 = vector.load %arg24[%c0_238, %c0_239] : memref<64x32xf32, #tpu.memory_space<vmem>>, vector<64x32xf32>
    %c0_240 = arith.constant 0 : index
    %c0_241 = arith.constant 0 : index
    %564 = vector.load %arg16[%c0_240, %c0_241] : memref<32x128xf32, #tpu.memory_space<vmem>>, vector<32x128xf32>
    %cst_242 = arith.constant dense<0.000000e+00> : vector<64x128xf32>
    %565 = tpu.matmul %563, %564, %cst_242 {dimension_numbers = #tpu.dot_dimension_numbers<[1], [0], [0], [1], [0, 0, 1, 1], [], []>} : vector<64x32xf32>, vector<32x128xf32>, vector<64x128xf32> -> vector<64x128xf32>
    %c0_243 = arith.constant 0 : index
    %c0_244 = arith.constant 0 : index
    %566 = vector.load %arg17[%c0_243, %c0_244] : memref<1x128xf32, #tpu.memory_space<vmem>>, vector<1x128xf32>
    %567 = vector.broadcast %566 : vector<1x128xf32> to vector<64x128xf32>
    %568 = arith.addf %565, %567 : vector<64x128xf32>
    %c0_245 = arith.constant 0 : index
    %c0_246 = arith.constant 0 : index
    %c0_247 = arith.constant 0 : index
    %569 = vector.load %arg18[%c0_245, %c0_246, %c0_247] : memref<1x64x128xf32, #tpu.memory_space<vmem>>, vector<1x64x128xf32>
    %570 = vector.shape_cast %569 : vector<1x64x128xf32> to vector<64x128xf32>
    %571 = vector.shape_cast %568 : vector<64x128xf32> to vector<1x64x128xf32>
    tpu.vector_store %arg18[%c0_245, %c0_246, %c0_247], %571 {strides = array<i32>} : memref<1x64x128xf32, #tpu.memory_space<vmem>>, vector<1x64x128xf32>,
    return
  }
  func.func @transform_0(%arg0: i32) -> (i32, i32, i32) {
    %c0_i32 = arith.constant 0 : i32
    %c0_i32_0 = arith.constant 0 : i32
    %c0_i32_1 = arith.constant 0 : i32
    return %arg0, %c0_i32, %c0_i32_0 : i32, i32, i32
  }
  func.func @transform_1(%arg0: i32) -> (i32, i32, i32) {
    %c0_i32 = arith.constant 0 : i32
    %c0_i32_0 = arith.constant 0 : i32
    %c0_i32_1 = arith.constant 0 : i32
    return %arg0, %c0_i32, %c0_i32_0 : i32, i32, i32
  }
  func.func @transform_2(%arg0: i32) -> (i32, i32) {
    %c0_i32 = arith.constant 0 : i32
    %c0_i32_0 = arith.constant 0 : i32
    %c0_i32_1 = arith.constant 0 : i32
    return %c0_i32, %c0_i32_0 : i32, i32
  }
  func.func @transform_3(%arg0: i32) -> (i32, i32) {
    %c0_i32 = arith.constant 0 : i32
    %c0_i32_0 = arith.constant 0 : i32
    %c0_i32_1 = arith.constant 0 : i32
    return %c0_i32, %c0_i32_0 : i32, i32
  }
  func.func @transform_4(%arg0: i32) -> (i32, i32) {
    %c0_i32 = arith.constant 0 : i32
    %c0_i32_0 = arith.constant 0 : i32
    %c0_i32_1 = arith.constant 0 : i32
    return %c0_i32, %c0_i32_0 : i32, i32
  }
  func.func @transform_5(%arg0: i32) -> (i32, i32) {
    %c0_i32 = arith.constant 0 : i32
    %c0_i32_0 = arith.constant 0 : i32
    %c0_i32_1 = arith.constant 0 : i32
    return %c0_i32, %c0_i32_0 : i32, i32
  }
  func.func @transform_6(%arg0: i32) -> (i32, i32) {
    %c0_i32 = arith.constant 0 : i32
    %c0_i32_0 = arith.constant 0 : i32
    %c0_i32_1 = arith.constant 0 : i32
    return %c0_i32, %c0_i32_0 : i32, i32
  }
  func.func @transform_7(%arg0: i32) -> (i32, i32) {
    %c0_i32 = arith.constant 0 : i32
    %c0_i32_0 = arith.constant 0 : i32
    %c0_i32_1 = arith.constant 0 : i32
    return %c0_i32, %c0_i32_0 : i32, i32
  }
  func.func @transform_8(%arg0: i32) -> (i32, i32) {
    %c0_i32 = arith.constant 0 : i32
    %c0_i32_0 = arith.constant 0 : i32
    %c0_i32_1 = arith.constant 0 : i32
    return %c0_i32, %c0_i32_0 : i32, i32
  }
  func.func @transform_9(%arg0: i32) -> (i32, i32) {
    %c0_i32 = arith.constant 0 : i32
    %c0_i32_0 = arith.constant 0 : i32
    %c0_i32_1 = arith.constant 0 : i32
    return %c0_i32, %c0_i32_0 : i32, i32
  }
  func.func @transform_10(%arg0: i32) -> (i32, i32, i32) {
    %c0_i32 = arith.constant 0 : i32
    %c0_i32_0 = arith.constant 0 : i32
    %c0_i32_1 = arith.constant 0 : i32
    %c0_i32_2 = arith.constant 0 : i32
    return %c0_i32, %c0_i32_0, %c0_i32_1 : i32, i32, i32
  }
  func.func @transform_11(%arg0: i32) -> (i32, i32) {
    %c0_i32 = arith.constant 0 : i32
    %c0_i32_0 = arith.constant 0 : i32
    %c0_i32_1 = arith.constant 0 : i32
    return %c0_i32, %c0_i32_0 : i32, i32
  }
  func.func @transform_12(%arg0: i32) -> (i32, i32) {
    %c0_i32 = arith.constant 0 : i32
    %c0_i32_0 = arith.constant 0 : i32
    %c0_i32_1 = arith.constant 0 : i32
    return %c0_i32, %c0_i32_0 : i32, i32
  }
  func.func @transform_13(%arg0: i32) -> (i32, i32) {
    %c0_i32 = arith.constant 0 : i32
    %c0_i32_0 = arith.constant 0 : i32
    %c0_i32_1 = arith.constant 0 : i32
    return %c0_i32, %c0_i32_0 : i32, i32
  }
  func.func @transform_14(%arg0: i32) -> (i32, i32) {
    %c0_i32 = arith.constant 0 : i32
    %c0_i32_0 = arith.constant 0 : i32
    %c0_i32_1 = arith.constant 0 : i32
    return %c0_i32, %c0_i32_0 : i32, i32
  }
  func.func @transform_15(%arg0: i32) -> (i32, i32) {
    %c0_i32 = arith.constant 0 : i32
    %c0_i32_0 = arith.constant 0 : i32
    %c0_i32_1 = arith.constant 0 : i32
    return %c0_i32, %c0_i32_0 : i32, i32
  }
  func.func @transform_16(%arg0: i32) -> (i32, i32) {
    %c0_i32 = arith.constant 0 : i32
    %c0_i32_0 = arith.constant 0 : i32
    %c0_i32_1 = arith.constant 0 : i32
    return %c0_i32, %c0_i32_0 : i32, i32
  }
  func.func @transform_17(%arg0: i32) -> (i32, i32, i32) {
    %c0_i32 = arith.constant 0 : i32
    %c0_i32_0 = arith.constant 0 : i32
    %c0_i32_1 = arith.constant 0 : i32
    return %arg0, %c0_i32, %c0_i32_0 : i32, i32, i32
  }
}

</mosaic_0001>

<llo_original>
// kernel: deepbeats_forward.1
$region0: #{deepbeats_forward.1}
  #allocation0 [shape = 'u32[]', space=smem, size = 0x4, offset = 0x4, fixed_abs, tag = 'smem constant byte address 0x4 - core index']
  #allocation1 [shape = 'u32[144,128]{1,0:T(1,128)}', space=vmem, size = 0x12000, scoped, tag = 'internal scratch']
  #allocation2 [shape = 'f32[64,128]{1,0:T(8,128)}', space=vmem, size = 0x8000, scoped, tag = 'scratch operand']
  #allocation3 [shape = 'f32[64,128]{1,0:T(8,128)}', space=vmem, size = 0x8000, scoped, tag = 'scratch operand']
  #allocation4 [shape = 'f32[64,128]{1,0:T(8,128)}', space=vmem, size = 0x8000, scoped, tag = 'scratch operand']
  #allocation5 [shape = 'f32[64,32]{1,0:T(8,128)}', space=vmem, size = 0x8000, scoped, tag = 'scratch operand']
  #allocation6 [shape = 'f32[64,32]{1,0:T(8,128)}', space=vmem, size = 0x8000, scoped, tag = 'scratch operand']
  #allocation7 [shape = 'f32[64,32]{1,0:T(8,128)}', space=vmem, size = 0x8000, scoped, tag = 'scratch operand']
  %s0 = inlined_call_operand.vmem [shape: f32[1,64,2], index: 0, kind: input, shape index: {}]
  %s1 = inlined_call_operand.vmem [shape: f32[1,64,32], index: 1, kind: input, shape index: {}]
  %s2 = inlined_call_operand.vmem [shape: f32[2,32], index: 2, kind: input, shape index: {}]
  %s3 = inlined_call_operand.vmem [shape: f32[1,32], index: 3, kind: input, shape index: {}]
  %s4 = inlined_call_operand.vmem [shape: f32[32,128], index: 4, kind: input, shape index: {}]
  %s5 = inlined_call_operand.vmem [shape: f32[32,128], index: 5, kind: input, shape index: {}]
  %s6 = inlined_call_operand.vmem [shape: f32[1,128], index: 6, kind: input, shape index: {}]
  %s7 = inlined_call_operand.vmem [shape: f32[32,128], index: 7, kind: input, shape index: {}]
  %s8 = inlined_call_operand.vmem [shape: f32[32,128], index: 8, kind: input, shape index: {}]
  %s9 = inlined_call_operand.vmem [shape: f32[1,128], index: 9, kind: input, shape index: {}]
  %s10 = inlined_call_operand.vmem [shape: f32[3,32,32], index: 10, kind: input, shape index: {}]
  %s11 = inlined_call_operand.vmem [shape: f32[1,32], index: 11, kind: input, shape index: {}]
  %s12 = inlined_call_operand.vmem [shape: f32[32,128], index: 12, kind: input, shape index: {}]
  %s13 = inlined_call_operand.vmem [shape: f32[32,128], index: 13, kind: input, shape index: {}]
  %s14 = inlined_call_operand.vmem [shape: f32[1,128], index: 14, kind: input, shape index: {}]
  %s15 = inlined_call_operand.vmem [shape: f32[32,128], index: 15, kind: input, shape index: {}]
  %s16 = inlined_call_operand.vmem [shape: f32[1,128], index: 16, kind: input, shape index: {}]
  %s17 = inlined_call_operand.vmem [shape: f32[1,64,128], index: 17, kind: output, shape index: {}]
  %s18 = sld [smem:[#allocation0]]
  $region78: #{deepbeats_forward.1} parent=0
    _
  %s20 = ssub.s32 1, %s18
  %s21 = scalar_select 0, %s20, %s18
  // Predicated region
  $region2: #{deepbeats_forward.1} parent=0 // pred_check
    _
  $region3: #{deepbeats_forward.1} parent=0 // pred_check_branch
    %23 = sbr.rel (0) target = $region5
  $region4: #{deepbeats_forward.1} parent=0 // pred_region
    _
  $region5: #{deepbeats_forward.1} parent=0 // pred_fallthru
    _
  // Predicated region
  $region6: #{deepbeats_forward.1} parent=0 // pred_check
    _
  $region7: #{deepbeats_forward.1} parent=0 // pred_check_branch
    %25 = sbr.rel (0) target = $region9
  $region8: #{deepbeats_forward.1} parent=0 // pred_region
    _
  $region9: #{deepbeats_forward.1} parent=0 // pred_fallthru
    _
  // Predicated region
  $region10: #{deepbeats_forward.1} parent=0 // pred_check
    _
  $region11: #{deepbeats_forward.1} parent=0 // pred_check_branch
    %27 = sbr.rel (0) target = $region13
  $region12: #{deepbeats_forward.1} parent=0 // pred_region
    _
  $region13: #{deepbeats_forward.1} parent=0 // pred_fallthru
    _
  // Predicated region
  $region14: #{deepbeats_forward.1} parent=0 // pred_check
    _
  $region15: #{deepbeats_forward.1} parent=0 // pred_check_branch
    %29 = sbr.rel (0) target = $region17
  $region16: #{deepbeats_forward.1} parent=0 // pred_region
    _
  $region17: #{deepbeats_forward.1} parent=0 // pred_fallthru
    _
  // Predicated region
  $region18: #{deepbeats_forward.1} parent=0 // pred_check
    _
  $region19: #{deepbeats_forward.1} parent=0 // pred_check_branch
    %31 = sbr.rel (0) target = $region21
  $region20: #{deepbeats_forward.1} parent=0 // pred_region
    _
  $region21: #{deepbeats_forward.1} parent=0 // pred_fallthru
    _
  // Predicated region
  $region22: #{deepbeats_forward.1} parent=0 // pred_check
    _
  $region23: #{deepbeats_forward.1} parent=0 // pred_check_branch
    %33 = sbr.rel (0) target = $region25
  $region24: #{deepbeats_forward.1} parent=0 // pred_region
    _
  $region25: #{deepbeats_forward.1} parent=0 // pred_fallthru
    _
  // Predicated region
  $region26: #{deepbeats_forward.1} parent=0 // pred_check
    _
  $region27: #{deepbeats_forward.1} parent=0 // pred_check_branch
    %35 = sbr.rel (0) target = $region29
  $region28: #{deepbeats_forward.1} parent=0 // pred_region
    _
  $region29: #{deepbeats_forward.1} parent=0 // pred_fallthru
    _
  // Predicated region
  $region30: #{deepbeats_forward.1} parent=0 // pred_check
    _
  $region31: #{deepbeats_forward.1} parent=0 // pred_check_branch
    %37 = sbr.rel (0) target = $region33
  $region32: #{deepbeats_forward.1} parent=0 // pred_region
    _
  $region33: #{deepbeats_forward.1} parent=0 // pred_fallthru
    _
  // Predicated region
  $region34: #{deepbeats_forward.1} parent=0 // pred_check
    _
  $region35: #{deepbeats_forward.1} parent=0 // pred_check_branch
    %39 = sbr.rel (0) target = $region37
  $region36: #{deepbeats_forward.1} parent=0 // pred_region
    _
  $region37: #{deepbeats_forward.1} parent=0 // pred_fallthru
    _
  // Predicated region
  $region38: #{deepbeats_forward.1} parent=0 // pred_check
    _
  $region39: #{deepbeats_forward.1} parent=0 // pred_check_branch
    %41 = sbr.rel (0) target = $region41
  $region40: #{deepbeats_forward.1} parent=0 // pred_region
    _
  $region41: #{deepbeats_forward.1} parent=0 // pred_fallthru
    _
  // Predicated region
  $region42: #{deepbeats_forward.1} parent=0 // pred_check
    _
  $region43: #{deepbeats_forward.1} parent=0 // pred_check_branch
    %43 = sbr.rel (0) target = $region45
  $region44: #{deepbeats_forward.1} parent=0 // pred_region
    _
  $region45: #{deepbeats_forward.1} parent=0 // pred_fallthru
    _
  // Predicated region
  $region46: #{deepbeats_forward.1} parent=0 // pred_check
    _
  $region47: #{deepbeats_forward.1} parent=0 // pred_check_branch
    %45 = sbr.rel (0) target = $region49
  $region48: #{deepbeats_forward.1} parent=0 // pred_region
    _
  $region49: #{deepbeats_forward.1} parent=0 // pred_fallthru
    _
  // Predicated region
  $region50: #{deepbeats_forward.1} parent=0 // pred_check
    _
  $region51: #{deepbeats_forward.1} parent=0 // pred_check_branch
    %47 = sbr.rel (0) target = $region53
  $region52: #{deepbeats_forward.1} parent=0 // pred_region
    _
  $region53: #{deepbeats_forward.1} parent=0 // pred_fallthru
    _
  // Predicated region
  $region54: #{deepbeats_forward.1} parent=0 // pred_check
    _
  $region55: #{deepbeats_forward.1} parent=0 // pred_check_branch
    %49 = sbr.rel (0) target = $region57
  $region56: #{deepbeats_forward.1} parent=0 // pred_region
    _
  $region57: #{deepbeats_forward.1} parent=0 // pred_fallthru
    _
  // Predicated region
  $region58: #{deepbeats_forward.1} parent=0 // pred_check
    _
  $region59: #{deepbeats_forward.1} parent=0 // pred_check_branch
    %51 = sbr.rel (0) target = $region61
  $region60: #{deepbeats_forward.1} parent=0 // pred_region
    _
  $region61: #{deepbeats_forward.1} parent=0 // pred_fallthru
    _
  // Predicated region
  $region62: #{deepbeats_forward.1} parent=0 // pred_check
    _
  $region63: #{deepbeats_forward.1} parent=0 // pred_check_branch
    %53 = sbr.rel (0) target = $region65
  $region64: #{deepbeats_forward.1} parent=0 // pred_region
    _
  $region65: #{deepbeats_forward.1} parent=0 // pred_fallthru
    _
  // Predicated region
  $region66: #{deepbeats_forward.1} parent=0 // pred_check
    _
  $region67: #{deepbeats_forward.1} parent=0 // pred_check_branch
    %55 = sbr.rel (0) target = $region69
  $region68: #{deepbeats_forward.1} parent=0 // pred_region
    _
  $region69: #{deepbeats_forward.1} parent=0 // pred_fallthru
    _
  %v56 = vld [vmem:[%s0] sm:$0xff]
  %v57 = vld [vmem:[%s0 + $0x8] sm:$0xff]
  %v58 = vld [vmem:[%s0 + $0x10] sm:$0xff]
  %v59 = vld [vmem:[%s0 + $0x18] sm:$0xff]
  %v60 = vld [vmem:[%s0 + $0x20] sm:$0xff]
  %v61 = vld [vmem:[%s0 + $0x28] sm:$0xff]
  %v62 = vld [vmem:[%s0 + $0x30] sm:$0xff]
  %v63 = vld [vmem:[%s0 + $0x38] sm:$0xff]
  %v64 = vld [vmem:[%s2] sm:$0x3]
  %66 = vset.pattern.permute.xlu0 0
  %67 = vperm.xlu0 %66, %v56
  %v68 = vpop.permute.xlu0 %67
  %71 = vset.pattern.permute.xlu0 0
  %72 = vperm.xlu0 %71, %v57
  %v73 = vpop.permute.xlu0 %72
  %76 = vset.pattern.permute.xlu0 0
  %77 = vperm.xlu0 %76, %v58
  %v78 = vpop.permute.xlu0 %77
  %81 = vset.pattern.permute.xlu0 0
  %82 = vperm.xlu0 %81, %v59
  %v83 = vpop.permute.xlu0 %82
  %86 = vset.pattern.permute.xlu0 0
  %87 = vperm.xlu0 %86, %v60
  %v88 = vpop.permute.xlu0 %87
  %91 = vset.pattern.permute.xlu0 0
  %92 = vperm.xlu0 %91, %v61
  %v93 = vpop.permute.xlu0 %92
  %96 = vset.pattern.permute.xlu0 0
  %97 = vperm.xlu0 %96, %v62
  %v98 = vpop.permute.xlu0 %97
  %101 = vset.pattern.permute.xlu0 0
  %102 = vperm.xlu0 %101, %v63
  %v103 = vpop.permute.xlu0 %102
  %v105 = vlaneseq
  %v106 = vshrl.u32 %v105, 7
  %v107 = vsub.s32 0, %v106
  %v108 = vrot.slane %v64, %v107
  %v109 = vmul.f32 %v68, %v108
  %v110 = vmul.f32 %v73, %v108
  %v111 = vmul.f32 %v78, %v108
  %v112 = vmul.f32 %v83, %v108
  %v113 = vmul.f32 %v88, %v108
  %v114 = vmul.f32 %v93, %v108
  %v115 = vmul.f32 %v98, %v108
  %v116 = vmul.f32 %v103, %v108
  %117 = vset.pattern.permute.xlu0 1
  %118 = vperm.xlu0 %117, %v56
  %v119 = vpop.permute.xlu0 %118
  %121 = vset.pattern.permute.xlu0 1
  %122 = vperm.xlu0 %121, %v57
  %v123 = vpop.permute.xlu0 %122
  %125 = vset.pattern.permute.xlu0 1
  %126 = vperm.xlu0 %125, %v58
  %v127 = vpop.permute.xlu0 %126
  %129 = vset.pattern.permute.xlu0 1
  %130 = vperm.xlu0 %129, %v59
  %v131 = vpop.permute.xlu0 %130
  %133 = vset.pattern.permute.xlu0 1
  %134 = vperm.xlu0 %133, %v60
  %v135 = vpop.permute.xlu0 %134
  %137 = vset.pattern.permute.xlu0 1
  %138 = vperm.xlu0 %137, %v61
  %v139 = vpop.permute.xlu0 %138
  %141 = vset.pattern.permute.xlu0 1
  %142 = vperm.xlu0 %141, %v62
  %v143 = vpop.permute.xlu0 %142
  %145 = vset.pattern.permute.xlu0 1
  %146 = vperm.xlu0 %145, %v63
  %v147 = vpop.permute.xlu0 %146
  %v149 = vlaneseq
  %v150 = vshrl.u32 %v149, 7
  %v151 = vsub.s32 1, %v150
  %v152 = vrot.slane %v64, %v151
  %v153 = vmul.f32 %v119, %v152
  %v154 = vmul.f32 %v123, %v152
  %v155 = vmul.f32 %v127, %v152
  %v156 = vmul.f32 %v131, %v152
  %v157 = vmul.f32 %v135, %v152
  %v158 = vmul.f32 %v139, %v152
  %v159 = vmul.f32 %v143, %v152
  %v160 = vmul.f32 %v147, %v152
  %v161 = vadd.f32 %v109, %v153
  %v162 = vadd.f32 %v110, %v154
  %v163 = vadd.f32 %v111, %v155
  %v164 = vadd.f32 %v112, %v156
  %v165 = vadd.f32 %v113, %v157
  %v166 = vadd.f32 %v114, %v158
  %v167 = vadd.f32 %v115, %v159
  %v168 = vadd.f32 %v116, %v160
  %v169 = vld [vmem:[%s3] sm:$0x1]
  %v171 = vlaneseq
  %v172 = vshrl.u32 %v171, 7
  %v173 = vsub.s32 0, %v172
  %v174 = vrot.slane %v169, %v173
  %v176 = vadd.f32 %v161, %v174
  %v177 = vadd.f32 %v162, %v174
  %v178 = vadd.f32 %v163, %v174
  %v179 = vadd.f32 %v164, %v174
  %v180 = vadd.f32 %v165, %v174
  %v181 = vadd.f32 %v166, %v174
  %v182 = vadd.f32 %v167, %v174
  %v183 = vadd.f32 %v168, %v174
  %v184 = vld [vmem:[%s4] sm:$0xff]
  %v185 = vld [vmem:[%s4 + $0x8] sm:$0xff]
  %v186 = vld [vmem:[%s4 + $0x10] sm:$0xff]
  %v187 = vld [vmem:[%s4 + $0x18] sm:$0xff]
  %v188 = vld [vmem:[%s6] sm:$0x1]
  %v190 = vlaneseq
  %v191 = vshrl.u32 %v190, 7
  %v192 = vsub.s32 0, %v191
  %v193 = vrot.slane %v188, %v192
  %vm195 = vcmask 261120
  %v197 = vsel %vm195, %v176, 0
  %v200 = vsel %vm195, %v177, 0
  %v203 = vsel %vm195, %v178, 0
  %v206 = vsel %vm195, %v179, 0
  %v209 = vsel %vm195, %v180, 0
  %v212 = vsel %vm195, %v181, 0
  %v215 = vsel %vm195, %v182, 0
  %v218 = vsel %vm195, %v183, 0
  %220 = vmatprep.subr.mxu0 0.0
  %221 = vmatpush1.msra.mxu0 0.0
  %222 = vmatprep.subr.mxu0 0.0
  %223 = vmatpush1.msra.mxu0 0.0
  %224 = vmatprep.subr.mxu0 0.0
  %225 = vmatpush1.msra.mxu0 0.0
  %226 = vmatprep.subr.mxu0 0.0
  %227 = vmatpush1.msra.mxu0 0.0
  %228 = vmatprep.subr.mxu0 0.0
  %229 = vmatpush1.msra.mxu0 0.0
  %230 = vmatprep.subr.mxu0 0.0
  %231 = vmatpush1.msra.mxu0 0.0
  %232 = vmatprep.subr.mxu0 0.0
  %233 = vmatpush1.msra.mxu0 0.0
  %234 = vmatprep.subr.mxu0 0.0
  %235 = vmatpush1.msra.mxu0 0.0
  %236 = vmatprep.subr.mxu0 0.0
  %237 = vmatpush1.msra.mxu0 0.0
  %238 = vmatprep.subr.mxu0 0.0
  %239 = vmatpush1.msra.mxu0 0.0
  %240 = vmatprep.subr.mxu0 0.0
  %241 = vmatpush1.msra.mxu0 0.0
  %242 = vmatprep.subr.mxu0 0.0
  %243 = vmatpush1.msra.mxu0 0.0
  %244 = vmatprep.subr.mxu0 0.0
  %245 = vmatpush1.msra.mxu0 %v187
  %246 = vmatprep.subr.mxu0 0.0
  %247 = vmatpush1.msra.mxu0 %v186
  %248 = vmatprep.subr.mxu0 0.0
  %249 = vmatpush1.msra.mxu0 %v185
  %250 = vmatprep.subr.mxu0 0.0
  %251 = vmatpush1.msra.mxu0 %v184
  %252 = vmatprep.subr.mxu0 0.0
  %253 = vmatpush2.msra.mxu0 0.0
  %254 = vmatprep.subr.mxu0 0.0
  %255 = vmatpush2.msra.mxu0 0.0
  %256 = vmatprep.subr.mxu0 0.0
  %257 = vmatpush2.msra.mxu0 0.0
  %258 = vmatprep.subr.mxu0 0.0
  %259 = vmatpush2.msra.mxu0 0.0
  %260 = vmatprep.subr.mxu0 0.0
  %261 = vmatpush2.msra.mxu0 0.0
  %262 = vmatprep.subr.mxu0 0.0
  %263 = vmatpush2.msra.mxu0 0.0
  %264 = vmatprep.subr.mxu0 0.0
  %265 = vmatpush2.msra.mxu0 0.0
  %266 = vmatprep.subr.mxu0 0.0
  %267 = vmatpush2.msra.mxu0 0.0
  %268 = vmatprep.subr.mxu0 0.0
  %269 = vmatpush2.msra.mxu0 0.0
  %270 = vmatprep.subr.mxu0 0.0
  %271 = vmatpush2.msra.mxu0 0.0
  %272 = vmatprep.subr.mxu0 0.0
  %273 = vmatpush2.msra.mxu0 0.0
  %274 = vmatprep.subr.mxu0 0.0
  %275 = vmatpush2.msra.mxu0 0.0
  %276 = vmatprep.subr.mxu0 0.0
  %277 = vmatpush2.msra.mxu0 0.0
  %278 = vmatprep.subr.mxu0 0.0
  %279 = vmatpush2.msra.mxu0 0.0
  %280 = vmatprep.subr.mxu0 0.0
  %281 = vmatpush2.msra.mxu0 0.0
  %282 = vmatprep.subr.mxu0 0.0
  %283 = vmatpush2.msra.mxu0 0.0
  %284 = vmatprep.mubr.f32.mxu0 0.0
  %285 = vmatmul.mubr.f32.gmra.mxu0 %v197
  %v286 = vpop.f32.mrf.mxu0
  %v287 = vadd.f32 %v193, %v286
  %v288 = vpop.f32.mrf.mxu0
  %289 = vmatprep.mubr.f32.mxu0 0.0
  %290 = vmatmul.mubr.f32.gmra.mxu0 %v200
  %v291 = vpop.f32.mrf.mxu0
  %v292 = vadd.f32 %v193, %v291
  %v293 = vpop.f32.mrf.mxu0
  %294 = vmatprep.mubr.f32.mxu0 0.0
  %295 = vmatmul.mubr.f32.gmra.mxu0 %v203
  %v296 = vpop.f32.mrf.mxu0
  %v297 = vadd.f32 %v193, %v296
  %v298 = vpop.f32.mrf.mxu0
  %299 = vmatprep.mubr.f32.mxu0 0.0
  %300 = vmatmul.mubr.f32.gmra.mxu0 %v206
  %v301 = vpop.f32.mrf.mxu0
  %v302 = vadd.f32 %v193, %v301
  %v303 = vpop.f32.mrf.mxu0
  %304 = vmatprep.mubr.f32.mxu0 0.0
  %305 = vmatmul.mubr.f32.gmra.mxu0 %v209
  %v306 = vpop.f32.mrf.mxu0
  %v307 = vadd.f32 %v193, %v306
  %v308 = vpop.f32.mrf.mxu0
  %309 = vmatprep.mubr.f32.mxu0 0.0
  %310 = vmatmul.mubr.f32.gmra.mxu0 %v212
  %v311 = vpop.f32.mrf.mxu0
  %v312 = vadd.f32 %v193, %v311
  %v313 = vpop.f32.mrf.mxu0
  %314 = vmatprep.mubr.f32.mxu0 0.0
  %315 = vmatmul.mubr.f32.gmra.mxu0 %v215
  %v316 = vpop.f32.mrf.mxu0
  %v317 = vadd.f32 %v193, %v316
  %v318 = vpop.f32.mrf.mxu0
  %319 = vmatprep.mubr.f32.mxu0 0.0
  %320 = vmatmul.mubr.f32.gmra.mxu0 %v218
  %v321 = vpop.f32.mrf.mxu0
  %v322 = vadd.f32 %v193, %v321
  %v323 = vpop.f32.mrf.mxu0
  %324 = vdwg.mxu0
  %325 = vst [vmem:[#allocation2] sm:$0xff] %v287
  %326 = vst [vmem:[#allocation2 + $0x8] sm:$0xff] %v292
  %327 = vst [vmem:[#allocation2 + $0x10] sm:$0xff] %v297
  %328 = vst [vmem:[#allocation2 + $0x18] sm:$0xff] %v302
  %329 = vst [vmem:[#allocation2 + $0x20] sm:$0xff] %v307
  %330 = vst [vmem:[#allocation2 + $0x28] sm:$0xff] %v312
  %331 = vst [vmem:[#allocation2 + $0x30] sm:$0xff] %v317
  %332 = vst [vmem:[#allocation2 + $0x38] sm:$0xff] %v322
  %v333 = vld [vmem:[%s7] sm:$0xff]
  %v334 = vld [vmem:[%s7 + $0x8] sm:$0xff]
  %v335 = vld [vmem:[%s7 + $0x10] sm:$0xff]
  %v336 = vld [vmem:[%s7 + $0x18] sm:$0xff]
  %v337 = vld [vmem:[%s9] sm:$0x1]
  %v339 = vlaneseq
  %v340 = vshrl.u32 %v339, 7
  %v341 = vsub.s32 0, %v340
  %v342 = vrot.slane %v337, %v341
  %344 = vmatprep.subr.mxu0 0.0
  %345 = vmatpush1.msra.mxu0 0.0
  %346 = vmatprep.subr.mxu0 0.0
  %347 = vmatpush1.msra.mxu0 0.0
  %348 = vmatprep.subr.mxu0 0.0
  %349 = vmatpush1.msra.mxu0 0.0
  %350 = vmatprep.subr.mxu0 0.0
  %351 = vmatpush1.msra.mxu0 0.0
  %352 = vmatprep.subr.mxu0 0.0
  %353 = vmatpush1.msra.mxu0 0.0
  %354 = vmatprep.subr.mxu0 0.0
  %355 = vmatpush1.msra.mxu0 0.0
  %356 = vmatprep.subr.mxu0 0.0
  %357 = vmatpush1.msra.mxu0 0.0
  %358 = vmatprep.subr.mxu0 0.0
  %359 = vmatpush1.msra.mxu0 0.0
  %360 = vmatprep.subr.mxu0 0.0
  %361 = vmatpush1.msra.mxu0 0.0
  %362 = vmatprep.subr.mxu0 0.0
  %363 = vmatpush1.msra.mxu0 0.0
  %364 = vmatprep.subr.mxu0 0.0
  %365 = vmatpush1.msra.mxu0 0.0
  %366 = vmatprep.subr.mxu0 0.0
  %367 = vmatpush1.msra.mxu0 0.0
  %368 = vmatprep.subr.mxu0 0.0
  %369 = vmatpush1.msra.mxu0 %v336
  %370 = vmatprep.subr.mxu0 0.0
  %371 = vmatpush1.msra.mxu0 %v335
  %372 = vmatprep.subr.mxu0 0.0
  %373 = vmatpush1.msra.mxu0 %v334
  %374 = vmatprep.subr.mxu0 0.0
  %375 = vmatpush1.msra.mxu0 %v333
  %376 = vmatprep.subr.mxu0 0.0
  %377 = vmatpush2.msra.mxu0 0.0
  %378 = vmatprep.subr.mxu0 0.0
  %379 = vmatpush2.msra.mxu0 0.0
  %380 = vmatprep.subr.mxu0 0.0
  %381 = vmatpush2.msra.mxu0 0.0
  %382 = vmatprep.subr.mxu0 0.0
  %383 = vmatpush2.msra.mxu0 0.0
  %384 = vmatprep.subr.mxu0 0.0
  %385 = vmatpush2.msra.mxu0 0.0
  %386 = vmatprep.subr.mxu0 0.0
  %387 = vmatpush2.msra.mxu0 0.0
  %388 = vmatprep.subr.mxu0 0.0
  %389 = vmatpush2.msra.mxu0 0.0
  %390 = vmatprep.subr.mxu0 0.0
  %391 = vmatpush2.msra.mxu0 0.0
  %392 = vmatprep.subr.mxu0 0.0
  %393 = vmatpush2.msra.mxu0 0.0
  %394 = vmatprep.subr.mxu0 0.0
  %395 = vmatpush2.msra.mxu0 0.0
  %396 = vmatprep.subr.mxu0 0.0
  %397 = vmatpush2.msra.mxu0 0.0
  %398 = vmatprep.subr.mxu0 0.0
  %399 = vmatpush2.msra.mxu0 0.0
  %400 = vmatprep.subr.mxu0 0.0
  %401 = vmatpush2.msra.mxu0 0.0
  %402 = vmatprep.subr.mxu0 0.0
  %403 = vmatpush2.msra.mxu0 0.0
  %404 = vmatprep.subr.mxu0 0.0
  %405 = vmatpush2.msra.mxu0 0.0
  %406 = vmatprep.subr.mxu0 0.0
  %407 = vmatpush2.msra.mxu0 0.0
  %408 = vmatprep.mubr.f32.mxu0 0.0
  %409 = vmatmul.mubr.f32.gmra.mxu0 %v197
  %v410 = vpop.f32.mrf.mxu0
  %v411 = vadd.f32 %v342, %v410
  %v412 = vpop.f32.mrf.mxu0
  %413 = vmatprep.mubr.f32.mxu0 0.0
  %414 = vmatmul.mubr.f32.gmra.mxu0 %v200
  %v415 = vpop.f32.mrf.mxu0
  %v416 = vadd.f32 %v342, %v415
  %v417 = vpop.f32.mrf.mxu0
  %418 = vmatprep.mubr.f32.mxu0 0.0
  %419 = vmatmul.mubr.f32.gmra.mxu0 %v203
  %v420 = vpop.f32.mrf.mxu0
  %v421 = vadd.f32 %v342, %v420
  %v422 = vpop.f32.mrf.mxu0
  %423 = vmatprep.mubr.f32.mxu0 0.0
  %424 = vmatmul.mubr.f32.gmra.mxu0 %v206
  %v425 = vpop.f32.mrf.mxu0
  %v426 = vadd.f32 %v342, %v425
  %v427 = vpop.f32.mrf.mxu0
  %428 = vmatprep.mubr.f32.mxu0 0.0
  %429 = vmatmul.mubr.f32.gmra.mxu0 %v209
  %v430 = vpop.f32.mrf.mxu0
  %v431 = vadd.f32 %v342, %v430
  %v432 = vpop.f32.mrf.mxu0
  %433 = vmatprep.mubr.f32.mxu0 0.0
  %434 = vmatmul.mubr.f32.gmra.mxu0 %v212
  %v435 = vpop.f32.mrf.mxu0
  %v436 = vadd.f32 %v342, %v435
  %v437 = vpop.f32.mrf.mxu0
  %438 = vmatprep.mubr.f32.mxu0 0.0
  %439 = vmatmul.mubr.f32.gmra.mxu0 %v215
  %v440 = vpop.f32.mrf.mxu0
  %v441 = vadd.f32 %v342, %v440
  %v442 = vpop.f32.mrf.mxu0
  %443 = vmatprep.mubr.f32.mxu0 0.0
  %444 = vmatmul.mubr.f32.gmra.mxu0 %v218
  %v445 = vpop.f32.mrf.mxu0
  %v446 = vadd.f32 %v342, %v445
  %v447 = vpop.f32.mrf.mxu0
  %448 = vdwg.mxu0
  %449 = vst [vmem:[#allocation3] sm:$0xff] %v411
  %450 = vst [vmem:[#allocation3 + $0x8] sm:$0xff] %v416
  %451 = vst [vmem:[#allocation3 + $0x10] sm:$0xff] %v421
  %452 = vst [vmem:[#allocation3 + $0x18] sm:$0xff] %v426
  %453 = vst [vmem:[#allocation3 + $0x20] sm:$0xff] %v431
  %454 = vst [vmem:[#allocation3 + $0x28] sm:$0xff] %v436
  %455 = vst [vmem:[#allocation3 + $0x30] sm:$0xff] %v441
  %456 = vst [vmem:[#allocation3 + $0x38] sm:$0xff] %v446
  %v457 = vld [vmem:[%s5] sm:$0xff]
  %v458 = vld [vmem:[%s5 + $0x8] sm:$0xff]
  %v459 = vld [vmem:[%s5 + $0x10] sm:$0xff]
  %v460 = vld [vmem:[%s5 + $0x18] sm:$0xff]
  %v461 = vld [vmem:[%s8] sm:$0xff]
  %v462 = vld [vmem:[%s8 + $0x8] sm:$0xff]
  %v463 = vld [vmem:[%s8 + $0x10] sm:$0xff]
  %v464 = vld [vmem:[%s8 + $0x18] sm:$0xff]
  %v465 = vld [vmem:[#allocation2] sm:$0xff]
  %v467 = vsel %vm195, 0.0, 0
  %469 = vmatprep.subr.mxu0 0.0
  %470 = vmatpush1.msra.mxu0 0.0
  %471 = vmatprep.subr.mxu0 0.0
  %472 = vmatpush1.msra.mxu0 0.0
  %473 = vmatprep.subr.mxu0 0.0
  %474 = vmatpush1.msra.mxu0 0.0
  %475 = vmatprep.subr.mxu0 0.0
  %476 = vmatpush1.msra.mxu0 0.0
  %477 = vmatprep.subr.mxu0 0.0
  %478 = vmatpush1.msra.mxu0 0.0
  %479 = vmatprep.subr.mxu0 0.0
  %480 = vmatpush1.msra.mxu0 0.0
  %481 = vmatprep.subr.mxu0 0.0
  %482 = vmatpush1.msra.mxu0 0.0
  %483 = vmatprep.subr.mxu0 0.0
  %484 = vmatpush1.msra.mxu0 0.0
  %485 = vmatprep.subr.mxu0 0.0
  %486 = vmatpush1.msra.mxu0 0.0
  %487 = vmatprep.subr.mxu0 0.0
  %488 = vmatpush1.msra.mxu0 0.0
  %489 = vmatprep.subr.mxu0 0.0
  %490 = vmatpush1.msra.mxu0 0.0
  %491 = vmatprep.subr.mxu0 0.0
  %492 = vmatpush1.msra.mxu0 0.0
  %493 = vmatprep.subr.mxu0 0.0
  %494 = vmatpush1.msra.mxu0 %v460
  %495 = vmatprep.subr.mxu0 0.0
  %496 = vmatpush1.msra.mxu0 %v459
  %497 = vmatprep.subr.mxu0 0.0
  %498 = vmatpush1.msra.mxu0 %v458
  %499 = vmatprep.subr.mxu0 0.0
  %500 = vmatpush1.msra.mxu0 %v457
  %501 = vmatprep.subr.mxu0 0.0
  %502 = vmatpush2.msra.mxu0 0.0
  %503 = vmatprep.subr.mxu0 0.0
  %504 = vmatpush2.msra.mxu0 0.0
  %505 = vmatprep.subr.mxu0 0.0
  %506 = vmatpush2.msra.mxu0 0.0
  %507 = vmatprep.subr.mxu0 0.0
  %508 = vmatpush2.msra.mxu0 0.0
  %509 = vmatprep.subr.mxu0 0.0
  %510 = vmatpush2.msra.mxu0 0.0
  %511 = vmatprep.subr.mxu0 0.0
  %512 = vmatpush2.msra.mxu0 0.0
  %513 = vmatprep.subr.mxu0 0.0
  %514 = vmatpush2.msra.mxu0 0.0
  %515 = vmatprep.subr.mxu0 0.0
  %516 = vmatpush2.msra.mxu0 0.0
  %517 = vmatprep.subr.mxu0 0.0
  %518 = vmatpush2.msra.mxu0 0.0
  %519 = vmatprep.subr.mxu0 0.0
  %520 = vmatpush2.msra.mxu0 0.0
  %521 = vmatprep.subr.mxu0 0.0
  %522 = vmatpush2.msra.mxu0 0.0
  %523 = vmatprep.subr.mxu0 0.0
  %524 = vmatpush2.msra.mxu0 0.0
  %525 = vmatprep.subr.mxu0 0.0
  %526 = vmatpush2.msra.mxu0 0.0
  %527 = vmatprep.subr.mxu0 0.0
  %528 = vmatpush2.msra.mxu0 0.0
  %529 = vmatprep.subr.mxu0 0.0
  %530 = vmatpush2.msra.mxu0 0.0
  %531 = vmatprep.subr.mxu0 0.0
  %532 = vmatpush2.msra.mxu0 0.0
  %533 = vmatprep.mubr.f32.mxu0 0.0
  %534 = vmatmul.mubr.f32.gmra.mxu0 %v467
  %v535 = vpop.f32.mrf.mxu0
  %v536 = vadd.f32 %v465, %v535
  %v537 = vpop.f32.mrf.mxu0
  %538 = vdwg.mxu0
  %v539 = vmul.f32 %v536, 0.5
  %v540 = vtanh.pop %v539
  %v541 = vadd.f32 %v540, 1.0
  %v542 = vmul.f32 %v541, 0.5
  %v543 = vtanh.pop %v536
  %v544 = vmul.f32 %v542, 0.0
  %546 = vrot.lane.b32.xlu0 %v543, 64
  %v547 = vpop.permute.xlu0 %546
  %v549 = vmul.f32 %v542, %v547
  %551 = vrot.lane.b32.xlu0 %v549, 32
  %v552 = vpop.permute.xlu0 %551
  %v554 = vadd.f32 %v544, %v552
  %v555 = vtanh.pop %v554
  %557 = vrot.lane.b32.xlu0 %v555, 64
  %v558 = vpop.permute.xlu0 %557
  %v560 = vmul.f32 %v542, %v558
  %v561 = vld [vmem:[#allocation3 + $0x38] sm:$0xff]
  %562 = vmatprep.subr.mxu0 0.0
  %563 = vmatpush1.msra.mxu0 0.0
  %564 = vmatprep.subr.mxu0 0.0
  %565 = vmatpush1.msra.mxu0 0.0
  %566 = vmatprep.subr.mxu0 0.0
  %567 = vmatpush1.msra.mxu0 0.0
  %568 = vmatprep.subr.mxu0 0.0
  %569 = vmatpush1.msra.mxu0 0.0
  %570 = vmatprep.subr.mxu0 0.0
  %571 = vmatpush1.msra.mxu0 0.0
  %572 = vmatprep.subr.mxu0 0.0
  %573 = vmatpush1.msra.mxu0 0.0
  %574 = vmatprep.subr.mxu0 0.0
  %575 = vmatpush1.msra.mxu0 0.0
  %576 = vmatprep.subr.mxu0 0.0
  %577 = vmatpush1.msra.mxu0 0.0
  %578 = vmatprep.subr.mxu0 0.0
  %579 = vmatpush1.msra.mxu0 0.0
  %580 = vmatprep.subr.mxu0 0.0
  %581 = vmatpush1.msra.mxu0 0.0
  %582 = vmatprep.subr.mxu0 0.0
  %583 = vmatpush1.msra.mxu0 0.0
  %584 = vmatprep.subr.mxu0 0.0
  %585 = vmatpush1.msra.mxu0 0.0
  %586 = vmatprep.subr.mxu0 0.0
  %587 = vmatpush1.msra.mxu0 %v464
  %588 = vmatprep.subr.mxu0 0.0
  %589 = vmatpush1.msra.mxu0 %v463
  %590 = vmatprep.subr.mxu0 0.0
  %591 = vmatpush1.msra.mxu0 %v462
  %592 = vmatprep.subr.mxu0 0.0
  %593 = vmatpush1.msra.mxu0 %v461
  %594 = vmatprep.subr.mxu0 0.0
  %595 = vmatpush2.msra.mxu0 0.0
  %596 = vmatprep.subr.mxu0 0.0
  %597 = vmatpush2.msra.mxu0 0.0
  %598 = vmatprep.subr.mxu0 0.0
  %599 = vmatpush2.msra.mxu0 0.0
  %600 = vmatprep.subr.mxu0 0.0
  %601 = vmatpush2.msra.mxu0 0.0
  %602 = vmatprep.subr.mxu0 0.0
  %603 = vmatpush2.msra.mxu0 0.0
  %604 = vmatprep.subr.mxu0 0.0
  %605 = vmatpush2.msra.mxu0 0.0
  %606 = vmatprep.subr.mxu0 0.0
  %607 = vmatpush2.msra.mxu0 0.0
  %608 = vmatprep.subr.mxu0 0.0
  %609 = vmatpush2.msra.mxu0 0.0
  %610 = vmatprep.subr.mxu0 0.0
  %611 = vmatpush2.msra.mxu0 0.0
  %612 = vmatprep.subr.mxu0 0.0
  %613 = vmatpush2.msra.mxu0 0.0
  %614 = vmatprep.subr.mxu0 0.0
  %615 = vmatpush2.msra.mxu0 0.0
  %616 = vmatprep.subr.mxu0 0.0
  %617 = vmatpush2.msra.mxu0 0.0
  %618 = vmatprep.subr.mxu0 0.0
  %619 = vmatpush2.msra.mxu0 0.0
  %620 = vmatprep.subr.mxu0 0.0
  %621 = vmatpush2.msra.mxu0 0.0
  %622 = vmatprep.subr.mxu0 0.0
  %623 = vmatpush2.msra.mxu0 0.0
  %624 = vmatprep.subr.mxu0 0.0
  %625 = vmatpush2.msra.mxu0 0.0
  %626 = vmatprep.mubr.f32.mxu0 0.0
  %627 = vmatmul.mubr.f32.gmra.mxu0 %v467
  %v628 = vpop.f32.mrf.mxu0
  %v629 = vadd.f32 %v561, %v628
  %v630 = vpop.f32.mrf.mxu0
  %631 = vdwg.mxu0
  %v632 = vmul.f32 %v629, 0.5
  %v633 = vtanh.pop %v632
  %v634 = vadd.f32 %v633, 1.0
  %v635 = vmul.f32 %v634, 0.5
  %v636 = vtanh.pop %v629
  %v637 = vmul.f32 %v635, 0.0
  %639 = vrot.lane.b32.xlu0 %v636, 64
  %v640 = vpop.permute.xlu0 %639
  %v642 = vmul.f32 %v635, %v640
  %644 = vrot.lane.b32.xlu0 %v642, 32
  %v645 = vpop.permute.xlu0 %644
  %v647 = vadd.f32 %v637, %v645
  %v648 = vtanh.pop %v647
  %650 = vrot.lane.b32.xlu0 %v648, 64
  %v651 = vpop.permute.xlu0 %650
  %v653 = vmul.f32 %v635, %v651
  %655 = vrot.lane.b32.xlu0 %v560, 32
  %v656 = vpop.permute.xlu0 %655
  %658 = vst.msk [vmem:[#allocation5] sm:$0xff] %vm195, %v656
  %660 = vrot.lane.b32.xlu0 %v653, 32
  %v661 = vpop.permute.xlu0 %660
  %663 = vst.msk [vmem:[#allocation6 + $0x38] sm:$0xff] %vm195, %v661
  %v664 = vld [vmem:[#allocation2 + $0x8] sm:$0xff]
  %v665 = vsel %vm195, %v656, 0
  %667 = vmatprep.subr.mxu0 0.0
  %668 = vmatpush1.msra.mxu0 0.0
  %669 = vmatprep.subr.mxu0 0.0
  %670 = vmatpush1.msra.mxu0 0.0
  %671 = vmatprep.subr.mxu0 0.0
  %672 = vmatpush1.msra.mxu0 0.0
  %673 = vmatprep.subr.mxu0 0.0
  %674 = vmatpush1.msra.mxu0 0.0
  %675 = vmatprep.subr.mxu0 0.0
  %676 = vmatpush1.msra.mxu0 0.0
  %677 = vmatprep.subr.mxu0 0.0
  %678 = vmatpush1.msra.mxu0 0.0
  %679 = vmatprep.subr.mxu0 0.0
  %680 = vmatpush1.msra.mxu0 0.0
  %681 = vmatprep.subr.mxu0 0.0
  %682 = vmatpush1.msra.mxu0 0.0
  %683 = vmatprep.subr.mxu0 0.0
  %684 = vmatpush1.msra.mxu0 0.0
  %685 = vmatprep.subr.mxu0 0.0
  %686 = vmatpush1.msra.mxu0 0.0
  %687 = vmatprep.subr.mxu0 0.0
  %688 = vmatpush1.msra.mxu0 0.0
  %689 = vmatprep.subr.mxu0 0.0
  %690 = vmatpush1.msra.mxu0 0.0
  %691 = vmatprep.subr.mxu0 0.0
  %692 = vmatpush1.msra.mxu0 %v460
  %693 = vmatprep.subr.mxu0 0.0
  %694 = vmatpush1.msra.mxu0 %v459
  %695 = vmatprep.subr.mxu0 0.0
  %696 = vmatpush1.msra.mxu0 %v458
  %697 = vmatprep.subr.mxu0 0.0
  %698 = vmatpush1.msra.mxu0 %v457
  %699 = vmatprep.subr.mxu0 0.0
  %700 = vmatpush2.msra.mxu0 0.0
  %701 = vmatprep.subr.mxu0 0.0
  %702 = vmatpush2.msra.mxu0 0.0
  %703 = vmatprep.subr.mxu0 0.0
  %704 = vmatpush2.msra.mxu0 0.0
  %705 = vmatprep.subr.mxu0 0.0
  %706 = vmatpush2.msra.mxu0 0.0
  %707 = vmatprep.subr.mxu0 0.0
  %708 = vmatpush2.msra.mxu0 0.0
  %709 = vmatprep.subr.mxu0 0.0
  %710 = vmatpush2.msra.mxu0 0.0
  %711 = vmatprep.subr.mxu0 0.0
  %712 = vmatpush2.msra.mxu0 0.0
  %713 = vmatprep.subr.mxu0 0.0
  %714 = vmatpush2.msra.mxu0 0.0
  %715 = vmatprep.subr.mxu0 0.0
  %716 = vmatpush2.msra.mxu0 0.0
  %717 = vmatprep.subr.mxu0 0.0
  %718 = vmatpush2.msra.mxu0 0.0
  %719 = vmatprep.subr.mxu0 0.0
  %720 = vmatpush2.msra.mxu0 0.0
  %721 = vmatprep.subr.mxu0 0.0
  %722 = vmatpush2.msra.mxu0 0.0
  %723 = vmatprep.subr.mxu0 0.0
  %724 = vmatpush2.msra.mxu0 0.0
  %725 = vmatprep.subr.mxu0 0.0
  %726 = vmatpush2.msra.mxu0 0.0
  %727 = vmatprep.subr.mxu0 0.0
  %728 = vmatpush2.msra.mxu0 0.0
  %729 = vmatprep.subr.mxu0 0.0
  %730 = vmatpush2.msra.mxu0 0.0
  %731 = vmatprep.mubr.f32.mxu0 0.0
  %732 = vmatmul.mubr.f32.gmra.mxu0 %v665
  %v733 = vpop.f32.mrf.mxu0
  %v734 = vadd.f32 %v664, %v733
  %v735 = vpop.f32.mrf.mxu0
  %736 = vdwg.mxu0
  %v737 = vmul.f32 %v734, 0.5
  %v738 = vtanh.pop %v737
  %v739 = vadd.f32 %v738, 1.0
  %v740 = vmul.f32 %v739, 0.5
  %v741 = vtanh.pop %v734
  %v742 = vmul.f32 %v740, %v554
  %744 = vrot.lane.b32.xlu0 %v741, 64
  %v745 = vpop.permute.xlu0 %744
  %v747 = vmul.f32 %v740, %v745
  %749 = vrot.lane.b32.xlu0 %v747, 32
  %v750 = vpop.permute.xlu0 %749
  %v752 = vadd.f32 %v742, %v750
  %v753 = vtanh.pop %v752
  %755 = vrot.lane.b32.xlu0 %v753, 64
  %v756 = vpop.permute.xlu0 %755
  %v758 = vmul.f32 %v740, %v756
  %v759 = vld [vmem:[#allocation3 + $0x30] sm:$0xff]
  %v760 = vsel %vm195, %v661, 0
  %762 = vmatprep.subr.mxu0 0.0
  %763 = vmatpush1.msra.mxu0 0.0
  %764 = vmatprep.subr.mxu0 0.0
  %765 = vmatpush1.msra.mxu0 0.0
  %766 = vmatprep.subr.mxu0 0.0
  %767 = vmatpush1.msra.mxu0 0.0
  %768 = vmatprep.subr.mxu0 0.0
  %769 = vmatpush1.msra.mxu0 0.0
  %770 = vmatprep.subr.mxu0 0.0
  %771 = vmatpush1.msra.mxu0 0.0
  %772 = vmatprep.subr.mxu0 0.0
  %773 = vmatpush1.msra.mxu0 0.0
  %774 = vmatprep.subr.mxu0 0.0
  %775 = vmatpush1.msra.mxu0 0.0
  %776 = vmatprep.subr.mxu0 0.0
  %777 = vmatpush1.msra.mxu0 0.0
  %778 = vmatprep.subr.mxu0 0.0
  %779 = vmatpush1.msra.mxu0 0.0
  %780 = vmatprep.subr.mxu0 0.0
  %781 = vmatpush1.msra.mxu0 0.0
  %782 = vmatprep.subr.mxu0 0.0
  %783 = vmatpush1.msra.mxu0 0.0
  %784 = vmatprep.subr.mxu0 0.0
  %785 = vmatpush1.msra.mxu0 0.0
  %786 = vmatprep.subr.mxu0 0.0
  %787 = vmatpush1.msra.mxu0 %v464
  %788 = vmatprep.subr.mxu0 0.0
  %789 = vmatpush1.msra.mxu0 %v463
  %790 = vmatprep.subr.mxu0 0.0
  %791 = vmatpush1.msra.mxu0 %v462
  %792 = vmatprep.subr.mxu0 0.0
  %793 = vmatpush1.msra.mxu0 %v461
  %794 = vmatprep.subr.mxu0 0.0
  %795 = vmatpush2.msra.mxu0 0.0
  %796 = vmatprep.subr.mxu0 0.0
  %797 = vmatpush2.msra.mxu0 0.0
  %798 = vmatprep.subr.mxu0 0.0
  %799 = vmatpush2.msra.mxu0 0.0
  %800 = vmatprep.subr.mxu0 0.0
  %801 = vmatpush2.msra.mxu0 0.0
  %802 = vmatprep.subr.mxu0 0.0
  %803 = vmatpush2.msra.mxu0 0.0
  %804 = vmatprep.subr.mxu0 0.0
  %805 = vmatpush2.msra.mxu0 0.0
  %806 = vmatprep.subr.mxu0 0.0
  %807 = vmatpush2.msra.mxu0 0.0
  %808 = vmatprep.subr.mxu0 0.0
  %809 = vmatpush2.msra.mxu0 0.0
  %810 = vmatprep.subr.mxu0 0.0
  %811 = vmatpush2.msra.mxu0 0.0
  %812 = vmatprep.subr.mxu0 0.0
  %813 = vmatpush2.msra.mxu0 0.0
  %814 = vmatprep.subr.mxu0 0.0
  %815 = vmatpush2.msra.mxu0 0.0
  %816 = vmatprep.subr.mxu0 0.0
  %817 = vmatpush2.msra.mxu0 0.0
  %818 = vmatprep.subr.mxu0 0.0
  %819 = vmatpush2.msra.mxu0 0.0
  %820 = vmatprep.subr.mxu0 0.0
  %821 = vmatpush2.msra.mxu0 0.0
  %822 = vmatprep.subr.mxu0 0.0
  %823 = vmatpush2.msra.mxu0 0.0
  %824 = vmatprep.subr.mxu0 0.0
  %825 = vmatpush2.msra.mxu0 0.0
  %826 = vmatprep.mubr.f32.mxu0 0.0
  %827 = vmatmul.mubr.f32.gmra.mxu0 %v760
  %v828 = vpop.f32.mrf.mxu0
  %v829 = vadd.f32 %v759, %v828
  %v830 = vpop.f32.mrf.mxu0
  %831 = vdwg.mxu0
  %v832 = vmul.f32 %v829, 0.5
  %v833 = vtanh.pop %v832
  %v834 = vadd.f32 %v833, 1.0
  %v835 = vmul.f32 %v834, 0.5
  %v836 = vtanh.pop %v829
  %v837 = vmul.f32 %v835, %v647
  %839 = vrot.lane.b32.xlu0 %v836, 64
  %v840 = vpop.permute.xlu0 %839
  %v842 = vmul.f32 %v835, %v840
  %844 = vrot.lane.b32.xlu0 %v842, 32
  %v845 = vpop.permute.xlu0 %844
  %v847 = vadd.f32 %v837, %v845
  %v848 = vtanh.pop %v847
  %850 = vrot.lane.b32.xlu0 %v848, 64
  %v851 = vpop.permute.xlu0 %850
  %v853 = vmul.f32 %v835, %v851
  %855 = vrot.lane.b32.xlu0 %v758, 32
  %v856 = vpop.permute.xlu0 %855
  %858 = vst.msk [vmem:[#allocation5 + $0x8] sm:$0xff] %vm195, %v856
  %860 = vrot.lane.b32.xlu0 %v853, 32
  %v861 = vpop.permute.xlu0 %860
  %863 = vst.msk [vmem:[#allocation6 + $0x30] sm:$0xff] %vm195, %v861
  %v864 = vld [vmem:[#allocation2 + $0x10] sm:$0xff]
  %v865 = vsel %vm195, %v856, 0
  %867 = vmatprep.subr.mxu0 0.0
  %868 = vmatpush1.msra.mxu0 0.0
  %869 = vmatprep.subr.mxu0 0.0
  %870 = vmatpush1.msra.mxu0 0.0
  %871 = vmatprep.subr.mxu0 0.0
  %872 = vmatpush1.msra.mxu0 0.0
  %873 = vmatprep.subr.mxu0 0.0
  %874 = vmatpush1.msra.mxu0 0.0
  %875 = vmatprep.subr.mxu0 0.0
  %876 = vmatpush1.msra.mxu0 0.0
  %877 = vmatprep.subr.mxu0 0.0
  %878 = vmatpush1.msra.mxu0 0.0
  %879 = vmatprep.subr.mxu0 0.0
  %880 = vmatpush1.msra.mxu0 0.0
  %881 = vmatprep.subr.mxu0 0.0
  %882 = vmatpush1.msra.mxu0 0.0
  %883 = vmatprep.subr.mxu0 0.0
  %884 = vmatpush1.msra.mxu0 0.0
  %885 = vmatprep.subr.mxu0 0.0
  %886 = vmatpush1.msra.mxu0 0.0
  %887 = vmatprep.subr.mxu0 0.0
  %888 = vmatpush1.msra.mxu0 0.0
  %889 = vmatprep.subr.mxu0 0.0
  %890 = vmatpush1.msra.mxu0 0.0
  %891 = vmatprep.subr.mxu0 0.0
  %892 = vmatpush1.msra.mxu0 %v460
  %893 = vmatprep.subr.mxu0 0.0
  %894 = vmatpush1.msra.mxu0 %v459
  %895 = vmatprep.subr.mxu0 0.0
  %896 = vmatpush1.msra.mxu0 %v458
  %897 = vmatprep.subr.mxu0 0.0
  %898 = vmatpush1.msra.mxu0 %v457
  %899 = vmatprep.subr.mxu0 0.0
  %900 = vmatpush2.msra.mxu0 0.0
  %901 = vmatprep.subr.mxu0 0.0
  %902 = vmatpush2.msra.mxu0 0.0
  %903 = vmatprep.subr.mxu0 0.0
  %904 = vmatpush2.msra.mxu0 0.0
  %905 = vmatprep.subr.mxu0 0.0
  %906 = vmatpush2.msra.mxu0 0.0
  %907 = vmatprep.subr.mxu0 0.0
  %908 = vmatpush2.msra.mxu0 0.0
  %909 = vmatprep.subr.mxu0 0.0
  %910 = vmatpush2.msra.mxu0 0.0
  %911 = vmatprep.subr.mxu0 0.0
  %912 = vmatpush2.msra.mxu0 0.0
  %913 = vmatprep.subr.mxu0 0.0
  %914 = vmatpush2.msra.mxu0 0.0
  %915 = vmatprep.subr.mxu0 0.0
  %916 = vmatpush2.msra.mxu0 0.0
  %917 = vmatprep.subr.mxu0 0.0
  %918 = vmatpush2.msra.mxu0 0.0
  %919 = vmatprep.subr.mxu0 0.0
  %920 = vmatpush2.msra.mxu0 0.0
  %921 = vmatprep.subr.mxu0 0.0
  %922 = vmatpush2.msra.mxu0 0.0
  %923 = vmatprep.subr.mxu0 0.0
  %924 = vmatpush2.msra.mxu0 0.0
  %925 = vmatprep.subr.mxu0 0.0
  %926 = vmatpush2.msra.mxu0 0.0
  %927 = vmatprep.subr.mxu0 0.0
  %928 = vmatpush2.msra.mxu0 0.0
  %929 = vmatprep.subr.mxu0 0.0
  %930 = vmatpush2.msra.mxu0 0.0
  %931 = vmatprep.mubr.f32.mxu0 0.0
  %932 = vmatmul.mubr.f32.gmra.mxu0 %v865
  %v933 = vpop.f32.mrf.mxu0
  %v934 = vadd.f32 %v864, %v933
  %v935 = vpop.f32.mrf.mxu0
  %936 = vdwg.mxu0
  %v937 = vmul.f32 %v934, 0.5
  %v938 = vtanh.pop %v937
  %v939 = vadd.f32 %v938, 1.0
  %v940 = vmul.f32 %v939, 0.5
  %v941 = vtanh.pop %v934
  %v942 = vmul.f32 %v940, %v752
  %944 = vrot.lane.b32.xlu0 %v941, 64
  %v945 = vpop.permute.xlu0 %944
  %v947 = vmul.f32 %v940, %v945
  %949 = vrot.lane.b32.xlu0 %v947, 32
  %v950 = vpop.permute.xlu0 %949
  %v952 = vadd.f32 %v942, %v950
  %v953 = vtanh.pop %v952
  %955 = vrot.lane.b32.xlu0 %v953, 64
  %v956 = vpop.permute.xlu0 %955
  %v958 = vmul.f32 %v940, %v956
  %v959 = vld [vmem:[#allocation3 + $0x28] sm:$0xff]
  %v960 = vsel %vm195, %v861, 0
  %962 = vmatprep.subr.mxu0 0.0
  %963 = vmatpush1.msra.mxu0 0.0
  %964 = vmatprep.subr.mxu0 0.0
  %965 = vmatpush1.msra.mxu0 0.0
  %966 = vmatprep.subr.mxu0 0.0
  %967 = vmatpush1.msra.mxu0 0.0
  %968 = vmatprep.subr.mxu0 0.0
  %969 = vmatpush1.msra.mxu0 0.0
  %970 = vmatprep.subr.mxu0 0.0
  %971 = vmatpush1.msra.mxu0 0.0
  %972 = vmatprep.subr.mxu0 0.0
  %973 = vmatpush1.msra.mxu0 0.0
  %974 = vmatprep.subr.mxu0 0.0
  %975 = vmatpush1.msra.mxu0 0.0
  %976 = vmatprep.subr.mxu0 0.0
  %977 = vmatpush1.msra.mxu0 0.0
  %978 = vmatprep.subr.mxu0 0.0
  %979 = vmatpush1.msra.mxu0 0.0
  %980 = vmatprep.subr.mxu0 0.0
  %981 = vmatpush1.msra.mxu0 0.0
  %982 = vmatprep.subr.mxu0 0.0
  %983 = vmatpush1.msra.mxu0 0.0
  %984 = vmatprep.subr.mxu0 0.0
  %985 = vmatpush1.msra.mxu0 0.0
  %986 = vmatprep.subr.mxu0 0.0
  %987 = vmatpush1.msra.mxu0 %v464
  %988 = vmatprep.subr.mxu0 0.0
  %989 = vmatpush1.msra.mxu0 %v463
  %990 = vmatprep.subr.mxu0 0.0
  %991 = vmatpush1.msra.mxu0 %v462
  %992 = vmatprep.subr.mxu0 0.0
  %993 = vmatpush1.msra.mxu0 %v461
  %994 = vmatprep.subr.mxu0 0.0
  %995 = vmatpush2.msra.mxu0 0.0
  %996 = vmatprep.subr.mxu0 0.0
  %997 = vmatpush2.msra.mxu0 0.0
  %998 = vmatprep.subr.mxu0 0.0
  %999 = vmatpush2.msra.mxu0 0.0
  %1000 = vmatprep.subr.mxu0 0.0
  %1001 = vmatpush2.msra.mxu0 0.0
  %1002 = vmatprep.subr.mxu0 0.0
  %1003 = vmatpush2.msra.mxu0 0.0
  %1004 = vmatprep.subr.mxu0 0.0
  %1005 = vmatpush2.msra.mxu0 0.0
  %1006 = vmatprep.subr.mxu0 0.0
  %1007 = vmatpush2.msra.mxu0 0.0
  %1008 = vmatprep.subr.mxu0 0.0
  %1009 = vmatpush2.msra.mxu0 0.0
  %1010 = vmatprep.subr.mxu0 0.0
  %1011 = vmatpush2.msra.mxu0 0.0
  %1012 = vmatprep.subr.mxu0 0.0
  %1013 = vmatpush2.msra.mxu0 0.0
  %1014 = vmatprep.subr.mxu0 0.0
  %1015 = vmatpush2.msra.mxu0 0.0
  %1016 = vmatprep.subr.mxu0 0.0
  %1017 = vmatpush2.msra.mxu0 0.0
  %1018 = vmatprep.subr.mxu0 0.0
  %1019 = vmatpush2.msra.mxu0 0.0
  %1020 = vmatprep.subr.mxu0 0.0
  %1021 = vmatpush2.msra.mxu0 0.0
  %1022 = vmatprep.subr.mxu0 0.0
  %1023 = vmatpush2.msra.mxu0 0.0
  %1024 = vmatprep.subr.mxu0 0.0
  %1025 = vmatpush2.msra.mxu0 0.0
  %1026 = vmatprep.mubr.f32.mxu0 0.0
  %1027 = vmatmul.mubr.f32.gmra.mxu0 %v960
  %v1028 = vpop.f32.mrf.mxu0
  %v1029 = vadd.f32 %v959, %v1028
  %v1030 = vpop.f32.mrf.mxu0
  %1031 = vdwg.mxu0
  %v1032 = vmul.f32 %v1029, 0.5
  %v1033 = vtanh.pop %v1032
  %v1034 = vadd.f32 %v1033, 1.0
  %v1035 = vmul.f32 %v1034, 0.5
  %v1036 = vtanh.pop %v1029
  %v1037 = vmul.f32 %v1035, %v847
  %1039 = vrot.lane.b32.xlu0 %v1036, 64
  %v1040 = vpop.permute.xlu0 %1039
  %v1042 = vmul.f32 %v1035, %v1040
  %1044 = vrot.lane.b32.xlu0 %v1042, 32
  %v1045 = vpop.permute.xlu0 %1044
  %v1047 = vadd.f32 %v1037, %v1045
  %v1048 = vtanh.pop %v1047
  %1050 = vrot.lane.b32.xlu0 %v1048, 64
  %v1051 = vpop.permute.xlu0 %1050
  %v1053 = vmul.f32 %v1035, %v1051
  %1055 = vrot.lane.b32.xlu0 %v958, 32
  %v1056 = vpop.permute.xlu0 %1055
  %1058 = vst.msk [vmem:[#allocation5 + $0x10] sm:$0xff] %vm195, %v1056
  %1060 = vrot.lane.b32.xlu0 %v1053, 32
  %v1061 = vpop.permute.xlu0 %1060
  %1063 = vst.msk [vmem:[#allocation6 + $0x28] sm:$0xff] %vm195, %v1061
  %v1064 = vld [vmem:[#allocation2 + $0x18] sm:$0xff]
  %v1065 = vsel %vm195, %v1056, 0
  %1067 = vmatprep.subr.mxu0 0.0
  %1068 = vmatpush1.msra.mxu0 0.0
  %1069 = vmatprep.subr.mxu0 0.0
  %1070 = vmatpush1.msra.mxu0 0.0
  %1071 = vmatprep.subr.mxu0 0.0
  %1072 = vmatpush1.msra.mxu0 0.0
  %1073 = vmatprep.subr.mxu0 0.0
  %1074 = vmatpush1.msra.mxu0 0.0
  %1075 = vmatprep.subr.mxu0 0.0
  %1076 = vmatpush1.msra.mxu0 0.0
  %1077 = vmatprep.subr.mxu0 0.0
  %1078 = vmatpush1.msra.mxu0 0.0
  %1079 = vmatprep.subr.mxu0 0.0
  %1080 = vmatpush1.msra.mxu0 0.0
  %1081 = vmatprep.subr.mxu0 0.0
  %1082 = vmatpush1.msra.mxu0 0.0
  %1083 = vmatprep.subr.mxu0 0.0
  %1084 = vmatpush1.msra.mxu0 0.0
  %1085 = vmatprep.subr.mxu0 0.0
  %1086 = vmatpush1.msra.mxu0 0.0
  %1087 = vmatprep.subr.mxu0 0.0
  %1088 = vmatpush1.msra.mxu0 0.0
  %1089 = vmatprep.subr.mxu0 0.0
  %1090 = vmatpush1.msra.mxu0 0.0
  %1091 = vmatprep.subr.mxu0 0.0
  %1092 = vmatpush1.msra.mxu0 %v460
  %1093 = vmatprep.subr.mxu0 0.0
  %1094 = vmatpush1.msra.mxu0 %v459
  %1095 = vmatprep.subr.mxu0 0.0
  %1096 = vmatpush1.msra.mxu0 %v458
  %1097 = vmatprep.subr.mxu0 0.0
  %1098 = vmatpush1.msra.mxu0 %v457
  %1099 = vmatprep.subr.mxu0 0.0
  %1100 = vmatpush2.msra.mxu0 0.0
  %1101 = vmatprep.subr.mxu0 0.0
  %1102 = vmatpush2.msra.mxu0 0.0
  %1103 = vmatprep.subr.mxu0 0.0
  %1104 = vmatpush2.msra.mxu0 0.0
  %1105 = vmatprep.subr.mxu0 0.0
  %1106 = vmatpush2.msra.mxu0 0.0
  %1107 = vmatprep.subr.mxu0 0.0
  %1108 = vmatpush2.msra.mxu0 0.0
  %1109 = vmatprep.subr.mxu0 0.0
  %1110 = vmatpush2.msra.mxu0 0.0
  %1111 = vmatprep.subr.mxu0 0.0
  %1112 = vmatpush2.msra.mxu0 0.0
  %1113 = vmatprep.subr.mxu0 0.0
  %1114 = vmatpush2.msra.mxu0 0.0
  %1115 = vmatprep.subr.mxu0 0.0
  %1116 = vmatpush2.msra.mxu0 0.0
  %1117 = vmatprep.subr.mxu0 0.0
  %1118 = vmatpush2.msra.mxu0 0.0
  %1119 = vmatprep.subr.mxu0 0.0
  %1120 = vmatpush2.msra.mxu0 0.0
  %1121 = vmatprep.subr.mxu0 0.0
  %1122 = vmatpush2.msra.mxu0 0.0
  %1123 = vmatprep.subr.mxu0 0.0
  %1124 = vmatpush2.msra.mxu0 0.0
  %1125 = vmatprep.subr.mxu0 0.0
  %1126 = vmatpush2.msra.mxu0 0.0
  %1127 = vmatprep.subr.mxu0 0.0
  %1128 = vmatpush2.msra.mxu0 0.0
  %1129 = vmatprep.subr.mxu0 0.0
  %1130 = vmatpush2.msra.mxu0 0.0
  %1131 = vmatprep.mubr.f32.mxu0 0.0
  %1132 = vmatmul.mubr.f32.gmra.mxu0 %v1065
  %v1133 = vpop.f32.mrf.mxu0
  %v1134 = vadd.f32 %v1064, %v1133
  %v1135 = vpop.f32.mrf.mxu0
  %1136 = vdwg.mxu0
  %v1137 = vmul.f32 %v1134, 0.5
  %v1138 = vtanh.pop %v1137
  %v1139 = vadd.f32 %v1138, 1.0
  %v1140 = vmul.f32 %v1139, 0.5
  %v1141 = vtanh.pop %v1134
  %v1142 = vmul.f32 %v1140, %v952
  %1144 = vrot.lane.b32.xlu0 %v1141, 64
  %v1145 = vpop.permute.xlu0 %1144
  %v1147 = vmul.f32 %v1140, %v1145
  %1149 = vrot.lane.b32.xlu0 %v1147, 32
  %v1150 = vpop.permute.xlu0 %1149
  %v1152 = vadd.f32 %v1142, %v1150
  %v1153 = vtanh.pop %v1152
  %1155 = vrot.lane.b32.xlu0 %v1153, 64
  %v1156 = vpop.permute.xlu0 %1155
  %v1158 = vmul.f32 %v1140, %v1156
  %v1159 = vld [vmem:[#allocation3 + $0x20] sm:$0xff]
  %v1160 = vsel %vm195, %v1061, 0
  %1162 = vmatprep.subr.mxu0 0.0
  %1163 = vmatpush1.msra.mxu0 0.0
  %1164 = vmatprep.subr.mxu0 0.0
  %1165 = vmatpush1.msra.mxu0 0.0
  %1166 = vmatprep.subr.mxu0 0.0
  %1167 = vmatpush1.msra.mxu0 0.0
  %1168 = vmatprep.subr.mxu0 0.0
  %1169 = vmatpush1.msra.mxu0 0.0
  %1170 = vmatprep.subr.mxu0 0.0
  %1171 = vmatpush1.msra.mxu0 0.0
  %1172 = vmatprep.subr.mxu0 0.0
  %1173 = vmatpush1.msra.mxu0 0.0
  %1174 = vmatprep.subr.mxu0 0.0
  %1175 = vmatpush1.msra.mxu0 0.0
  %1176 = vmatprep.subr.mxu0 0.0
  %1177 = vmatpush1.msra.mxu0 0.0
  %1178 = vmatprep.subr.mxu0 0.0
  %1179 = vmatpush1.msra.mxu0 0.0
  %1180 = vmatprep.subr.mxu0 0.0
  %1181 = vmatpush1.msra.mxu0 0.0
  %1182 = vmatprep.subr.mxu0 0.0
  %1183 = vmatpush1.msra.mxu0 0.0
  %1184 = vmatprep.subr.mxu0 0.0
  %1185 = vmatpush1.msra.mxu0 0.0
  %1186 = vmatprep.subr.mxu0 0.0
  %1187 = vmatpush1.msra.mxu0 %v464
  %1188 = vmatprep.subr.mxu0 0.0
  %1189 = vmatpush1.msra.mxu0 %v463
  %1190 = vmatprep.subr.mxu0 0.0
  %1191 = vmatpush1.msra.mxu0 %v462
  %1192 = vmatprep.subr.mxu0 0.0
  %1193 = vmatpush1.msra.mxu0 %v461
  %1194 = vmatprep.subr.mxu0 0.0
  %1195 = vmatpush2.msra.mxu0 0.0
  %1196 = vmatprep.subr.mxu0 0.0
  %1197 = vmatpush2.msra.mxu0 0.0
  %1198 = vmatprep.subr.mxu0 0.0
  %1199 = vmatpush2.msra.mxu0 0.0
  %1200 = vmatprep.subr.mxu0 0.0
  %1201 = vmatpush2.msra.mxu0 0.0
  %1202 = vmatprep.subr.mxu0 0.0
  %1203 = vmatpush2.msra.mxu0 0.0
  %1204 = vmatprep.subr.mxu0 0.0
  %1205 = vmatpush2.msra.mxu0 0.0
  %1206 = vmatprep.subr.mxu0 0.0
  %1207 = vmatpush2.msra.mxu0 0.0
  %1208 = vmatprep.subr.mxu0 0.0
  %1209 = vmatpush2.msra.mxu0 0.0
  %1210 = vmatprep.subr.mxu0 0.0
  %1211 = vmatpush2.msra.mxu0 0.0
  %1212 = vmatprep.subr.mxu0 0.0
  %1213 = vmatpush2.msra.mxu0 0.0
  %1214 = vmatprep.subr.mxu0 0.0
  %1215 = vmatpush2.msra.mxu0 0.0
  %1216 = vmatprep.subr.mxu0 0.0
  %1217 = vmatpush2.msra.mxu0 0.0
  %1218 = vmatprep.subr.mxu0 0.0
  %1219 = vmatpush2.msra.mxu0 0.0
  %1220 = vmatprep.subr.mxu0 0.0
  %1221 = vmatpush2.msra.mxu0 0.0
  %1222 = vmatprep.subr.mxu0 0.0
  %1223 = vmatpush2.msra.mxu0 0.0
  %1224 = vmatprep.subr.mxu0 0.0
  %1225 = vmatpush2.msra.mxu0 0.0
  %1226 = vmatprep.mubr.f32.mxu0 0.0
  %1227 = vmatmul.mubr.f32.gmra.mxu0 %v1160
  %v1228 = vpop.f32.mrf.mxu0
  %v1229 = vadd.f32 %v1159, %v1228
  %v1230 = vpop.f32.mrf.mxu0
  %1231 = vdwg.mxu0
  %v1232 = vmul.f32 %v1229, 0.5
  %v1233 = vtanh.pop %v1232
  %v1234 = vadd.f32 %v1233, 1.0
  %v1235 = vmul.f32 %v1234, 0.5
  %v1236 = vtanh.pop %v1229
  %v1237 = vmul.f32 %v1235, %v1047
  %1239 = vrot.lane.b32.xlu0 %v1236, 64
  %v1240 = vpop.permute.xlu0 %1239
  %v1242 = vmul.f32 %v1235, %v1240
  %1244 = vrot.lane.b32.xlu0 %v1242, 32
  %v1245 = vpop.permute.xlu0 %1244
  %v1247 = vadd.f32 %v1237, %v1245
  %v1248 = vtanh.pop %v1247
  %1250 = vrot.lane.b32.xlu0 %v1248, 64
  %v1251 = vpop.permute.xlu0 %1250
  %v1253 = vmul.f32 %v1235, %v1251
  %1255 = vrot.lane.b32.xlu0 %v1158, 32
  %v1256 = vpop.permute.xlu0 %1255
  %1258 = vst.msk [vmem:[#allocation5 + $0x18] sm:$0xff] %vm195, %v1256
  %1260 = vrot.lane.b32.xlu0 %v1253, 32
  %v1261 = vpop.permute.xlu0 %1260
  %1263 = vst.msk [vmem:[#allocation6 + $0x20] sm:$0xff] %vm195, %v1261
  %v1264 = vld [vmem:[#allocation2 + $0x20] sm:$0xff]
  %v1265 = vsel %vm195, %v1256, 0
  %1267 = vmatprep.subr.mxu0 0.0
  %1268 = vmatpush1.msra.mxu0 0.0
  %1269 = vmatprep.subr.mxu0 0.0
  %1270 = vmatpush1.msra.mxu0 0.0
  %1271 = vmatprep.subr.mxu0 0.0
  %1272 = vmatpush1.msra.mxu0 0.0
  %1273 = vmatprep.subr.mxu0 0.0
  %1274 = vmatpush1.msra.mxu0 0.0
  %1275 = vmatprep.subr.mxu0 0.0
  %1276 = vmatpush1.msra.mxu0 0.0
  %1277 = vmatprep.subr.mxu0 0.0
  %1278 = vmatpush1.msra.mxu0 0.0
  %1279 = vmatprep.subr.mxu0 0.0
  %1280 = vmatpush1.msra.mxu0 0.0
  %1281 = vmatprep.subr.mxu0 0.0
  %1282 = vmatpush1.msra.mxu0 0.0
  %1283 = vmatprep.subr.mxu0 0.0
  %1284 = vmatpush1.msra.mxu0 0.0
  %1285 = vmatprep.subr.mxu0 0.0
  %1286 = vmatpush1.msra.mxu0 0.0
  %1287 = vmatprep.subr.mxu0 0.0
  %1288 = vmatpush1.msra.mxu0 0.0
  %1289 = vmatprep.subr.mxu0 0.0
  %1290 = vmatpush1.msra.mxu0 0.0
  %1291 = vmatprep.subr.mxu0 0.0
  %1292 = vmatpush1.msra.mxu0 %v460
  %1293 = vmatprep.subr.mxu0 0.0
  %1294 = vmatpush1.msra.mxu0 %v459
  %1295 = vmatprep.subr.mxu0 0.0
  %1296 = vmatpush1.msra.mxu0 %v458
  %1297 = vmatprep.subr.mxu0 0.0
  %1298 = vmatpush1.msra.mxu0 %v457
  %1299 = vmatprep.subr.mxu0 0.0
  %1300 = vmatpush2.msra.mxu0 0.0
  %1301 = vmatprep.subr.mxu0 0.0
  %1302 = vmatpush2.msra.mxu0 0.0
  %1303 = vmatprep.subr.mxu0 0.0
  %1304 = vmatpush2.msra.mxu0 0.0
  %1305 = vmatprep.subr.mxu0 0.0
  %1306 = vmatpush2.msra.mxu0 0.0
  %1307 = vmatprep.subr.mxu0 0.0
  %1308 = vmatpush2.msra.mxu0 0.0
  %1309 = vmatprep.subr.mxu0 0.0
  %1310 = vmatpush2.msra.mxu0 0.0
  %1311 = vmatprep.subr.mxu0 0.0
  %1312 = vmatpush2.msra.mxu0 0.0
  %1313 = vmatprep.subr.mxu0 0.0
  %1314 = vmatpush2.msra.mxu0 0.0
  %1315 = vmatprep.subr.mxu0 0.0
  %1316 = vmatpush2.msra.mxu0 0.0
  %1317 = vmatprep.subr.mxu0 0.0
  %1318 = vmatpush2.msra.mxu0 0.0
  %1319 = vmatprep.subr.mxu0 0.0
  %1320 = vmatpush2.msra.mxu0 0.0
  %1321 = vmatprep.subr.mxu0 0.0
  %1322 = vmatpush2.msra.mxu0 0.0
  %1323 = vmatprep.subr.mxu0 0.0
  %1324 = vmatpush2.msra.mxu0 0.0
  %1325 = vmatprep.subr.mxu0 0.0
  %1326 = vmatpush2.msra.mxu0 0.0
  %1327 = vmatprep.subr.mxu0 0.0
  %1328 = vmatpush2.msra.mxu0 0.0
  %1329 = vmatprep.subr.mxu0 0.0
  %1330 = vmatpush2.msra.mxu0 0.0
  %1331 = vmatprep.mubr.f32.mxu0 0.0
  %1332 = vmatmul.mubr.f32.gmra.mxu0 %v1265
  %v1333 = vpop.f32.mrf.mxu0
  %v1334 = vadd.f32 %v1264, %v1333
  %v1335 = vpop.f32.mrf.mxu0
  %1336 = vdwg.mxu0
  %v1337 = vmul.f32 %v1334, 0.5
  %v1338 = vtanh.pop %v1337
  %v1339 = vadd.f32 %v1338, 1.0
  %v1340 = vmul.f32 %v1339, 0.5
  %v1341 = vtanh.pop %v1334
  %v1342 = vmul.f32 %v1340, %v1152
  %1344 = vrot.lane.b32.xlu0 %v1341, 64
  %v1345 = vpop.permute.xlu0 %1344
  %v1347 = vmul.f32 %v1340, %v1345
  %1349 = vrot.lane.b32.xlu0 %v1347, 32
  %v1350 = vpop.permute.xlu0 %1349
  %v1352 = vadd.f32 %v1342, %v1350
  %v1353 = vtanh.pop %v1352
  %1355 = vrot.lane.b32.xlu0 %v1353, 64
  %v1356 = vpop.permute.xlu0 %1355
  %v1358 = vmul.f32 %v1340, %v1356
  %v1359 = vld [vmem:[#allocation3 + $0x18] sm:$0xff]
  %v1360 = vsel %vm195, %v1261, 0
  %1362 = vmatprep.subr.mxu0 0.0
  %1363 = vmatpush1.msra.mxu0 0.0
  %1364 = vmatprep.subr.mxu0 0.0
  %1365 = vmatpush1.msra.mxu0 0.0
  %1366 = vmatprep.subr.mxu0 0.0
  %1367 = vmatpush1.msra.mxu0 0.0
  %1368 = vmatprep.subr.mxu0 0.0
  %1369 = vmatpush1.msra.mxu0 0.0
  %1370 = vmatprep.subr.mxu0 0.0
  %1371 = vmatpush1.msra.mxu0 0.0
  %1372 = vmatprep.subr.mxu0 0.0
  %1373 = vmatpush1.msra.mxu0 0.0
  %1374 = vmatprep.subr.mxu0 0.0
  %1375 = vmatpush1.msra.mxu0 0.0
  %1376 = vmatprep.subr.mxu0 0.0
  %1377 = vmatpush1.msra.mxu0 0.0
  %1378 = vmatprep.subr.mxu0 0.0
  %1379 = vmatpush1.msra.mxu0 0.0
  %1380 = vmatprep.subr.mxu0 0.0
  %1381 = vmatpush1.msra.mxu0 0.0
  %1382 = vmatprep.subr.mxu0 0.0
  %1383 = vmatpush1.msra.mxu0 0.0
  %1384 = vmatprep.subr.mxu0 0.0
  %1385 = vmatpush1.msra.mxu0 0.0
  %1386 = vmatprep.subr.mxu0 0.0
  %1387 = vmatpush1.msra.mxu0 %v464
  %1388 = vmatprep.subr.mxu0 0.0
  %1389 = vmatpush1.msra.mxu0 %v463
  %1390 = vmatprep.subr.mxu0 0.0
  %1391 = vmatpush1.msra.mxu0 %v462
  %1392 = vmatprep.subr.mxu0 0.0
  %1393 = vmatpush1.msra.mxu0 %v461
  %1394 = vmatprep.subr.mxu0 0.0
  %1395 = vmatpush2.msra.mxu0 0.0
  %1396 = vmatprep.subr.mxu0 0.0
  %1397 = vmatpush2.msra.mxu0 0.0
  %1398 = vmatprep.subr.mxu0 0.0
  %1399 = vmatpush2.msra.mxu0 0.0
  %1400 = vmatprep.subr.mxu0 0.0
  %1401 = vmatpush2.msra.mxu0 0.0
  %1402 = vmatprep.subr.mxu0 0.0
  %1403 = vmatpush2.msra.mxu0 0.0
  %1404 = vmatprep.subr.mxu0 0.0
  %1405 = vmatpush2.msra.mxu0 0.0
  %1406 = vmatprep.subr.mxu0 0.0
  %1407 = vmatpush2.msra.mxu0 0.0
  %1408 = vmatprep.subr.mxu0 0.0
  %1409 = vmatpush2.msra.mxu0 0.0
  %1410 = vmatprep.subr.mxu0 0.0
  %1411 = vmatpush2.msra.mxu0 0.0
  %1412 = vmatprep.subr.mxu0 0.0
  %1413 = vmatpush2.msra.mxu0 0.0
  %1414 = vmatprep.subr.mxu0 0.0
  %1415 = vmatpush2.msra.mxu0 0.0
  %1416 = vmatprep.subr.mxu0 0.0
  %1417 = vmatpush2.msra.mxu0 0.0
  %1418 = vmatprep.subr.mxu0 0.0
  %1419 = vmatpush2.msra.mxu0 0.0
  %1420 = vmatprep.subr.mxu0 0.0
  %1421 = vmatpush2.msra.mxu0 0.0
  %1422 = vmatprep.subr.mxu0 0.0
  %1423 = vmatpush2.msra.mxu0 0.0
  %1424 = vmatprep.subr.mxu0 0.0
  %1425 = vmatpush2.msra.mxu0 0.0
  %1426 = vmatprep.mubr.f32.mxu0 0.0
  %1427 = vmatmul.mubr.f32.gmra.mxu0 %v1360
  %v1428 = vpop.f32.mrf.mxu0
  %v1429 = vadd.f32 %v1359, %v1428
  %v1430 = vpop.f32.mrf.mxu0
  %1431 = vdwg.mxu0
  %v1432 = vmul.f32 %v1429, 0.5
  %v1433 = vtanh.pop %v1432
  %v1434 = vadd.f32 %v1433, 1.0
  %v1435 = vmul.f32 %v1434, 0.5
  %v1436 = vtanh.pop %v1429
  %v1437 = vmul.f32 %v1435, %v1247
  %1439 = vrot.lane.b32.xlu0 %v1436, 64
  %v1440 = vpop.permute.xlu0 %1439
  %v1442 = vmul.f32 %v1435, %v1440
  %1444 = vrot.lane.b32.xlu0 %v1442, 32
  %v1445 = vpop.permute.xlu0 %1444
  %v1447 = vadd.f32 %v1437, %v1445
  %v1448 = vtanh.pop %v1447
  %1450 = vrot.lane.b32.xlu0 %v1448, 64
  %v1451 = vpop.permute.xlu0 %1450
  %v1453 = vmul.f32 %v1435, %v1451
  %1455 = vrot.lane.b32.xlu0 %v1358, 32
  %v1456 = vpop.permute.xlu0 %1455
  %1458 = vst.msk [vmem:[#allocation5 + $0x20] sm:$0xff] %vm195, %v1456
  %1460 = vrot.lane.b32.xlu0 %v1453, 32
  %v1461 = vpop.permute.xlu0 %1460
  %1463 = vst.msk [vmem:[#allocation6 + $0x18] sm:$0xff] %vm195, %v1461
  %v1464 = vld [vmem:[#allocation2 + $0x28] sm:$0xff]
  %v1465 = vsel %vm195, %v1456, 0
  %1467 = vmatprep.subr.mxu0 0.0
  %1468 = vmatpush1.msra.mxu0 0.0
  %1469 = vmatprep.subr.mxu0 0.0
  %1470 = vmatpush1.msra.mxu0 0.0
  %1471 = vmatprep.subr.mxu0 0.0
  %1472 = vmatpush1.msra.mxu0 0.0
  %1473 = vmatprep.subr.mxu0 0.0
  %1474 = vmatpush1.msra.mxu0 0.0
  %1475 = vmatprep.subr.mxu0 0.0
  %1476 = vmatpush1.msra.mxu0 0.0
  %1477 = vmatprep.subr.mxu0 0.0
  %1478 = vmatpush1.msra.mxu0 0.0
  %1479 = vmatprep.subr.mxu0 0.0
  %1480 = vmatpush1.msra.mxu0 0.0
  %1481 = vmatprep.subr.mxu0 0.0
  %1482 = vmatpush1.msra.mxu0 0.0
  %1483 = vmatprep.subr.mxu0 0.0
  %1484 = vmatpush1.msra.mxu0 0.0
  %1485 = vmatprep.subr.mxu0 0.0
  %1486 = vmatpush1.msra.mxu0 0.0
  %1487 = vmatprep.subr.mxu0 0.0
  %1488 = vmatpush1.msra.mxu0 0.0
  %1489 = vmatprep.subr.mxu0 0.0
  %1490 = vmatpush1.msra.mxu0 0.0
  %1491 = vmatprep.subr.mxu0 0.0
  %1492 = vmatpush1.msra.mxu0 %v460
  %1493 = vmatprep.subr.mxu0 0.0
  %1494 = vmatpush1.msra.mxu0 %v459
  %1495 = vmatprep.subr.mxu0 0.0
  %1496 = vmatpush1.msra.mxu0 %v458
  %1497 = vmatprep.subr.mxu0 0.0
  %1498 = vmatpush1.msra.mxu0 %v457
  %1499 = vmatprep.subr.mxu0 0.0
  %1500 = vmatpush2.msra.mxu0 0.0
  %1501 = vmatprep.subr.mxu0 0.0
  %1502 = vmatpush2.msra.mxu0 0.0
  %1503 = vmatprep.subr.mxu0 0.0
  %1504 = vmatpush2.msra.mxu0 0.0
  %1505 = vmatprep.subr.mxu0 0.0
  %1506 = vmatpush2.msra.mxu0 0.0
  %1507 = vmatprep.subr.mxu0 0.0
  %1508 = vmatpush2.msra.mxu0 0.0
  %1509 = vmatprep.subr.mxu0 0.0
  %1510 = vmatpush2.msra.mxu0 0.0
  %1511 = vmatprep.subr.mxu0 0.0
  %1512 = vmatpush2.msra.mxu0 0.0
  %1513 = vmatprep.subr.mxu0 0.0
  %1514 = vmatpush2.msra.mxu0 0.0
  %1515 = vmatprep.subr.mxu0 0.0
  %1516 = vmatpush2.msra.mxu0 0.0
  %1517 = vmatprep.subr.mxu0 0.0
  %1518 = vmatpush2.msra.mxu0 0.0
  %1519 = vmatprep.subr.mxu0 0.0
  %1520 = vmatpush2.msra.mxu0 0.0
  %1521 = vmatprep.subr.mxu0 0.0
  %1522 = vmatpush2.msra.mxu0 0.0
  %1523 = vmatprep.subr.mxu0 0.0
  %1524 = vmatpush2.msra.mxu0 0.0
  %1525 = vmatprep.subr.mxu0 0.0
  %1526 = vmatpush2.msra.mxu0 0.0
  %1527 = vmatprep.subr.mxu0 0.0
  %1528 = vmatpush2.msra.mxu0 0.0
  %1529 = vmatprep.subr.mxu0 0.0
  %1530 = vmatpush2.msra.mxu0 0.0
  %1531 = vmatprep.mubr.f32.mxu0 0.0
  %1532 = vmatmul.mubr.f32.gmra.mxu0 %v1465
  %v1533 = vpop.f32.mrf.mxu0
  %v1534 = vadd.f32 %v1464, %v1533
  %v1535 = vpop.f32.mrf.mxu0
  %1536 = vdwg.mxu0
  %v1537 = vmul.f32 %v1534, 0.5
  %v1538 = vtanh.pop %v1537
  %v1539 = vadd.f32 %v1538, 1.0
  %v1540 = vmul.f32 %v1539, 0.5
  %v1541 = vtanh.pop %v1534
  %v1542 = vmul.f32 %v1540, %v1352
  %1544 = vrot.lane.b32.xlu0 %v1541, 64
  %v1545 = vpop.permute.xlu0 %1544
  %v1547 = vmul.f32 %v1540, %v1545
  %1549 = vrot.lane.b32.xlu0 %v1547, 32
  %v1550 = vpop.permute.xlu0 %1549
  %v1552 = vadd.f32 %v1542, %v1550
  %v1553 = vtanh.pop %v1552
  %1555 = vrot.lane.b32.xlu0 %v1553, 64
  %v1556 = vpop.permute.xlu0 %1555
  %v1558 = vmul.f32 %v1540, %v1556
  %v1559 = vld [vmem:[#allocation3 + $0x10] sm:$0xff]
  %v1560 = vsel %vm195, %v1461, 0
  %1562 = vmatprep.subr.mxu0 0.0
  %1563 = vmatpush1.msra.mxu0 0.0
  %1564 = vmatprep.subr.mxu0 0.0
  %1565 = vmatpush1.msra.mxu0 0.0
  %1566 = vmatprep.subr.mxu0 0.0
  %1567 = vmatpush1.msra.mxu0 0.0
  %1568 = vmatprep.subr.mxu0 0.0
  %1569 = vmatpush1.msra.mxu0 0.0
  %1570 = vmatprep.subr.mxu0 0.0
  %1571 = vmatpush1.msra.mxu0 0.0
  %1572 = vmatprep.subr.mxu0 0.0
  %1573 = vmatpush1.msra.mxu0 0.0
  %1574 = vmatprep.subr.mxu0 0.0
  %1575 = vmatpush1.msra.mxu0 0.0
  %1576 = vmatprep.subr.mxu0 0.0
  %1577 = vmatpush1.msra.mxu0 0.0
  %1578 = vmatprep.subr.mxu0 0.0
  %1579 = vmatpush1.msra.mxu0 0.0
  %1580 = vmatprep.subr.mxu0 0.0
  %1581 = vmatpush1.msra.mxu0 0.0
  %1582 = vmatprep.subr.mxu0 0.0
  %1583 = vmatpush1.msra.mxu0 0.0
  %1584 = vmatprep.subr.mxu0 0.0
  %1585 = vmatpush1.msra.mxu0 0.0
  %1586 = vmatprep.subr.mxu0 0.0
  %1587 = vmatpush1.msra.mxu0 %v464
  %1588 = vmatprep.subr.mxu0 0.0
  %1589 = vmatpush1.msra.mxu0 %v463
  %1590 = vmatprep.subr.mxu0 0.0
  %1591 = vmatpush1.msra.mxu0 %v462
  %1592 = vmatprep.subr.mxu0 0.0
  %1593 = vmatpush1.msra.mxu0 %v461
  %1594 = vmatprep.subr.mxu0 0.0
  %1595 = vmatpush2.msra.mxu0 0.0
  %1596 = vmatprep.subr.mxu0 0.0
  %1597 = vmatpush2.msra.mxu0 0.0
  %1598 = vmatprep.subr.mxu0 0.0
  %1599 = vmatpush2.msra.mxu0 0.0
  %1600 = vmatprep.subr.mxu0 0.0
  %1601 = vmatpush2.msra.mxu0 0.0
  %1602 = vmatprep.subr.mxu0 0.0
  %1603 = vmatpush2.msra.mxu0 0.0
  %1604 = vmatprep.subr.mxu0 0.0
  %1605 = vmatpush2.msra.mxu0 0.0
  %1606 = vmatprep.subr.mxu0 0.0
  %1607 = vmatpush2.msra.mxu0 0.0
  %1608 = vmatprep.subr.mxu0 0.0
  %1609 = vmatpush2.msra.mxu0 0.0
  %1610 = vmatprep.subr.mxu0 0.0
  %1611 = vmatpush2.msra.mxu0 0.0
  %1612 = vmatprep.subr.mxu0 0.0
  %1613 = vmatpush2.msra.mxu0 0.0
  %1614 = vmatprep.subr.mxu0 0.0
  %1615 = vmatpush2.msra.mxu0 0.0
  %1616 = vmatprep.subr.mxu0 0.0
  %1617 = vmatpush2.msra.mxu0 0.0
  %1618 = vmatprep.subr.mxu0 0.0
  %1619 = vmatpush2.msra.mxu0 0.0
  %1620 = vmatprep.subr.mxu0 0.0
  %1621 = vmatpush2.msra.mxu0 0.0
  %1622 = vmatprep.subr.mxu0 0.0
  %1623 = vmatpush2.msra.mxu0 0.0
  %1624 = vmatprep.subr.mxu0 0.0
  %1625 = vmatpush2.msra.mxu0 0.0
  %1626 = vmatprep.mubr.f32.mxu0 0.0
  %1627 = vmatmul.mubr.f32.gmra.mxu0 %v1560
  %v1628 = vpop.f32.mrf.mxu0
  %v1629 = vadd.f32 %v1559, %v1628
  %v1630 = vpop.f32.mrf.mxu0
  %1631 = vdwg.mxu0
  %v1632 = vmul.f32 %v1629, 0.5
  %v1633 = vtanh.pop %v1632
  %v1634 = vadd.f32 %v1633, 1.0
  %v1635 = vmul.f32 %v1634, 0.5
  %v1636 = vtanh.pop %v1629
  %v1637 = vmul.f32 %v1635, %v1447
  %1639 = vrot.lane.b32.xlu0 %v1636, 64
  %v1640 = vpop.permute.xlu0 %1639
  %v1642 = vmul.f32 %v1635, %v1640
  %1644 = vrot.lane.b32.xlu0 %v1642, 32
  %v1645 = vpop.permute.xlu0 %1644
  %v1647 = vadd.f32 %v1637, %v1645
  %v1648 = vtanh.pop %v1647
  %1650 = vrot.lane.b32.xlu0 %v1648, 64
  %v1651 = vpop.permute.xlu0 %1650
  %v1653 = vmul.f32 %v1635, %v1651
  %1655 = vrot.lane.b32.xlu0 %v1558, 32
  %v1656 = vpop.permute.xlu0 %1655
  %1658 = vst.msk [vmem:[#allocation5 + $0x28] sm:$0xff] %vm195, %v1656
  %1660 = vrot.lane.b32.xlu0 %v1653, 32
  %v1661 = vpop.permute.xlu0 %1660
  %1663 = vst.msk [vmem:[#allocation6 + $0x10] sm:$0xff] %vm195, %v1661
  %v1664 = vld [vmem:[#allocation2 + $0x30] sm:$0xff]
  %v1665 = vsel %vm195, %v1656, 0
  %1667 = vmatprep.subr.mxu0 0.0
  %1668 = vmatpush1.msra.mxu0 0.0
  %1669 = vmatprep.subr.mxu0 0.0
  %1670 = vmatpush1.msra.mxu0 0.0
  %1671 = vmatprep.subr.mxu0 0.0
  %1672 = vmatpush1.msra.mxu0 0.0
  %1673 = vmatprep.subr.mxu0 0.0
  %1674 = vmatpush1.msra.mxu0 0.0
  %1675 = vmatprep.subr.mxu0 0.0
  %1676 = vmatpush1.msra.mxu0 0.0
  %1677 = vmatprep.subr.mxu0 0.0
  %1678 = vmatpush1.msra.mxu0 0.0
  %1679 = vmatprep.subr.mxu0 0.0
  %1680 = vmatpush1.msra.mxu0 0.0
  %1681 = vmatprep.subr.mxu0 0.0
  %1682 = vmatpush1.msra.mxu0 0.0
  %1683 = vmatprep.subr.mxu0 0.0
  %1684 = vmatpush1.msra.mxu0 0.0
  %1685 = vmatprep.subr.mxu0 0.0
  %1686 = vmatpush1.msra.mxu0 0.0
  %1687 = vmatprep.subr.mxu0 0.0
  %1688 = vmatpush1.msra.mxu0 0.0
  %1689 = vmatprep.subr.mxu0 0.0
  %1690 = vmatpush1.msra.mxu0 0.0
  %1691 = vmatprep.subr.mxu0 0.0
  %1692 = vmatpush1.msra.mxu0 %v460
  %1693 = vmatprep.subr.mxu0 0.0
  %1694 = vmatpush1.msra.mxu0 %v459
  %1695 = vmatprep.subr.mxu0 0.0
  %1696 = vmatpush1.msra.mxu0 %v458
  %1697 = vmatprep.subr.mxu0 0.0
  %1698 = vmatpush1.msra.mxu0 %v457
  %1699 = vmatprep.subr.mxu0 0.0
  %1700 = vmatpush2.msra.mxu0 0.0
  %1701 = vmatprep.subr.mxu0 0.0
  %1702 = vmatpush2.msra.mxu0 0.0
  %1703 = vmatprep.subr.mxu0 0.0
  %1704 = vmatpush2.msra.mxu0 0.0
  %1705 = vmatprep.subr.mxu0 0.0
  %1706 = vmatpush2.msra.mxu0 0.0
  %1707 = vmatprep.subr.mxu0 0.0
  %1708 = vmatpush2.msra.mxu0 0.0
  %1709 = vmatprep.subr.mxu0 0.0
  %1710 = vmatpush2.msra.mxu0 0.0
  %1711 = vmatprep.subr.mxu0 0.0
  %1712 = vmatpush2.msra.mxu0 0.0
  %1713 = vmatprep.subr.mxu0 0.0
  %1714 = vmatpush2.msra.mxu0 0.0
  %1715 = vmatprep.subr.mxu0 0.0
  %1716 = vmatpush2.msra.mxu0 0.0
  %1717 = vmatprep.subr.mxu0 0.0
  %1718 = vmatpush2.msra.mxu0 0.0
  %1719 = vmatprep.subr.mxu0 0.0
  %1720 = vmatpush2.msra.mxu0 0.0
  %1721 = vmatprep.subr.mxu0 0.0
  %1722 = vmatpush2.msra.mxu0 0.0
  %1723 = vmatprep.subr.mxu0 0.0
  %1724 = vmatpush2.msra.mxu0 0.0
  %1725 = vmatprep.subr.mxu0 0.0
  %1726 = vmatpush2.msra.mxu0 0.0
  %1727 = vmatprep.subr.mxu0 0.0
  %1728 = vmatpush2.msra.mxu0 0.0
  %1729 = vmatprep.subr.mxu0 0.0
  %1730 = vmatpush2.msra.mxu0 0.0
  %1731 = vmatprep.mubr.f32.mxu0 0.0
  %1732 = vmatmul.mubr.f32.gmra.mxu0 %v1665
  %v1733 = vpop.f32.mrf.mxu0
  %v1734 = vadd.f32 %v1664, %v1733
  %v1735 = vpop.f32.mrf.mxu0
  %1736 = vdwg.mxu0
  %v1737 = vmul.f32 %v1734, 0.5
  %v1738 = vtanh.pop %v1737
  %v1739 = vadd.f32 %v1738, 1.0
  %v1740 = vmul.f32 %v1739, 0.5
  %v1741 = vtanh.pop %v1734
  %v1742 = vmul.f32 %v1740, %v1552
  %1744 = vrot.lane.b32.xlu0 %v1741, 64
  %v1745 = vpop.permute.xlu0 %1744
  %v1747 = vmul.f32 %v1740, %v1745
  %1749 = vrot.lane.b32.xlu0 %v1747, 32
  %v1750 = vpop.permute.xlu0 %1749
  %v1752 = vadd.f32 %v1742, %v1750
  %v1753 = vtanh.pop %v1752
  %1755 = vrot.lane.b32.xlu0 %v1753, 64
  %v1756 = vpop.permute.xlu0 %1755
  %v1758 = vmul.f32 %v1740, %v1756
  %v1759 = vld [vmem:[#allocation3 + $0x8] sm:$0xff]
  %v1760 = vsel %vm195, %v1661, 0
  %1762 = vmatprep.subr.mxu0 0.0
  %1763 = vmatpush1.msra.mxu0 0.0
  %1764 = vmatprep.subr.mxu0 0.0
  %1765 = vmatpush1.msra.mxu0 0.0
  %1766 = vmatprep.subr.mxu0 0.0
  %1767 = vmatpush1.msra.mxu0 0.0
  %1768 = vmatprep.subr.mxu0 0.0
  %1769 = vmatpush1.msra.mxu0 0.0
  %1770 = vmatprep.subr.mxu0 0.0
  %1771 = vmatpush1.msra.mxu0 0.0
  %1772 = vmatprep.subr.mxu0 0.0
  %1773 = vmatpush1.msra.mxu0 0.0
  %1774 = vmatprep.subr.mxu0 0.0
  %1775 = vmatpush1.msra.mxu0 0.0
  %1776 = vmatprep.subr.mxu0 0.0
  %1777 = vmatpush1.msra.mxu0 0.0
  %1778 = vmatprep.subr.mxu0 0.0
  %1779 = vmatpush1.msra.mxu0 0.0
  %1780 = vmatprep.subr.mxu0 0.0
  %1781 = vmatpush1.msra.mxu0 0.0
  %1782 = vmatprep.subr.mxu0 0.0
  %1783 = vmatpush1.msra.mxu0 0.0
  %1784 = vmatprep.subr.mxu0 0.0
  %1785 = vmatpush1.msra.mxu0 0.0
  %1786 = vmatprep.subr.mxu0 0.0
  %1787 = vmatpush1.msra.mxu0 %v464
  %1788 = vmatprep.subr.mxu0 0.0
  %1789 = vmatpush1.msra.mxu0 %v463
  %1790 = vmatprep.subr.mxu0 0.0
  %1791 = vmatpush1.msra.mxu0 %v462
  %1792 = vmatprep.subr.mxu0 0.0
  %1793 = vmatpush1.msra.mxu0 %v461
  %1794 = vmatprep.subr.mxu0 0.0
  %1795 = vmatpush2.msra.mxu0 0.0
  %1796 = vmatprep.subr.mxu0 0.0
  %1797 = vmatpush2.msra.mxu0 0.0
  %1798 = vmatprep.subr.mxu0 0.0
  %1799 = vmatpush2.msra.mxu0 0.0
  %1800 = vmatprep.subr.mxu0 0.0
  %1801 = vmatpush2.msra.mxu0 0.0
  %1802 = vmatprep.subr.mxu0 0.0
  %1803 = vmatpush2.msra.mxu0 0.0
  %1804 = vmatprep.subr.mxu0 0.0
  %1805 = vmatpush2.msra.mxu0 0.0
  %1806 = vmatprep.subr.mxu0 0.0
  %1807 = vmatpush2.msra.mxu0 0.0
  %1808 = vmatprep.subr.mxu0 0.0
  %1809 = vmatpush2.msra.mxu0 0.0
  %1810 = vmatprep.subr.mxu0 0.0
  %1811 = vmatpush2.msra.mxu0 0.0
  %1812 = vmatprep.subr.mxu0 0.0
  %1813 = vmatpush2.msra.mxu0 0.0
  %1814 = vmatprep.subr.mxu0 0.0
  %1815 = vmatpush2.msra.mxu0 0.0
  %1816 = vmatprep.subr.mxu0 0.0
  %1817 = vmatpush2.msra.mxu0 0.0
  %1818 = vmatprep.subr.mxu0 0.0
  %1819 = vmatpush2.msra.mxu0 0.0
  %1820 = vmatprep.subr.mxu0 0.0
  %1821 = vmatpush2.msra.mxu0 0.0
  %1822 = vmatprep.subr.mxu0 0.0
  %1823 = vmatpush2.msra.mxu0 0.0
  %1824 = vmatprep.subr.mxu0 0.0
  %1825 = vmatpush2.msra.mxu0 0.0
  %1826 = vmatprep.mubr.f32.mxu0 0.0
  %1827 = vmatmul.mubr.f32.gmra.mxu0 %v1760
  %v1828 = vpop.f32.mrf.mxu0
  %v1829 = vadd.f32 %v1759, %v1828
  %v1830 = vpop.f32.mrf.mxu0
  %1831 = vdwg.mxu0
  %v1832 = vmul.f32 %v1829, 0.5
  %v1833 = vtanh.pop %v1832
  %v1834 = vadd.f32 %v1833, 1.0
  %v1835 = vmul.f32 %v1834, 0.5
  %v1836 = vtanh.pop %v1829
  %v1837 = vmul.f32 %v1835, %v1647
  %1839 = vrot.lane.b32.xlu0 %v1836, 64
  %v1840 = vpop.permute.xlu0 %1839
  %v1842 = vmul.f32 %v1835, %v1840
  %1844 = vrot.lane.b32.xlu0 %v1842, 32
  %v1845 = vpop.permute.xlu0 %1844
  %v1847 = vadd.f32 %v1837, %v1845
  %v1848 = vtanh.pop %v1847
  %1850 = vrot.lane.b32.xlu0 %v1848, 64
  %v1851 = vpop.permute.xlu0 %1850
  %v1853 = vmul.f32 %v1835, %v1851
  %1855 = vrot.lane.b32.xlu0 %v1758, 32
  %v1856 = vpop.permute.xlu0 %1855
  %1858 = vst.msk [vmem:[#allocation5 + $0x30] sm:$0xff] %vm195, %v1856
  %1860 = vrot.lane.b32.xlu0 %v1853, 32
  %v1861 = vpop.permute.xlu0 %1860
  %1863 = vst.msk [vmem:[#allocation6 + $0x8] sm:$0xff] %vm195, %v1861
  %v1864 = vld [vmem:[#allocation2 + $0x38] sm:$0xff]
  %v1865 = vsel %vm195, %v1856, 0
  %1867 = vmatprep.subr.mxu0 0.0
  %1868 = vmatpush1.msra.mxu0 0.0
  %1869 = vmatprep.subr.mxu0 0.0
  %1870 = vmatpush1.msra.mxu0 0.0
  %1871 = vmatprep.subr.mxu0 0.0
  %1872 = vmatpush1.msra.mxu0 0.0
  %1873 = vmatprep.subr.mxu0 0.0
  %1874 = vmatpush1.msra.mxu0 0.0
  %1875 = vmatprep.subr.mxu0 0.0
  %1876 = vmatpush1.msra.mxu0 0.0
  %1877 = vmatprep.subr.mxu0 0.0
  %1878 = vmatpush1.msra.mxu0 0.0
  %1879 = vmatprep.subr.mxu0 0.0
  %1880 = vmatpush1.msra.mxu0 0.0
  %1881 = vmatprep.subr.mxu0 0.0
  %1882 = vmatpush1.msra.mxu0 0.0
  %1883 = vmatprep.subr.mxu0 0.0
  %1884 = vmatpush1.msra.mxu0 0.0
  %1885 = vmatprep.subr.mxu0 0.0
  %1886 = vmatpush1.msra.mxu0 0.0
  %1887 = vmatprep.subr.mxu0 0.0
  %1888 = vmatpush1.msra.mxu0 0.0
  %1889 = vmatprep.subr.mxu0 0.0
  %1890 = vmatpush1.msra.mxu0 0.0
  %1891 = vmatprep.subr.mxu0 0.0
  %1892 = vmatpush1.msra.mxu0 %v460
  %1893 = vmatprep.subr.mxu0 0.0
  %1894 = vmatpush1.msra.mxu0 %v459
  %1895 = vmatprep.subr.mxu0 0.0
  %1896 = vmatpush1.msra.mxu0 %v458
  %1897 = vmatprep.subr.mxu0 0.0
  %1898 = vmatpush1.msra.mxu0 %v457
  %1899 = vmatprep.subr.mxu0 0.0
  %1900 = vmatpush2.msra.mxu0 0.0
  %1901 = vmatprep.subr.mxu0 0.0
  %1902 = vmatpush2.msra.mxu0 0.0
  %1903 = vmatprep.subr.mxu0 0.0
  %1904 = vmatpush2.msra.mxu0 0.0
  %1905 = vmatprep.subr.mxu0 0.0
  %1906 = vmatpush2.msra.mxu0 0.0
  %1907 = vmatprep.subr.mxu0 0.0
  %1908 = vmatpush2.msra.mxu0 0.0
  %1909 = vmatprep.subr.mxu0 0.0
  %1910 = vmatpush2.msra.mxu0 0.0
  %1911 = vmatprep.subr.mxu0 0.0
  %1912 = vmatpush2.msra.mxu0 0.0
  %1913 = vmatprep.subr.mxu0 0.0
  %1914 = vmatpush2.msra.mxu0 0.0
  %1915 = vmatprep.subr.mxu0 0.0
  %1916 = vmatpush2.msra.mxu0 0.0
  %1917 = vmatprep.subr.mxu0 0.0
  %1918 = vmatpush2.msra.mxu0 0.0
  %1919 = vmatprep.subr.mxu0 0.0
  %1920 = vmatpush2.msra.mxu0 0.0
  %1921 = vmatprep.subr.mxu0 0.0
  %1922 = vmatpush2.msra.mxu0 0.0
  %1923 = vmatprep.subr.mxu0 0.0
  %1924 = vmatpush2.msra.mxu0 0.0
  %1925 = vmatprep.subr.mxu0 0.0
  %1926 = vmatpush2.msra.mxu0 0.0
  %1927 = vmatprep.subr.mxu0 0.0
  %1928 = vmatpush2.msra.mxu0 0.0
  %1929 = vmatprep.subr.mxu0 0.0
  %1930 = vmatpush2.msra.mxu0 0.0
  %1931 = vmatprep.mubr.f32.mxu0 0.0
  %1932 = vmatmul.mubr.f32.gmra.mxu0 %v1865
  %v1933 = vpop.f32.mrf.mxu0
  %v1934 = vadd.f32 %v1864, %v1933
  %v1935 = vpop.f32.mrf.mxu0
  %1936 = vdwg.mxu0
  %v1937 = vmul.f32 %v1934, 0.5
  %v1938 = vtanh.pop %v1937
  %v1939 = vadd.f32 %v1938, 1.0
  %v1940 = vmul.f32 %v1939, 0.5
  %v1941 = vtanh.pop %v1934
  %v1942 = vmul.f32 %v1940, %v1752
  %1944 = vrot.lane.b32.xlu0 %v1941, 64
  %v1945 = vpop.permute.xlu0 %1944
  %v1947 = vmul.f32 %v1940, %v1945
  %1949 = vrot.lane.b32.xlu0 %v1947, 32
  %v1950 = vpop.permute.xlu0 %1949
  %v1952 = vadd.f32 %v1942, %v1950
  %v1953 = vtanh.pop %v1952
  %1955 = vrot.lane.b32.xlu0 %v1953, 64
  %v1956 = vpop.permute.xlu0 %1955
  %v1958 = vmul.f32 %v1940, %v1956
  %v1959 = vld [vmem:[#allocation3] sm:$0xff]
  %v1960 = vsel %vm195, %v1861, 0
  %1962 = vmatprep.subr.mxu0 0.0
  %1963 = vmatpush1.msra.mxu0 0.0
  %1964 = vmatprep.subr.mxu0 0.0
  %1965 = vmatpush1.msra.mxu0 0.0
  %1966 = vmatprep.subr.mxu0 0.0
  %1967 = vmatpush1.msra.mxu0 0.0
  %1968 = vmatprep.subr.mxu0 0.0
  %1969 = vmatpush1.msra.mxu0 0.0
  %1970 = vmatprep.subr.mxu0 0.0
  %1971 = vmatpush1.msra.mxu0 0.0
  %1972 = vmatprep.subr.mxu0 0.0
  %1973 = vmatpush1.msra.mxu0 0.0
  %1974 = vmatprep.subr.mxu0 0.0
  %1975 = vmatpush1.msra.mxu0 0.0
  %1976 = vmatprep.subr.mxu0 0.0
  %1977 = vmatpush1.msra.mxu0 0.0
  %1978 = vmatprep.subr.mxu0 0.0
  %1979 = vmatpush1.msra.mxu0 0.0
  %1980 = vmatprep.subr.mxu0 0.0
  %1981 = vmatpush1.msra.mxu0 0.0
  %1982 = vmatprep.subr.mxu0 0.0
  %1983 = vmatpush1.msra.mxu0 0.0
  %1984 = vmatprep.subr.mxu0 0.0
  %1985 = vmatpush1.msra.mxu0 0.0
  %1986 = vmatprep.subr.mxu0 0.0
  %1987 = vmatpush1.msra.mxu0 %v464
  %1988 = vmatprep.subr.mxu0 0.0
  %1989 = vmatpush1.msra.mxu0 %v463
  %1990 = vmatprep.subr.mxu0 0.0
  %1991 = vmatpush1.msra.mxu0 %v462
  %1992 = vmatprep.subr.mxu0 0.0
  %1993 = vmatpush1.msra.mxu0 %v461
  %1994 = vmatprep.subr.mxu0 0.0
  %1995 = vmatpush2.msra.mxu0 0.0
  %1996 = vmatprep.subr.mxu0 0.0
  %1997 = vmatpush2.msra.mxu0 0.0
  %1998 = vmatprep.subr.mxu0 0.0
  %1999 = vmatpush2.msra.mxu0 0.0
  %2000 = vmatprep.subr.mxu0 0.0
  %2001 = vmatpush2.msra.mxu0 0.0
  %2002 = vmatprep.subr.mxu0 0.0
  %2003 = vmatpush2.msra.mxu0 0.0
  %2004 = vmatprep.subr.mxu0 0.0
  %2005 = vmatpush2.msra.mxu0 0.0
  %2006 = vmatprep.subr.mxu0 0.0
  %2007 = vmatpush2.msra.mxu0 0.0
  %2008 = vmatprep.subr.mxu0 0.0
  %2009 = vmatpush2.msra.mxu0 0.0
  %2010 = vmatprep.subr.mxu0 0.0
  %2011 = vmatpush2.msra.mxu0 0.0
  %2012 = vmatprep.subr.mxu0 0.0
  %2013 = vmatpush2.msra.mxu0 0.0
  %2014 = vmatprep.subr.mxu0 0.0
  %2015 = vmatpush2.msra.mxu0 0.0
  %2016 = vmatprep.subr.mxu0 0.0
  %2017 = vmatpush2.msra.mxu0 0.0
  %2018 = vmatprep.subr.mxu0 0.0
  %2019 = vmatpush2.msra.mxu0 0.0
  %2020 = vmatprep.subr.mxu0 0.0
  %2021 = vmatpush2.msra.mxu0 0.0
  %2022 = vmatprep.subr.mxu0 0.0
  %2023 = vmatpush2.msra.mxu0 0.0
  %2024 = vmatprep.subr.mxu0 0.0
  %2025 = vmatpush2.msra.mxu0 0.0
  %2026 = vmatprep.mubr.f32.mxu0 0.0
  %2027 = vmatmul.mubr.f32.gmra.mxu0 %v1960
  %v2028 = vpop.f32.mrf.mxu0
  %v2029 = vadd.f32 %v1959, %v2028
  %v2030 = vpop.f32.mrf.mxu0
  %2031 = vdwg.mxu0
  %v2032 = vmul.f32 %v2029, 0.5
  %v2033 = vtanh.pop %v2032
  %v2034 = vadd.f32 %v2033, 1.0
  %v2035 = vmul.f32 %v2034, 0.5
  %v2036 = vtanh.pop %v2029
  %v2037 = vmul.f32 %v2035, %v1847
  %2039 = vrot.lane.b32.xlu0 %v2036, 64
  %v2040 = vpop.permute.xlu0 %2039
  %v2042 = vmul.f32 %v2035, %v2040
  %2044 = vrot.lane.b32.xlu0 %v2042, 32
  %v2045 = vpop.permute.xlu0 %2044
  %v2047 = vadd.f32 %v2037, %v2045
  %v2048 = vtanh.pop %v2047
  %2050 = vrot.lane.b32.xlu0 %v2048, 64
  %v2051 = vpop.permute.xlu0 %2050
  %v2053 = vmul.f32 %v2035, %v2051
  %2055 = vrot.lane.b32.xlu0 %v1958, 32
  %v2056 = vpop.permute.xlu0 %2055
  %2058 = vst.msk [vmem:[#allocation5 + $0x38] sm:$0xff] %vm195, %v2056
  %2060 = vrot.lane.b32.xlu0 %v2053, 32
  %v2061 = vpop.permute.xlu0 %2060
  %2063 = vst.msk [vmem:[#allocation6] sm:$0xff] %vm195, %v2061
  %v2064 = vld [vmem:[%s1] sm:$0xff]
  %v2065 = vld [vmem:[%s1 + $0x8] sm:$0xff]
  %v2066 = vld [vmem:[%s1 + $0x10] sm:$0xff]
  %v2067 = vld [vmem:[%s1 + $0x18] sm:$0xff]
  %v2068 = vld [vmem:[%s1 + $0x20] sm:$0xff]
  %v2069 = vld [vmem:[%s1 + $0x28] sm:$0xff]
  %v2070 = vld [vmem:[%s1 + $0x30] sm:$0xff]
  %v2071 = vld [vmem:[%s1 + $0x38] sm:$0xff]
  %v2072 = vld [vmem:[%s10] sm:$0xff]
  %v2073 = vld [vmem:[%s10 + $0x8] sm:$0xff]
  %v2074 = vld [vmem:[%s10 + $0x10] sm:$0xff]
  %v2075 = vld [vmem:[%s10 + $0x18] sm:$0xff]
  %v2076 = vld [vmem:[#allocation5] sm:$0xff]
  %v2077 = vld [vmem:[#allocation5 + $0x8] sm:$0xff]
  %v2078 = vld [vmem:[#allocation5 + $0x10] sm:$0xff]
  %v2079 = vld [vmem:[#allocation5 + $0x18] sm:$0xff]
  %v2080 = vld [vmem:[#allocation5 + $0x20] sm:$0xff]
  %v2081 = vld [vmem:[#allocation5 + $0x28] sm:$0xff]
  %v2082 = vld [vmem:[#allocation5 + $0x30] sm:$0xff]
  %v2083 = vld [vmem:[#allocation5 + $0x38] sm:$0xff]
  %s2084 = scalar_lea.vmem %s10, 32
  %v2085 = vld [vmem:[%s2084] sm:$0xff]
  %v2086 = vld [vmem:[%s2084 + $0x8] sm:$0xff]
  %v2087 = vld [vmem:[%s2084 + $0x10] sm:$0xff]
  %v2088 = vld [vmem:[%s2084 + $0x18] sm:$0xff]
  %v2090 = vsel %vm195, %v2076, 0
  %v2093 = vsel %vm195, %v2077, 0
  %v2096 = vsel %vm195, %v2078, 0
  %v2099 = vsel %vm195, %v2079, 0
  %v2102 = vsel %vm195, %v2080, 0
  %v2105 = vsel %vm195, %v2081, 0
  %v2108 = vsel %vm195, %v2082, 0
  %v2111 = vsel %vm195, %v2083, 0
  %2113 = vmatprep.subr.mxu0 0.0
  %2114 = vmatpush1.msra.mxu0 0.0
  %2115 = vmatprep.subr.mxu0 0.0
  %2116 = vmatpush1.msra.mxu0 0.0
  %2117 = vmatprep.subr.mxu0 0.0
  %2118 = vmatpush1.msra.mxu0 0.0
  %2119 = vmatprep.subr.mxu0 0.0
  %2120 = vmatpush1.msra.mxu0 0.0
  %2121 = vmatprep.subr.mxu0 0.0
  %2122 = vmatpush1.msra.mxu0 0.0
  %2123 = vmatprep.subr.mxu0 0.0
  %2124 = vmatpush1.msra.mxu0 0.0
  %2125 = vmatprep.subr.mxu0 0.0
  %2126 = vmatpush1.msra.mxu0 0.0
  %2127 = vmatprep.subr.mxu0 0.0
  %2128 = vmatpush1.msra.mxu0 0.0
  %2129 = vmatprep.subr.mxu0 0.0
  %2130 = vmatpush1.msra.mxu0 0.0
  %2131 = vmatprep.subr.mxu0 0.0
  %2132 = vmatpush1.msra.mxu0 0.0
  %2133 = vmatprep.subr.mxu0 0.0
  %2134 = vmatpush1.msra.mxu0 0.0
  %2135 = vmatprep.subr.mxu0 0.0
  %2136 = vmatpush1.msra.mxu0 0.0
  %2137 = vmatprep.subr.mxu0 0.0
  %2138 = vmatpush1.msra.mxu0 %v2088
  %2139 = vmatprep.subr.mxu0 0.0
  %2140 = vmatpush1.msra.mxu0 %v2087
  %2141 = vmatprep.subr.mxu0 0.0
  %2142 = vmatpush1.msra.mxu0 %v2086
  %2143 = vmatprep.subr.mxu0 0.0
  %2144 = vmatpush1.msra.mxu0 %v2085
  %2145 = vmatprep.subr.mxu0 0.0
  %2146 = vmatpush2.msra.mxu0 0.0
  %2147 = vmatprep.subr.mxu0 0.0
  %2148 = vmatpush2.msra.mxu0 0.0
  %2149 = vmatprep.subr.mxu0 0.0
  %2150 = vmatpush2.msra.mxu0 0.0
  %2151 = vmatprep.subr.mxu0 0.0
  %2152 = vmatpush2.msra.mxu0 0.0
  %2153 = vmatprep.subr.mxu0 0.0
  %2154 = vmatpush2.msra.mxu0 0.0
  %2155 = vmatprep.subr.mxu0 0.0
  %2156 = vmatpush2.msra.mxu0 0.0
  %2157 = vmatprep.subr.mxu0 0.0
  %2158 = vmatpush2.msra.mxu0 0.0
  %2159 = vmatprep.subr.mxu0 0.0
  %2160 = vmatpush2.msra.mxu0 0.0
  %2161 = vmatprep.subr.mxu0 0.0
  %2162 = vmatpush2.msra.mxu0 0.0
  %2163 = vmatprep.subr.mxu0 0.0
  %2164 = vmatpush2.msra.mxu0 0.0
  %2165 = vmatprep.subr.mxu0 0.0
  %2166 = vmatpush2.msra.mxu0 0.0
  %2167 = vmatprep.subr.mxu0 0.0
  %2168 = vmatpush2.msra.mxu0 0.0
  %2169 = vmatprep.subr.mxu0 0.0
  %2170 = vmatpush2.msra.mxu0 0.0
  %2171 = vmatprep.subr.mxu0 0.0
  %2172 = vmatpush2.msra.mxu0 0.0
  %2173 = vmatprep.subr.mxu0 0.0
  %2174 = vmatpush2.msra.mxu0 0.0
  %2175 = vmatprep.subr.mxu0 0.0
  %2176 = vmatpush2.msra.mxu0 0.0
  %2177 = vmatprep.mubr.f32.mxu0 0.0
  %2178 = vmatmul.mubr.f32.gmra.mxu0 %v2090
  %v2179 = vpop.f32.mrf.mxu0
  %v2180 = vadd.f32 0.0, %v2179
  %v2181 = vpop.f32.mrf.mxu0
  %2182 = vmatprep.mubr.f32.mxu0 0.0
  %2183 = vmatmul.mubr.f32.gmra.mxu0 %v2093
  %v2184 = vpop.f32.mrf.mxu0
  %v2185 = vadd.f32 0.0, %v2184
  %v2186 = vpop.f32.mrf.mxu0
  %2187 = vmatprep.mubr.f32.mxu0 0.0
  %2188 = vmatmul.mubr.f32.gmra.mxu0 %v2096
  %v2189 = vpop.f32.mrf.mxu0
  %v2190 = vadd.f32 0.0, %v2189
  %v2191 = vpop.f32.mrf.mxu0
  %2192 = vmatprep.mubr.f32.mxu0 0.0
  %2193 = vmatmul.mubr.f32.gmra.mxu0 %v2099
  %v2194 = vpop.f32.mrf.mxu0
  %v2195 = vadd.f32 0.0, %v2194
  %v2196 = vpop.f32.mrf.mxu0
  %2197 = vmatprep.mubr.f32.mxu0 0.0
  %2198 = vmatmul.mubr.f32.gmra.mxu0 %v2102
  %v2199 = vpop.f32.mrf.mxu0
  %v2200 = vadd.f32 0.0, %v2199
  %v2201 = vpop.f32.mrf.mxu0
  %2202 = vmatprep.mubr.f32.mxu0 0.0
  %2203 = vmatmul.mubr.f32.gmra.mxu0 %v2105
  %v2204 = vpop.f32.mrf.mxu0
  %v2205 = vadd.f32 0.0, %v2204
  %v2206 = vpop.f32.mrf.mxu0
  %2207 = vmatprep.mubr.f32.mxu0 0.0
  %2208 = vmatmul.mubr.f32.gmra.mxu0 %v2108
  %v2209 = vpop.f32.mrf.mxu0
  %v2210 = vadd.f32 0.0, %v2209
  %v2211 = vpop.f32.mrf.mxu0
  %2212 = vmatprep.mubr.f32.mxu0 0.0
  %2213 = vmatmul.mubr.f32.gmra.mxu0 %v2111
  %v2214 = vpop.f32.mrf.mxu0
  %v2215 = vadd.f32 0.0, %v2214
  %v2216 = vpop.f32.mrf.mxu0
  %2217 = vdwg.mxu0
  %v2219 = vsel %vm195, %v2064, 0
  %v2222 = vsel %vm195, %v2065, 0
  %v2225 = vsel %vm195, %v2066, 0
  %v2228 = vsel %vm195, %v2067, 0
  %v2231 = vsel %vm195, %v2068, 0
  %v2234 = vsel %vm195, %v2069, 0
  %v2237 = vsel %vm195, %v2070, 0
  %v2240 = vsel %vm195, %v2071, 0
  %2242 = vmatprep.subr.mxu0 0.0
  %2243 = vmatpush1.msra.mxu0 0.0
  %2244 = vmatprep.subr.mxu0 0.0
  %2245 = vmatpush1.msra.mxu0 0.0
  %2246 = vmatprep.subr.mxu0 0.0
  %2247 = vmatpush1.msra.mxu0 0.0
  %2248 = vmatprep.subr.mxu0 0.0
  %2249 = vmatpush1.msra.mxu0 0.0
  %2250 = vmatprep.subr.mxu0 0.0
  %2251 = vmatpush1.msra.mxu0 0.0
  %2252 = vmatprep.subr.mxu0 0.0
  %2253 = vmatpush1.msra.mxu0 0.0
  %2254 = vmatprep.subr.mxu0 0.0
  %2255 = vmatpush1.msra.mxu0 0.0
  %2256 = vmatprep.subr.mxu0 0.0
  %2257 = vmatpush1.msra.mxu0 0.0
  %2258 = vmatprep.subr.mxu0 0.0
  %2259 = vmatpush1.msra.mxu0 0.0
  %2260 = vmatprep.subr.mxu0 0.0
  %2261 = vmatpush1.msra.mxu0 0.0
  %2262 = vmatprep.subr.mxu0 0.0
  %2263 = vmatpush1.msra.mxu0 0.0
  %2264 = vmatprep.subr.mxu0 0.0
  %2265 = vmatpush1.msra.mxu0 0.0
  %2266 = vmatprep.subr.mxu0 0.0
  %2267 = vmatpush1.msra.mxu0 %v2075
  %2268 = vmatprep.subr.mxu0 0.0
  %2269 = vmatpush1.msra.mxu0 %v2074
  %2270 = vmatprep.subr.mxu0 0.0
  %2271 = vmatpush1.msra.mxu0 %v2073
  %2272 = vmatprep.subr.mxu0 0.0
  %2273 = vmatpush1.msra.mxu0 %v2072
  %2274 = vmatprep.subr.mxu0 0.0
  %2275 = vmatpush2.msra.mxu0 0.0
  %2276 = vmatprep.subr.mxu0 0.0
  %2277 = vmatpush2.msra.mxu0 0.0
  %2278 = vmatprep.subr.mxu0 0.0
  %2279 = vmatpush2.msra.mxu0 0.0
  %2280 = vmatprep.subr.mxu0 0.0
  %2281 = vmatpush2.msra.mxu0 0.0
  %2282 = vmatprep.subr.mxu0 0.0
  %2283 = vmatpush2.msra.mxu0 0.0
  %2284 = vmatprep.subr.mxu0 0.0
  %2285 = vmatpush2.msra.mxu0 0.0
  %2286 = vmatprep.subr.mxu0 0.0
  %2287 = vmatpush2.msra.mxu0 0.0
  %2288 = vmatprep.subr.mxu0 0.0
  %2289 = vmatpush2.msra.mxu0 0.0
  %2290 = vmatprep.subr.mxu0 0.0
  %2291 = vmatpush2.msra.mxu0 0.0
  %2292 = vmatprep.subr.mxu0 0.0
  %2293 = vmatpush2.msra.mxu0 0.0
  %2294 = vmatprep.subr.mxu0 0.0
  %2295 = vmatpush2.msra.mxu0 0.0
  %2296 = vmatprep.subr.mxu0 0.0
  %2297 = vmatpush2.msra.mxu0 0.0
  %2298 = vmatprep.subr.mxu0 0.0
  %2299 = vmatpush2.msra.mxu0 0.0
  %2300 = vmatprep.subr.mxu0 0.0
  %2301 = vmatpush2.msra.mxu0 0.0
  %2302 = vmatprep.subr.mxu0 0.0
  %2303 = vmatpush2.msra.mxu0 0.0
  %2304 = vmatprep.subr.mxu0 0.0
  %2305 = vmatpush2.msra.mxu0 0.0
  %2306 = vmatprep.mubr.f32.mxu0 0.0
  %2307 = vmatmul.mubr.f32.gmra.mxu0 %v2219
  %v2308 = vpop.f32.mrf.mxu0
  %v2309 = vadd.f32 %v2180, %v2308
  %v2310 = vpop.f32.mrf.mxu0
  %2311 = vmatprep.mubr.f32.mxu0 0.0
  %2312 = vmatmul.mubr.f32.gmra.mxu0 %v2222
  %v2313 = vpop.f32.mrf.mxu0
  %v2314 = vadd.f32 %v2185, %v2313
  %v2315 = vpop.f32.mrf.mxu0
  %2316 = vmatprep.mubr.f32.mxu0 0.0
  %2317 = vmatmul.mubr.f32.gmra.mxu0 %v2225
  %v2318 = vpop.f32.mrf.mxu0
  %v2319 = vadd.f32 %v2190, %v2318
  %v2320 = vpop.f32.mrf.mxu0
  %2321 = vmatprep.mubr.f32.mxu0 0.0
  %2322 = vmatmul.mubr.f32.gmra.mxu0 %v2228
  %v2323 = vpop.f32.mrf.mxu0
  %v2324 = vadd.f32 %v2195, %v2323
  %v2325 = vpop.f32.mrf.mxu0
  %2326 = vmatprep.mubr.f32.mxu0 0.0
  %2327 = vmatmul.mubr.f32.gmra.mxu0 %v2231
  %v2328 = vpop.f32.mrf.mxu0
  %v2329 = vadd.f32 %v2200, %v2328
  %v2330 = vpop.f32.mrf.mxu0
  %2331 = vmatprep.mubr.f32.mxu0 0.0
  %2332 = vmatmul.mubr.f32.gmra.mxu0 %v2234
  %v2333 = vpop.f32.mrf.mxu0
  %v2334 = vadd.f32 %v2205, %v2333
  %v2335 = vpop.f32.mrf.mxu0
  %2336 = vmatprep.mubr.f32.mxu0 0.0
  %2337 = vmatmul.mubr.f32.gmra.mxu0 %v2237
  %v2338 = vpop.f32.mrf.mxu0
  %v2339 = vadd.f32 %v2210, %v2338
  %v2340 = vpop.f32.mrf.mxu0
  %2341 = vmatprep.mubr.f32.mxu0 0.0
  %2342 = vmatmul.mubr.f32.gmra.mxu0 %v2240
  %v2343 = vpop.f32.mrf.mxu0
  %v2344 = vadd.f32 %v2215, %v2343
  %v2345 = vpop.f32.mrf.mxu0
  %2346 = vdwg.mxu0
  %v2347 = vld [vmem:[#allocation6] sm:$0xff]
  %v2348 = vld [vmem:[#allocation6 + $0x8] sm:$0xff]
  %v2349 = vld [vmem:[#allocation6 + $0x10] sm:$0xff]
  %v2350 = vld [vmem:[#allocation6 + $0x18] sm:$0xff]
  %v2351 = vld [vmem:[#allocation6 + $0x20] sm:$0xff]
  %v2352 = vld [vmem:[#allocation6 + $0x28] sm:$0xff]
  %v2353 = vld [vmem:[#allocation6 + $0x30] sm:$0xff]
  %v2354 = vld [vmem:[#allocation6 + $0x38] sm:$0xff]
  %s2355 = scalar_lea.vmem %s10, 64
  %v2356 = vld [vmem:[%s2355] sm:$0xff]
  %v2357 = vld [vmem:[%s2355 + $0x8] sm:$0xff]
  %v2358 = vld [vmem:[%s2355 + $0x10] sm:$0xff]
  %v2359 = vld [vmem:[%s2355 + $0x18] sm:$0xff]
  %v2361 = vsel %vm195, %v2347, 0
  %v2364 = vsel %vm195, %v2348, 0
  %v2367 = vsel %vm195, %v2349, 0
  %v2370 = vsel %vm195, %v2350, 0
  %v2373 = vsel %vm195, %v2351, 0
  %v2376 = vsel %vm195, %v2352, 0
  %v2379 = vsel %vm195, %v2353, 0
  %v2382 = vsel %vm195, %v2354, 0
  %2384 = vmatprep.subr.mxu0 0.0
  %2385 = vmatpush1.msra.mxu0 0.0
  %2386 = vmatprep.subr.mxu0 0.0
  %2387 = vmatpush1.msra.mxu0 0.0
  %2388 = vmatprep.subr.mxu0 0.0
  %2389 = vmatpush1.msra.mxu0 0.0
  %2390 = vmatprep.subr.mxu0 0.0
  %2391 = vmatpush1.msra.mxu0 0.0
  %2392 = vmatprep.subr.mxu0 0.0
  %2393 = vmatpush1.msra.mxu0 0.0
  %2394 = vmatprep.subr.mxu0 0.0
  %2395 = vmatpush1.msra.mxu0 0.0
  %2396 = vmatprep.subr.mxu0 0.0
  %2397 = vmatpush1.msra.mxu0 0.0
  %2398 = vmatprep.subr.mxu0 0.0
  %2399 = vmatpush1.msra.mxu0 0.0
  %2400 = vmatprep.subr.mxu0 0.0
  %2401 = vmatpush1.msra.mxu0 0.0
  %2402 = vmatprep.subr.mxu0 0.0
  %2403 = vmatpush1.msra.mxu0 0.0
  %2404 = vmatprep.subr.mxu0 0.0
  %2405 = vmatpush1.msra.mxu0 0.0
  %2406 = vmatprep.subr.mxu0 0.0
  %2407 = vmatpush1.msra.mxu0 0.0
  %2408 = vmatprep.subr.mxu0 0.0
  %2409 = vmatpush1.msra.mxu0 %v2359
  %2410 = vmatprep.subr.mxu0 0.0
  %2411 = vmatpush1.msra.mxu0 %v2358
  %2412 = vmatprep.subr.mxu0 0.0
  %2413 = vmatpush1.msra.mxu0 %v2357
  %2414 = vmatprep.subr.mxu0 0.0
  %2415 = vmatpush1.msra.mxu0 %v2356
  %2416 = vmatprep.subr.mxu0 0.0
  %2417 = vmatpush2.msra.mxu0 0.0
  %2418 = vmatprep.subr.mxu0 0.0
  %2419 = vmatpush2.msra.mxu0 0.0
  %2420 = vmatprep.subr.mxu0 0.0
  %2421 = vmatpush2.msra.mxu0 0.0
  %2422 = vmatprep.subr.mxu0 0.0
  %2423 = vmatpush2.msra.mxu0 0.0
  %2424 = vmatprep.subr.mxu0 0.0
  %2425 = vmatpush2.msra.mxu0 0.0
  %2426 = vmatprep.subr.mxu0 0.0
  %2427 = vmatpush2.msra.mxu0 0.0
  %2428 = vmatprep.subr.mxu0 0.0
  %2429 = vmatpush2.msra.mxu0 0.0
  %2430 = vmatprep.subr.mxu0 0.0
  %2431 = vmatpush2.msra.mxu0 0.0
  %2432 = vmatprep.subr.mxu0 0.0
  %2433 = vmatpush2.msra.mxu0 0.0
  %2434 = vmatprep.subr.mxu0 0.0
  %2435 = vmatpush2.msra.mxu0 0.0
  %2436 = vmatprep.subr.mxu0 0.0
  %2437 = vmatpush2.msra.mxu0 0.0
  %2438 = vmatprep.subr.mxu0 0.0
  %2439 = vmatpush2.msra.mxu0 0.0
  %2440 = vmatprep.subr.mxu0 0.0
  %2441 = vmatpush2.msra.mxu0 0.0
  %2442 = vmatprep.subr.mxu0 0.0
  %2443 = vmatpush2.msra.mxu0 0.0
  %2444 = vmatprep.subr.mxu0 0.0
  %2445 = vmatpush2.msra.mxu0 0.0
  %2446 = vmatprep.subr.mxu0 0.0
  %2447 = vmatpush2.msra.mxu0 0.0
  %2448 = vmatprep.mubr.f32.mxu0 0.0
  %2449 = vmatmul.mubr.f32.gmra.mxu0 %v2361
  %v2450 = vpop.f32.mrf.mxu0
  %v2451 = vadd.f32 0.0, %v2450
  %v2452 = vpop.f32.mrf.mxu0
  %2453 = vmatprep.mubr.f32.mxu0 0.0
  %2454 = vmatmul.mubr.f32.gmra.mxu0 %v2364
  %v2455 = vpop.f32.mrf.mxu0
  %v2456 = vadd.f32 0.0, %v2455
  %v2457 = vpop.f32.mrf.mxu0
  %2458 = vmatprep.mubr.f32.mxu0 0.0
  %2459 = vmatmul.mubr.f32.gmra.mxu0 %v2367
  %v2460 = vpop.f32.mrf.mxu0
  %v2461 = vadd.f32 0.0, %v2460
  %v2462 = vpop.f32.mrf.mxu0
  %2463 = vmatprep.mubr.f32.mxu0 0.0
  %2464 = vmatmul.mubr.f32.gmra.mxu0 %v2370
  %v2465 = vpop.f32.mrf.mxu0
  %v2466 = vadd.f32 0.0, %v2465
  %v2467 = vpop.f32.mrf.mxu0
  %2468 = vmatprep.mubr.f32.mxu0 0.0
  %2469 = vmatmul.mubr.f32.gmra.mxu0 %v2373
  %v2470 = vpop.f32.mrf.mxu0
  %v2471 = vadd.f32 0.0, %v2470
  %v2472 = vpop.f32.mrf.mxu0
  %2473 = vmatprep.mubr.f32.mxu0 0.0
  %2474 = vmatmul.mubr.f32.gmra.mxu0 %v2376
  %v2475 = vpop.f32.mrf.mxu0
  %v2476 = vadd.f32 0.0, %v2475
  %v2477 = vpop.f32.mrf.mxu0
  %2478 = vmatprep.mubr.f32.mxu0 0.0
  %2479 = vmatmul.mubr.f32.gmra.mxu0 %v2379
  %v2480 = vpop.f32.mrf.mxu0
  %v2481 = vadd.f32 0.0, %v2480
  %v2482 = vpop.f32.mrf.mxu0
  %2483 = vmatprep.mubr.f32.mxu0 0.0
  %2484 = vmatmul.mubr.f32.gmra.mxu0 %v2382
  %v2485 = vpop.f32.mrf.mxu0
  %v2486 = vadd.f32 0.0, %v2485
  %v2487 = vpop.f32.mrf.mxu0
  %2488 = vdwg.mxu0
  %v2489 = vadd.f32 %v2309, %v2451
  %v2490 = vadd.f32 %v2314, %v2456
  %v2491 = vadd.f32 %v2319, %v2461
  %v2492 = vadd.f32 %v2324, %v2466
  %v2493 = vadd.f32 %v2329, %v2471
  %v2494 = vadd.f32 %v2334, %v2476
  %v2495 = vadd.f32 %v2339, %v2481
  %v2496 = vadd.f32 %v2344, %v2486
  %v2497 = vld [vmem:[%s11] sm:$0x1]
  %v2499 = vlaneseq
  %v2500 = vshrl.u32 %v2499, 7
  %v2501 = vsub.s32 0, %v2500
  %v2502 = vrot.slane %v2497, %v2501
  %v2504 = vadd.f32 %v2489, %v2502
  %v2505 = vadd.f32 %v2490, %v2502
  %v2506 = vadd.f32 %v2491, %v2502
  %v2507 = vadd.f32 %v2492, %v2502
  %v2508 = vadd.f32 %v2493, %v2502
  %v2509 = vadd.f32 %v2494, %v2502
  %v2510 = vadd.f32 %v2495, %v2502
  %v2511 = vadd.f32 %v2496, %v2502
  %v2512 = vmax.f32 %v2504, 0.0
  %v2513 = vmax.f32 %v2505, 0.0
  %v2514 = vmax.f32 %v2506, 0.0
  %v2515 = vmax.f32 %v2507, 0.0
  %v2516 = vmax.f32 %v2508, 0.0
  %v2517 = vmax.f32 %v2509, 0.0
  %v2518 = vmax.f32 %v2510, 0.0
  %v2519 = vmax.f32 %v2511, 0.0
  %v2520 = vld [vmem:[%s12] sm:$0xff]
  %v2521 = vld [vmem:[%s12 + $0x8] sm:$0xff]
  %v2522 = vld [vmem:[%s12 + $0x10] sm:$0xff]
  %v2523 = vld [vmem:[%s12 + $0x18] sm:$0xff]
  %v2524 = vld [vmem:[%s14] sm:$0x1]
  %v2526 = vlaneseq
  %v2527 = vshrl.u32 %v2526, 7
  %v2528 = vsub.s32 0, %v2527
  %v2529 = vrot.slane %v2524, %v2528
  %v2532 = vsel %vm195, %v2512, 0
  %v2535 = vsel %vm195, %v2513, 0
  %v2538 = vsel %vm195, %v2514, 0
  %v2541 = vsel %vm195, %v2515, 0
  %v2544 = vsel %vm195, %v2516, 0
  %v2547 = vsel %vm195, %v2517, 0
  %v2550 = vsel %vm195, %v2518, 0
  %v2553 = vsel %vm195, %v2519, 0
  %2555 = vmatprep.subr.mxu0 0.0
  %2556 = vmatpush1.msra.mxu0 0.0
  %2557 = vmatprep.subr.mxu0 0.0
  %2558 = vmatpush1.msra.mxu0 0.0
  %2559 = vmatprep.subr.mxu0 0.0
  %2560 = vmatpush1.msra.mxu0 0.0
  %2561 = vmatprep.subr.mxu0 0.0
  %2562 = vmatpush1.msra.mxu0 0.0
  %2563 = vmatprep.subr.mxu0 0.0
  %2564 = vmatpush1.msra.mxu0 0.0
  %2565 = vmatprep.subr.mxu0 0.0
  %2566 = vmatpush1.msra.mxu0 0.0
  %2567 = vmatprep.subr.mxu0 0.0
  %2568 = vmatpush1.msra.mxu0 0.0
  %2569 = vmatprep.subr.mxu0 0.0
  %2570 = vmatpush1.msra.mxu0 0.0
  %2571 = vmatprep.subr.mxu0 0.0
  %2572 = vmatpush1.msra.mxu0 0.0
  %2573 = vmatprep.subr.mxu0 0.0
  %2574 = vmatpush1.msra.mxu0 0.0
  %2575 = vmatprep.subr.mxu0 0.0
  %2576 = vmatpush1.msra.mxu0 0.0
  %2577 = vmatprep.subr.mxu0 0.0
  %2578 = vmatpush1.msra.mxu0 0.0
  %2579 = vmatprep.subr.mxu0 0.0
  %2580 = vmatpush1.msra.mxu0 %v2523
  %2581 = vmatprep.subr.mxu0 0.0
  %2582 = vmatpush1.msra.mxu0 %v2522
  %2583 = vmatprep.subr.mxu0 0.0
  %2584 = vmatpush1.msra.mxu0 %v2521
  %2585 = vmatprep.subr.mxu0 0.0
  %2586 = vmatpush1.msra.mxu0 %v2520
  %2587 = vmatprep.subr.mxu0 0.0
  %2588 = vmatpush2.msra.mxu0 0.0
  %2589 = vmatprep.subr.mxu0 0.0
  %2590 = vmatpush2.msra.mxu0 0.0
  %2591 = vmatprep.subr.mxu0 0.0
  %2592 = vmatpush2.msra.mxu0 0.0
  %2593 = vmatprep.subr.mxu0 0.0
  %2594 = vmatpush2.msra.mxu0 0.0
  %2595 = vmatprep.subr.mxu0 0.0
  %2596 = vmatpush2.msra.mxu0 0.0
  %2597 = vmatprep.subr.mxu0 0.0
  %2598 = vmatpush2.msra.mxu0 0.0
  %2599 = vmatprep.subr.mxu0 0.0
  %2600 = vmatpush2.msra.mxu0 0.0
  %2601 = vmatprep.subr.mxu0 0.0
  %2602 = vmatpush2.msra.mxu0 0.0
  %2603 = vmatprep.subr.mxu0 0.0
  %2604 = vmatpush2.msra.mxu0 0.0
  %2605 = vmatprep.subr.mxu0 0.0
  %2606 = vmatpush2.msra.mxu0 0.0
  %2607 = vmatprep.subr.mxu0 0.0
  %2608 = vmatpush2.msra.mxu0 0.0
  %2609 = vmatprep.subr.mxu0 0.0
  %2610 = vmatpush2.msra.mxu0 0.0
  %2611 = vmatprep.subr.mxu0 0.0
  %2612 = vmatpush2.msra.mxu0 0.0
  %2613 = vmatprep.subr.mxu0 0.0
  %2614 = vmatpush2.msra.mxu0 0.0
  %2615 = vmatprep.subr.mxu0 0.0
  %2616 = vmatpush2.msra.mxu0 0.0
  %2617 = vmatprep.subr.mxu0 0.0
  %2618 = vmatpush2.msra.mxu0 0.0
  %2619 = vmatprep.mubr.f32.mxu0 0.0
  %2620 = vmatmul.mubr.f32.gmra.mxu0 %v2532
  %v2621 = vpop.f32.mrf.mxu0
  %v2622 = vadd.f32 %v2529, %v2621
  %v2623 = vpop.f32.mrf.mxu0
  %2624 = vmatprep.mubr.f32.mxu0 0.0
  %2625 = vmatmul.mubr.f32.gmra.mxu0 %v2535
  %v2626 = vpop.f32.mrf.mxu0
  %v2627 = vadd.f32 %v2529, %v2626
  %v2628 = vpop.f32.mrf.mxu0
  %2629 = vmatprep.mubr.f32.mxu0 0.0
  %2630 = vmatmul.mubr.f32.gmra.mxu0 %v2538
  %v2631 = vpop.f32.mrf.mxu0
  %v2632 = vadd.f32 %v2529, %v2631
  %v2633 = vpop.f32.mrf.mxu0
  %2634 = vmatprep.mubr.f32.mxu0 0.0
  %2635 = vmatmul.mubr.f32.gmra.mxu0 %v2541
  %v2636 = vpop.f32.mrf.mxu0
  %v2637 = vadd.f32 %v2529, %v2636
  %v2638 = vpop.f32.mrf.mxu0
  %2639 = vmatprep.mubr.f32.mxu0 0.0
  %2640 = vmatmul.mubr.f32.gmra.mxu0 %v2544
  %v2641 = vpop.f32.mrf.mxu0
  %v2642 = vadd.f32 %v2529, %v2641
  %v2643 = vpop.f32.mrf.mxu0
  %2644 = vmatprep.mubr.f32.mxu0 0.0
  %2645 = vmatmul.mubr.f32.gmra.mxu0 %v2547
  %v2646 = vpop.f32.mrf.mxu0
  %v2647 = vadd.f32 %v2529, %v2646
  %v2648 = vpop.f32.mrf.mxu0
  %2649 = vmatprep.mubr.f32.mxu0 0.0
  %2650 = vmatmul.mubr.f32.gmra.mxu0 %v2550
  %v2651 = vpop.f32.mrf.mxu0
  %v2652 = vadd.f32 %v2529, %v2651
  %v2653 = vpop.f32.mrf.mxu0
  %2654 = vmatprep.mubr.f32.mxu0 0.0
  %2655 = vmatmul.mubr.f32.gmra.mxu0 %v2553
  %v2656 = vpop.f32.mrf.mxu0
  %v2657 = vadd.f32 %v2529, %v2656
  %v2658 = vpop.f32.mrf.mxu0
  %2659 = vdwg.mxu0
  %2660 = vst [vmem:[#allocation4] sm:$0xff] %v2622
  %2661 = vst [vmem:[#allocation4 + $0x8] sm:$0xff] %v2627
  %2662 = vst [vmem:[#allocation4 + $0x10] sm:$0xff] %v2632
  %2663 = vst [vmem:[#allocation4 + $0x18] sm:$0xff] %v2637
  %2664 = vst [vmem:[#allocation4 + $0x20] sm:$0xff] %v2642
  %2665 = vst [vmem:[#allocation4 + $0x28] sm:$0xff] %v2647
  %2666 = vst [vmem:[#allocation4 + $0x30] sm:$0xff] %v2652
  %2667 = vst [vmem:[#allocation4 + $0x38] sm:$0xff] %v2657
  %v2668 = vld [vmem:[%s13] sm:$0xff]
  %v2669 = vld [vmem:[%s13 + $0x8] sm:$0xff]
  %v2670 = vld [vmem:[%s13 + $0x10] sm:$0xff]
  %v2671 = vld [vmem:[%s13 + $0x18] sm:$0xff]
  %v2672 = vld [vmem:[#allocation4] sm:$0xff]
  %v2673 = vsel %vm195, %v2056, 0
  %2675 = vmatprep.subr.mxu0 0.0
  %2676 = vmatpush1.msra.mxu0 0.0
  %2677 = vmatprep.subr.mxu0 0.0
  %2678 = vmatpush1.msra.mxu0 0.0
  %2679 = vmatprep.subr.mxu0 0.0
  %2680 = vmatpush1.msra.mxu0 0.0
  %2681 = vmatprep.subr.mxu0 0.0
  %2682 = vmatpush1.msra.mxu0 0.0
  %2683 = vmatprep.subr.mxu0 0.0
  %2684 = vmatpush1.msra.mxu0 0.0
  %2685 = vmatprep.subr.mxu0 0.0
  %2686 = vmatpush1.msra.mxu0 0.0
  %2687 = vmatprep.subr.mxu0 0.0
  %2688 = vmatpush1.msra.mxu0 0.0
  %2689 = vmatprep.subr.mxu0 0.0
  %2690 = vmatpush1.msra.mxu0 0.0
  %2691 = vmatprep.subr.mxu0 0.0
  %2692 = vmatpush1.msra.mxu0 0.0
  %2693 = vmatprep.subr.mxu0 0.0
  %2694 = vmatpush1.msra.mxu0 0.0
  %2695 = vmatprep.subr.mxu0 0.0
  %2696 = vmatpush1.msra.mxu0 0.0
  %2697 = vmatprep.subr.mxu0 0.0
  %2698 = vmatpush1.msra.mxu0 0.0
  %2699 = vmatprep.subr.mxu0 0.0
  %2700 = vmatpush1.msra.mxu0 %v2671
  %2701 = vmatprep.subr.mxu0 0.0
  %2702 = vmatpush1.msra.mxu0 %v2670
  %2703 = vmatprep.subr.mxu0 0.0
  %2704 = vmatpush1.msra.mxu0 %v2669
  %2705 = vmatprep.subr.mxu0 0.0
  %2706 = vmatpush1.msra.mxu0 %v2668
  %2707 = vmatprep.subr.mxu0 0.0
  %2708 = vmatpush2.msra.mxu0 0.0
  %2709 = vmatprep.subr.mxu0 0.0
  %2710 = vmatpush2.msra.mxu0 0.0
  %2711 = vmatprep.subr.mxu0 0.0
  %2712 = vmatpush2.msra.mxu0 0.0
  %2713 = vmatprep.subr.mxu0 0.0
  %2714 = vmatpush2.msra.mxu0 0.0
  %2715 = vmatprep.subr.mxu0 0.0
  %2716 = vmatpush2.msra.mxu0 0.0
  %2717 = vmatprep.subr.mxu0 0.0
  %2718 = vmatpush2.msra.mxu0 0.0
  %2719 = vmatprep.subr.mxu0 0.0
  %2720 = vmatpush2.msra.mxu0 0.0
  %2721 = vmatprep.subr.mxu0 0.0
  %2722 = vmatpush2.msra.mxu0 0.0
  %2723 = vmatprep.subr.mxu0 0.0
  %2724 = vmatpush2.msra.mxu0 0.0
  %2725 = vmatprep.subr.mxu0 0.0
  %2726 = vmatpush2.msra.mxu0 0.0
  %2727 = vmatprep.subr.mxu0 0.0
  %2728 = vmatpush2.msra.mxu0 0.0
  %2729 = vmatprep.subr.mxu0 0.0
  %2730 = vmatpush2.msra.mxu0 0.0
  %2731 = vmatprep.subr.mxu0 0.0
  %2732 = vmatpush2.msra.mxu0 0.0
  %2733 = vmatprep.subr.mxu0 0.0
  %2734 = vmatpush2.msra.mxu0 0.0
  %2735 = vmatprep.subr.mxu0 0.0
  %2736 = vmatpush2.msra.mxu0 0.0
  %2737 = vmatprep.subr.mxu0 0.0
  %2738 = vmatpush2.msra.mxu0 0.0
  %2739 = vmatprep.mubr.f32.mxu0 0.0
  %2740 = vmatmul.mubr.f32.gmra.mxu0 %v2673
  %v2741 = vpop.f32.mrf.mxu0
  %v2742 = vadd.f32 %v2672, %v2741
  %v2743 = vpop.f32.mrf.mxu0
  %2744 = vdwg.mxu0
  %v2745 = vmul.f32 %v2742, 0.5
  %v2746 = vtanh.pop %v2745
  %v2747 = vadd.f32 %v2746, 1.0
  %v2748 = vmul.f32 %v2747, 0.5
  %v2749 = vtanh.pop %v2742
  %v2750 = vmul.f32 %v2748, %v1952
  %2752 = vrot.lane.b32.xlu0 %v2749, 64
  %v2753 = vpop.permute.xlu0 %2752
  %v2755 = vmul.f32 %v2748, %v2753
  %2757 = vrot.lane.b32.xlu0 %v2755, 32
  %v2758 = vpop.permute.xlu0 %2757
  %v2760 = vadd.f32 %v2750, %v2758
  %v2761 = vtanh.pop %v2760
  %2763 = vrot.lane.b32.xlu0 %v2761, 64
  %v2764 = vpop.permute.xlu0 %2763
  %v2766 = vmul.f32 %v2748, %v2764
  %2768 = vrot.lane.b32.xlu0 %v2766, 32
  %v2769 = vpop.permute.xlu0 %2768
  %2771 = vst.msk [vmem:[#allocation7] sm:$0xff] %vm195, %v2769
  %v2772 = vld [vmem:[#allocation4 + $0x8] sm:$0xff]
  %v2773 = vsel %vm195, %v2769, 0
  %2775 = vmatprep.subr.mxu0 0.0
  %2776 = vmatpush1.msra.mxu0 0.0
  %2777 = vmatprep.subr.mxu0 0.0
  %2778 = vmatpush1.msra.mxu0 0.0
  %2779 = vmatprep.subr.mxu0 0.0
  %2780 = vmatpush1.msra.mxu0 0.0
  %2781 = vmatprep.subr.mxu0 0.0
  %2782 = vmatpush1.msra.mxu0 0.0
  %2783 = vmatprep.subr.mxu0 0.0
  %2784 = vmatpush1.msra.mxu0 0.0
  %2785 = vmatprep.subr.mxu0 0.0
  %2786 = vmatpush1.msra.mxu0 0.0
  %2787 = vmatprep.subr.mxu0 0.0
  %2788 = vmatpush1.msra.mxu0 0.0
  %2789 = vmatprep.subr.mxu0 0.0
  %2790 = vmatpush1.msra.mxu0 0.0
  %2791 = vmatprep.subr.mxu0 0.0
  %2792 = vmatpush1.msra.mxu0 0.0
  %2793 = vmatprep.subr.mxu0 0.0
  %2794 = vmatpush1.msra.mxu0 0.0
  %2795 = vmatprep.subr.mxu0 0.0
  %2796 = vmatpush1.msra.mxu0 0.0
  %2797 = vmatprep.subr.mxu0 0.0
  %2798 = vmatpush1.msra.mxu0 0.0
  %2799 = vmatprep.subr.mxu0 0.0
  %2800 = vmatpush1.msra.mxu0 %v2671
  %2801 = vmatprep.subr.mxu0 0.0
  %2802 = vmatpush1.msra.mxu0 %v2670
  %2803 = vmatprep.subr.mxu0 0.0
  %2804 = vmatpush1.msra.mxu0 %v2669
  %2805 = vmatprep.subr.mxu0 0.0
  %2806 = vmatpush1.msra.mxu0 %v2668
  %2807 = vmatprep.subr.mxu0 0.0
  %2808 = vmatpush2.msra.mxu0 0.0
  %2809 = vmatprep.subr.mxu0 0.0
  %2810 = vmatpush2.msra.mxu0 0.0
  %2811 = vmatprep.subr.mxu0 0.0
  %2812 = vmatpush2.msra.mxu0 0.0
  %2813 = vmatprep.subr.mxu0 0.0
  %2814 = vmatpush2.msra.mxu0 0.0
  %2815 = vmatprep.subr.mxu0 0.0
  %2816 = vmatpush2.msra.mxu0 0.0
  %2817 = vmatprep.subr.mxu0 0.0
  %2818 = vmatpush2.msra.mxu0 0.0
  %2819 = vmatprep.subr.mxu0 0.0
  %2820 = vmatpush2.msra.mxu0 0.0
  %2821 = vmatprep.subr.mxu0 0.0
  %2822 = vmatpush2.msra.mxu0 0.0
  %2823 = vmatprep.subr.mxu0 0.0
  %2824 = vmatpush2.msra.mxu0 0.0
  %2825 = vmatprep.subr.mxu0 0.0
  %2826 = vmatpush2.msra.mxu0 0.0
  %2827 = vmatprep.subr.mxu0 0.0
  %2828 = vmatpush2.msra.mxu0 0.0
  %2829 = vmatprep.subr.mxu0 0.0
  %2830 = vmatpush2.msra.mxu0 0.0
  %2831 = vmatprep.subr.mxu0 0.0
  %2832 = vmatpush2.msra.mxu0 0.0
  %2833 = vmatprep.subr.mxu0 0.0
  %2834 = vmatpush2.msra.mxu0 0.0
  %2835 = vmatprep.subr.mxu0 0.0
  %2836 = vmatpush2.msra.mxu0 0.0
  %2837 = vmatprep.subr.mxu0 0.0
  %2838 = vmatpush2.msra.mxu0 0.0
  %2839 = vmatprep.mubr.f32.mxu0 0.0
  %2840 = vmatmul.mubr.f32.gmra.mxu0 %v2773
  %v2841 = vpop.f32.mrf.mxu0
  %v2842 = vadd.f32 %v2772, %v2841
  %v2843 = vpop.f32.mrf.mxu0
  %2844 = vdwg.mxu0
  %v2845 = vmul.f32 %v2842, 0.5
  %v2846 = vtanh.pop %v2845
  %v2847 = vadd.f32 %v2846, 1.0
  %v2848 = vmul.f32 %v2847, 0.5
  %v2849 = vtanh.pop %v2842
  %v2850 = vmul.f32 %v2848, %v2760
  %2852 = vrot.lane.b32.xlu0 %v2849, 64
  %v2853 = vpop.permute.xlu0 %2852
  %v2855 = vmul.f32 %v2848, %v2853
  %2857 = vrot.lane.b32.xlu0 %v2855, 32
  %v2858 = vpop.permute.xlu0 %2857
  %v2860 = vadd.f32 %v2850, %v2858
  %v2861 = vtanh.pop %v2860
  %2863 = vrot.lane.b32.xlu0 %v2861, 64
  %v2864 = vpop.permute.xlu0 %2863
  %v2866 = vmul.f32 %v2848, %v2864
  %2868 = vrot.lane.b32.xlu0 %v2866, 32
  %v2869 = vpop.permute.xlu0 %2868
  %2871 = vst.msk [vmem:[#allocation7 + $0x8] sm:$0xff] %vm195, %v2869
  %v2872 = vld [vmem:[#allocation4 + $0x10] sm:$0xff]
  %v2873 = vsel %vm195, %v2869, 0
  %2875 = vmatprep.subr.mxu0 0.0
  %2876 = vmatpush1.msra.mxu0 0.0
  %2877 = vmatprep.subr.mxu0 0.0
  %2878 = vmatpush1.msra.mxu0 0.0
  %2879 = vmatprep.subr.mxu0 0.0
  %2880 = vmatpush1.msra.mxu0 0.0
  %2881 = vmatprep.subr.mxu0 0.0
  %2882 = vmatpush1.msra.mxu0 0.0
  %2883 = vmatprep.subr.mxu0 0.0
  %2884 = vmatpush1.msra.mxu0 0.0
  %2885 = vmatprep.subr.mxu0 0.0
  %2886 = vmatpush1.msra.mxu0 0.0
  %2887 = vmatprep.subr.mxu0 0.0
  %2888 = vmatpush1.msra.mxu0 0.0
  %2889 = vmatprep.subr.mxu0 0.0
  %2890 = vmatpush1.msra.mxu0 0.0
  %2891 = vmatprep.subr.mxu0 0.0
  %2892 = vmatpush1.msra.mxu0 0.0
  %2893 = vmatprep.subr.mxu0 0.0
  %2894 = vmatpush1.msra.mxu0 0.0
  %2895 = vmatprep.subr.mxu0 0.0
  %2896 = vmatpush1.msra.mxu0 0.0
  %2897 = vmatprep.subr.mxu0 0.0
  %2898 = vmatpush1.msra.mxu0 0.0
  %2899 = vmatprep.subr.mxu0 0.0
  %2900 = vmatpush1.msra.mxu0 %v2671
  %2901 = vmatprep.subr.mxu0 0.0
  %2902 = vmatpush1.msra.mxu0 %v2670
  %2903 = vmatprep.subr.mxu0 0.0
  %2904 = vmatpush1.msra.mxu0 %v2669
  %2905 = vmatprep.subr.mxu0 0.0
  %2906 = vmatpush1.msra.mxu0 %v2668
  %2907 = vmatprep.subr.mxu0 0.0
  %2908 = vmatpush2.msra.mxu0 0.0
  %2909 = vmatprep.subr.mxu0 0.0
  %2910 = vmatpush2.msra.mxu0 0.0
  %2911 = vmatprep.subr.mxu0 0.0
  %2912 = vmatpush2.msra.mxu0 0.0
  %2913 = vmatprep.subr.mxu0 0.0
  %2914 = vmatpush2.msra.mxu0 0.0
  %2915 = vmatprep.subr.mxu0 0.0
  %2916 = vmatpush2.msra.mxu0 0.0
  %2917 = vmatprep.subr.mxu0 0.0
  %2918 = vmatpush2.msra.mxu0 0.0
  %2919 = vmatprep.subr.mxu0 0.0
  %2920 = vmatpush2.msra.mxu0 0.0
  %2921 = vmatprep.subr.mxu0 0.0
  %2922 = vmatpush2.msra.mxu0 0.0
  %2923 = vmatprep.subr.mxu0 0.0
  %2924 = vmatpush2.msra.mxu0 0.0
  %2925 = vmatprep.subr.mxu0 0.0
  %2926 = vmatpush2.msra.mxu0 0.0
  %2927 = vmatprep.subr.mxu0 0.0
  %2928 = vmatpush2.msra.mxu0 0.0
  %2929 = vmatprep.subr.mxu0 0.0
  %2930 = vmatpush2.msra.mxu0 0.0
  %2931 = vmatprep.subr.mxu0 0.0
  %2932 = vmatpush2.msra.mxu0 0.0
  %2933 = vmatprep.subr.mxu0 0.0
  %2934 = vmatpush2.msra.mxu0 0.0
  %2935 = vmatprep.subr.mxu0 0.0
  %2936 = vmatpush2.msra.mxu0 0.0
  %2937 = vmatprep.subr.mxu0 0.0
  %2938 = vmatpush2.msra.mxu0 0.0
  %2939 = vmatprep.mubr.f32.mxu0 0.0
  %2940 = vmatmul.mubr.f32.gmra.mxu0 %v2873
  %v2941 = vpop.f32.mrf.mxu0
  %v2942 = vadd.f32 %v2872, %v2941
  %v2943 = vpop.f32.mrf.mxu0
  %2944 = vdwg.mxu0
  %v2945 = vmul.f32 %v2942, 0.5
  %v2946 = vtanh.pop %v2945
  %v2947 = vadd.f32 %v2946, 1.0
  %v2948 = vmul.f32 %v2947, 0.5
  %v2949 = vtanh.pop %v2942
  %v2950 = vmul.f32 %v2948, %v2860
  %2952 = vrot.lane.b32.xlu0 %v2949, 64
  %v2953 = vpop.permute.xlu0 %2952
  %v2955 = vmul.f32 %v2948, %v2953
  %2957 = vrot.lane.b32.xlu0 %v2955, 32
  %v2958 = vpop.permute.xlu0 %2957
  %v2960 = vadd.f32 %v2950, %v2958
  %v2961 = vtanh.pop %v2960
  %2963 = vrot.lane.b32.xlu0 %v2961, 64
  %v2964 = vpop.permute.xlu0 %2963
  %v2966 = vmul.f32 %v2948, %v2964
  %2968 = vrot.lane.b32.xlu0 %v2966, 32
  %v2969 = vpop.permute.xlu0 %2968
  %2971 = vst.msk [vmem:[#allocation7 + $0x10] sm:$0xff] %vm195, %v2969
  %v2972 = vld [vmem:[#allocation4 + $0x18] sm:$0xff]
  %v2973 = vsel %vm195, %v2969, 0
  %2975 = vmatprep.subr.mxu0 0.0
  %2976 = vmatpush1.msra.mxu0 0.0
  %2977 = vmatprep.subr.mxu0 0.0
  %2978 = vmatpush1.msra.mxu0 0.0
  %2979 = vmatprep.subr.mxu0 0.0
  %2980 = vmatpush1.msra.mxu0 0.0
  %2981 = vmatprep.subr.mxu0 0.0
  %2982 = vmatpush1.msra.mxu0 0.0
  %2983 = vmatprep.subr.mxu0 0.0
  %2984 = vmatpush1.msra.mxu0 0.0
  %2985 = vmatprep.subr.mxu0 0.0
  %2986 = vmatpush1.msra.mxu0 0.0
  %2987 = vmatprep.subr.mxu0 0.0
  %2988 = vmatpush1.msra.mxu0 0.0
  %2989 = vmatprep.subr.mxu0 0.0
  %2990 = vmatpush1.msra.mxu0 0.0
  %2991 = vmatprep.subr.mxu0 0.0
  %2992 = vmatpush1.msra.mxu0 0.0
  %2993 = vmatprep.subr.mxu0 0.0
  %2994 = vmatpush1.msra.mxu0 0.0
  %2995 = vmatprep.subr.mxu0 0.0
  %2996 = vmatpush1.msra.mxu0 0.0
  %2997 = vmatprep.subr.mxu0 0.0
  %2998 = vmatpush1.msra.mxu0 0.0
  %2999 = vmatprep.subr.mxu0 0.0
  %3000 = vmatpush1.msra.mxu0 %v2671
  %3001 = vmatprep.subr.mxu0 0.0
  %3002 = vmatpush1.msra.mxu0 %v2670
  %3003 = vmatprep.subr.mxu0 0.0
  %3004 = vmatpush1.msra.mxu0 %v2669
  %3005 = vmatprep.subr.mxu0 0.0
  %3006 = vmatpush1.msra.mxu0 %v2668
  %3007 = vmatprep.subr.mxu0 0.0
  %3008 = vmatpush2.msra.mxu0 0.0
  %3009 = vmatprep.subr.mxu0 0.0
  %3010 = vmatpush2.msra.mxu0 0.0
  %3011 = vmatprep.subr.mxu0 0.0
  %3012 = vmatpush2.msra.mxu0 0.0
  %3013 = vmatprep.subr.mxu0 0.0
  %3014 = vmatpush2.msra.mxu0 0.0
  %3015 = vmatprep.subr.mxu0 0.0
  %3016 = vmatpush2.msra.mxu0 0.0
  %3017 = vmatprep.subr.mxu0 0.0
  %3018 = vmatpush2.msra.mxu0 0.0
  %3019 = vmatprep.subr.mxu0 0.0
  %3020 = vmatpush2.msra.mxu0 0.0
  %3021 = vmatprep.subr.mxu0 0.0
  %3022 = vmatpush2.msra.mxu0 0.0
  %3023 = vmatprep.subr.mxu0 0.0
  %3024 = vmatpush2.msra.mxu0 0.0
  %3025 = vmatprep.subr.mxu0 0.0
  %3026 = vmatpush2.msra.mxu0 0.0
  %3027 = vmatprep.subr.mxu0 0.0
  %3028 = vmatpush2.msra.mxu0 0.0
  %3029 = vmatprep.subr.mxu0 0.0
  %3030 = vmatpush2.msra.mxu0 0.0
  %3031 = vmatprep.subr.mxu0 0.0
  %3032 = vmatpush2.msra.mxu0 0.0
  %3033 = vmatprep.subr.mxu0 0.0
  %3034 = vmatpush2.msra.mxu0 0.0
  %3035 = vmatprep.subr.mxu0 0.0
  %3036 = vmatpush2.msra.mxu0 0.0
  %3037 = vmatprep.subr.mxu0 0.0
  %3038 = vmatpush2.msra.mxu0 0.0
  %3039 = vmatprep.mubr.f32.mxu0 0.0
  %3040 = vmatmul.mubr.f32.gmra.mxu0 %v2973
  %v3041 = vpop.f32.mrf.mxu0
  %v3042 = vadd.f32 %v2972, %v3041
  %v3043 = vpop.f32.mrf.mxu0
  %3044 = vdwg.mxu0
  %v3045 = vmul.f32 %v3042, 0.5
  %v3046 = vtanh.pop %v3045
  %v3047 = vadd.f32 %v3046, 1.0
  %v3048 = vmul.f32 %v3047, 0.5
  %v3049 = vtanh.pop %v3042
  %v3050 = vmul.f32 %v3048, %v2960
  %3052 = vrot.lane.b32.xlu0 %v3049, 64
  %v3053 = vpop.permute.xlu0 %3052
  %v3055 = vmul.f32 %v3048, %v3053
  %3057 = vrot.lane.b32.xlu0 %v3055, 32
  %v3058 = vpop.permute.xlu0 %3057
  %v3060 = vadd.f32 %v3050, %v3058
  %v3061 = vtanh.pop %v3060
  %3063 = vrot.lane.b32.xlu0 %v3061, 64
  %v3064 = vpop.permute.xlu0 %3063
  %v3066 = vmul.f32 %v3048, %v3064
  %3068 = vrot.lane.b32.xlu0 %v3066, 32
  %v3069 = vpop.permute.xlu0 %3068
  %3071 = vst.msk [vmem:[#allocation7 + $0x18] sm:$0xff] %vm195, %v3069
  %v3072 = vld [vmem:[#allocation4 + $0x20] sm:$0xff]
  %v3073 = vsel %vm195, %v3069, 0
  %3075 = vmatprep.subr.mxu0 0.0
  %3076 = vmatpush1.msra.mxu0 0.0
  %3077 = vmatprep.subr.mxu0 0.0
  %3078 = vmatpush1.msra.mxu0 0.0
  %3079 = vmatprep.subr.mxu0 0.0
  %3080 = vmatpush1.msra.mxu0 0.0
  %3081 = vmatprep.subr.mxu0 0.0
  %3082 = vmatpush1.msra.mxu0 0.0
  %3083 = vmatprep.subr.mxu0 0.0
  %3084 = vmatpush1.msra.mxu0 0.0
  %3085 = vmatprep.subr.mxu0 0.0
  %3086 = vmatpush1.msra.mxu0 0.0
  %3087 = vmatprep.subr.mxu0 0.0
  %3088 = vmatpush1.msra.mxu0 0.0
  %3089 = vmatprep.subr.mxu0 0.0
  %3090 = vmatpush1.msra.mxu0 0.0
  %3091 = vmatprep.subr.mxu0 0.0
  %3092 = vmatpush1.msra.mxu0 0.0
  %3093 = vmatprep.subr.mxu0 0.0
  %3094 = vmatpush1.msra.mxu0 0.0
  %3095 = vmatprep.subr.mxu0 0.0
  %3096 = vmatpush1.msra.mxu0 0.0
  %3097 = vmatprep.subr.mxu0 0.0
  %3098 = vmatpush1.msra.mxu0 0.0
  %3099 = vmatprep.subr.mxu0 0.0
  %3100 = vmatpush1.msra.mxu0 %v2671
  %3101 = vmatprep.subr.mxu0 0.0
  %3102 = vmatpush1.msra.mxu0 %v2670
  %3103 = vmatprep.subr.mxu0 0.0
  %3104 = vmatpush1.msra.mxu0 %v2669
  %3105 = vmatprep.subr.mxu0 0.0
  %3106 = vmatpush1.msra.mxu0 %v2668
  %3107 = vmatprep.subr.mxu0 0.0
  %3108 = vmatpush2.msra.mxu0 0.0
  %3109 = vmatprep.subr.mxu0 0.0
  %3110 = vmatpush2.msra.mxu0 0.0
  %3111 = vmatprep.subr.mxu0 0.0
  %3112 = vmatpush2.msra.mxu0 0.0
  %3113 = vmatprep.subr.mxu0 0.0
  %3114 = vmatpush2.msra.mxu0 0.0
  %3115 = vmatprep.subr.mxu0 0.0
  %3116 = vmatpush2.msra.mxu0 0.0
  %3117 = vmatprep.subr.mxu0 0.0
  %3118 = vmatpush2.msra.mxu0 0.0
  %3119 = vmatprep.subr.mxu0 0.0
  %3120 = vmatpush2.msra.mxu0 0.0
  %3121 = vmatprep.subr.mxu0 0.0
  %3122 = vmatpush2.msra.mxu0 0.0
  %3123 = vmatprep.subr.mxu0 0.0
  %3124 = vmatpush2.msra.mxu0 0.0
  %3125 = vmatprep.subr.mxu0 0.0
  %3126 = vmatpush2.msra.mxu0 0.0
  %3127 = vmatprep.subr.mxu0 0.0
  %3128 = vmatpush2.msra.mxu0 0.0
  %3129 = vmatprep.subr.mxu0 0.0
  %3130 = vmatpush2.msra.mxu0 0.0
  %3131 = vmatprep.subr.mxu0 0.0
  %3132 = vmatpush2.msra.mxu0 0.0
  %3133 = vmatprep.subr.mxu0 0.0
  %3134 = vmatpush2.msra.mxu0 0.0
  %3135 = vmatprep.subr.mxu0 0.0
  %3136 = vmatpush2.msra.mxu0 0.0
  %3137 = vmatprep.subr.mxu0 0.0
  %3138 = vmatpush2.msra.mxu0 0.0
  %3139 = vmatprep.mubr.f32.mxu0 0.0
  %3140 = vmatmul.mubr.f32.gmra.mxu0 %v3073
  %v3141 = vpop.f32.mrf.mxu0
  %v3142 = vadd.f32 %v3072, %v3141
  %v3143 = vpop.f32.mrf.mxu0
  %3144 = vdwg.mxu0
  %v3145 = vmul.f32 %v3142, 0.5
  %v3146 = vtanh.pop %v3145
  %v3147 = vadd.f32 %v3146, 1.0
  %v3148 = vmul.f32 %v3147, 0.5
  %v3149 = vtanh.pop %v3142
  %v3150 = vmul.f32 %v3148, %v3060
  %3152 = vrot.lane.b32.xlu0 %v3149, 64
  %v3153 = vpop.permute.xlu0 %3152
  %v3155 = vmul.f32 %v3148, %v3153
  %3157 = vrot.lane.b32.xlu0 %v3155, 32
  %v3158 = vpop.permute.xlu0 %3157
  %v3160 = vadd.f32 %v3150, %v3158
  %v3161 = vtanh.pop %v3160
  %3163 = vrot.lane.b32.xlu0 %v3161, 64
  %v3164 = vpop.permute.xlu0 %3163
  %v3166 = vmul.f32 %v3148, %v3164
  %3168 = vrot.lane.b32.xlu0 %v3166, 32
  %v3169 = vpop.permute.xlu0 %3168
  %3171 = vst.msk [vmem:[#allocation7 + $0x20] sm:$0xff] %vm195, %v3169
  %v3172 = vld [vmem:[#allocation4 + $0x28] sm:$0xff]
  %v3173 = vsel %vm195, %v3169, 0
  %3175 = vmatprep.subr.mxu0 0.0
  %3176 = vmatpush1.msra.mxu0 0.0
  %3177 = vmatprep.subr.mxu0 0.0
  %3178 = vmatpush1.msra.mxu0 0.0
  %3179 = vmatprep.subr.mxu0 0.0
  %3180 = vmatpush1.msra.mxu0 0.0
  %3181 = vmatprep.subr.mxu0 0.0
  %3182 = vmatpush1.msra.mxu0 0.0
  %3183 = vmatprep.subr.mxu0 0.0
  %3184 = vmatpush1.msra.mxu0 0.0
  %3185 = vmatprep.subr.mxu0 0.0
  %3186 = vmatpush1.msra.mxu0 0.0
  %3187 = vmatprep.subr.mxu0 0.0
  %3188 = vmatpush1.msra.mxu0 0.0
  %3189 = vmatprep.subr.mxu0 0.0
  %3190 = vmatpush1.msra.mxu0 0.0
  %3191 = vmatprep.subr.mxu0 0.0
  %3192 = vmatpush1.msra.mxu0 0.0
  %3193 = vmatprep.subr.mxu0 0.0
  %3194 = vmatpush1.msra.mxu0 0.0
  %3195 = vmatprep.subr.mxu0 0.0
  %3196 = vmatpush1.msra.mxu0 0.0
  %3197 = vmatprep.subr.mxu0 0.0
  %3198 = vmatpush1.msra.mxu0 0.0
  %3199 = vmatprep.subr.mxu0 0.0
  %3200 = vmatpush1.msra.mxu0 %v2671
  %3201 = vmatprep.subr.mxu0 0.0
  %3202 = vmatpush1.msra.mxu0 %v2670
  %3203 = vmatprep.subr.mxu0 0.0
  %3204 = vmatpush1.msra.mxu0 %v2669
  %3205 = vmatprep.subr.mxu0 0.0
  %3206 = vmatpush1.msra.mxu0 %v2668
  %3207 = vmatprep.subr.mxu0 0.0
  %3208 = vmatpush2.msra.mxu0 0.0
  %3209 = vmatprep.subr.mxu0 0.0
  %3210 = vmatpush2.msra.mxu0 0.0
  %3211 = vmatprep.subr.mxu0 0.0
  %3212 = vmatpush2.msra.mxu0 0.0
  %3213 = vmatprep.subr.mxu0 0.0
  %3214 = vmatpush2.msra.mxu0 0.0
  %3215 = vmatprep.subr.mxu0 0.0
  %3216 = vmatpush2.msra.mxu0 0.0
  %3217 = vmatprep.subr.mxu0 0.0
  %3218 = vmatpush2.msra.mxu0 0.0
  %3219 = vmatprep.subr.mxu0 0.0
  %3220 = vmatpush2.msra.mxu0 0.0
  %3221 = vmatprep.subr.mxu0 0.0
  %3222 = vmatpush2.msra.mxu0 0.0
  %3223 = vmatprep.subr.mxu0 0.0
  %3224 = vmatpush2.msra.mxu0 0.0
  %3225 = vmatprep.subr.mxu0 0.0
  %3226 = vmatpush2.msra.mxu0 0.0
  %3227 = vmatprep.subr.mxu0 0.0
  %3228 = vmatpush2.msra.mxu0 0.0
  %3229 = vmatprep.subr.mxu0 0.0
  %3230 = vmatpush2.msra.mxu0 0.0
  %3231 = vmatprep.subr.mxu0 0.0
  %3232 = vmatpush2.msra.mxu0 0.0
  %3233 = vmatprep.subr.mxu0 0.0
  %3234 = vmatpush2.msra.mxu0 0.0
  %3235 = vmatprep.subr.mxu0 0.0
  %3236 = vmatpush2.msra.mxu0 0.0
  %3237 = vmatprep.subr.mxu0 0.0
  %3238 = vmatpush2.msra.mxu0 0.0
  %3239 = vmatprep.mubr.f32.mxu0 0.0
  %3240 = vmatmul.mubr.f32.gmra.mxu0 %v3173
  %v3241 = vpop.f32.mrf.mxu0
  %v3242 = vadd.f32 %v3172, %v3241
  %v3243 = vpop.f32.mrf.mxu0
  %3244 = vdwg.mxu0
  %v3245 = vmul.f32 %v3242, 0.5
  %v3246 = vtanh.pop %v3245
  %v3247 = vadd.f32 %v3246, 1.0
  %v3248 = vmul.f32 %v3247, 0.5
  %v3249 = vtanh.pop %v3242
  %v3250 = vmul.f32 %v3248, %v3160
  %3252 = vrot.lane.b32.xlu0 %v3249, 64
  %v3253 = vpop.permute.xlu0 %3252
  %v3255 = vmul.f32 %v3248, %v3253
  %3257 = vrot.lane.b32.xlu0 %v3255, 32
  %v3258 = vpop.permute.xlu0 %3257
  %v3260 = vadd.f32 %v3250, %v3258
  %v3261 = vtanh.pop %v3260
  %3263 = vrot.lane.b32.xlu0 %v3261, 64
  %v3264 = vpop.permute.xlu0 %3263
  %v3266 = vmul.f32 %v3248, %v3264
  %3268 = vrot.lane.b32.xlu0 %v3266, 32
  %v3269 = vpop.permute.xlu0 %3268
  %3271 = vst.msk [vmem:[#allocation7 + $0x28] sm:$0xff] %vm195, %v3269
  %v3272 = vld [vmem:[#allocation4 + $0x30] sm:$0xff]
  %v3273 = vsel %vm195, %v3269, 0
  %3275 = vmatprep.subr.mxu0 0.0
  %3276 = vmatpush1.msra.mxu0 0.0
  %3277 = vmatprep.subr.mxu0 0.0
  %3278 = vmatpush1.msra.mxu0 0.0
  %3279 = vmatprep.subr.mxu0 0.0
  %3280 = vmatpush1.msra.mxu0 0.0
  %3281 = vmatprep.subr.mxu0 0.0
  %3282 = vmatpush1.msra.mxu0 0.0
  %3283 = vmatprep.subr.mxu0 0.0
  %3284 = vmatpush1.msra.mxu0 0.0
  %3285 = vmatprep.subr.mxu0 0.0
  %3286 = vmatpush1.msra.mxu0 0.0
  %3287 = vmatprep.subr.mxu0 0.0
  %3288 = vmatpush1.msra.mxu0 0.0
  %3289 = vmatprep.subr.mxu0 0.0
  %3290 = vmatpush1.msra.mxu0 0.0
  %3291 = vmatprep.subr.mxu0 0.0
  %3292 = vmatpush1.msra.mxu0 0.0
  %3293 = vmatprep.subr.mxu0 0.0
  %3294 = vmatpush1.msra.mxu0 0.0
  %3295 = vmatprep.subr.mxu0 0.0
  %3296 = vmatpush1.msra.mxu0 0.0
  %3297 = vmatprep.subr.mxu0 0.0
  %3298 = vmatpush1.msra.mxu0 0.0
  %3299 = vmatprep.subr.mxu0 0.0
  %3300 = vmatpush1.msra.mxu0 %v2671
  %3301 = vmatprep.subr.mxu0 0.0
  %3302 = vmatpush1.msra.mxu0 %v2670
  %3303 = vmatprep.subr.mxu0 0.0
  %3304 = vmatpush1.msra.mxu0 %v2669
  %3305 = vmatprep.subr.mxu0 0.0
  %3306 = vmatpush1.msra.mxu0 %v2668
  %3307 = vmatprep.subr.mxu0 0.0
  %3308 = vmatpush2.msra.mxu0 0.0
  %3309 = vmatprep.subr.mxu0 0.0
  %3310 = vmatpush2.msra.mxu0 0.0
  %3311 = vmatprep.subr.mxu0 0.0
  %3312 = vmatpush2.msra.mxu0 0.0
  %3313 = vmatprep.subr.mxu0 0.0
  %3314 = vmatpush2.msra.mxu0 0.0
  %3315 = vmatprep.subr.mxu0 0.0
  %3316 = vmatpush2.msra.mxu0 0.0
  %3317 = vmatprep.subr.mxu0 0.0
  %3318 = vmatpush2.msra.mxu0 0.0
  %3319 = vmatprep.subr.mxu0 0.0
  %3320 = vmatpush2.msra.mxu0 0.0
  %3321 = vmatprep.subr.mxu0 0.0
  %3322 = vmatpush2.msra.mxu0 0.0
  %3323 = vmatprep.subr.mxu0 0.0
  %3324 = vmatpush2.msra.mxu0 0.0
  %3325 = vmatprep.subr.mxu0 0.0
  %3326 = vmatpush2.msra.mxu0 0.0
  %3327 = vmatprep.subr.mxu0 0.0
  %3328 = vmatpush2.msra.mxu0 0.0
  %3329 = vmatprep.subr.mxu0 0.0
  %3330 = vmatpush2.msra.mxu0 0.0
  %3331 = vmatprep.subr.mxu0 0.0
  %3332 = vmatpush2.msra.mxu0 0.0
  %3333 = vmatprep.subr.mxu0 0.0
  %3334 = vmatpush2.msra.mxu0 0.0
  %3335 = vmatprep.subr.mxu0 0.0
  %3336 = vmatpush2.msra.mxu0 0.0
  %3337 = vmatprep.subr.mxu0 0.0
  %3338 = vmatpush2.msra.mxu0 0.0
  %3339 = vmatprep.mubr.f32.mxu0 0.0
  %3340 = vmatmul.mubr.f32.gmra.mxu0 %v3273
  %v3341 = vpop.f32.mrf.mxu0
  %v3342 = vadd.f32 %v3272, %v3341
  %v3343 = vpop.f32.mrf.mxu0
  %3344 = vdwg.mxu0
  %v3345 = vmul.f32 %v3342, 0.5
  %v3346 = vtanh.pop %v3345
  %v3347 = vadd.f32 %v3346, 1.0
  %v3348 = vmul.f32 %v3347, 0.5
  %v3349 = vtanh.pop %v3342
  %v3350 = vmul.f32 %v3348, %v3260
  %3352 = vrot.lane.b32.xlu0 %v3349, 64
  %v3353 = vpop.permute.xlu0 %3352
  %v3355 = vmul.f32 %v3348, %v3353
  %3357 = vrot.lane.b32.xlu0 %v3355, 32
  %v3358 = vpop.permute.xlu0 %3357
  %v3360 = vadd.f32 %v3350, %v3358
  %v3361 = vtanh.pop %v3360
  %3363 = vrot.lane.b32.xlu0 %v3361, 64
  %v3364 = vpop.permute.xlu0 %3363
  %v3366 = vmul.f32 %v3348, %v3364
  %3368 = vrot.lane.b32.xlu0 %v3366, 32
  %v3369 = vpop.permute.xlu0 %3368
  %3371 = vst.msk [vmem:[#allocation7 + $0x30] sm:$0xff] %vm195, %v3369
  %v3372 = vld [vmem:[#allocation4 + $0x38] sm:$0xff]
  %v3373 = vsel %vm195, %v3369, 0
  %3375 = vmatprep.subr.mxu0 0.0
  %3376 = vmatpush1.msra.mxu0 0.0
  %3377 = vmatprep.subr.mxu0 0.0
  %3378 = vmatpush1.msra.mxu0 0.0
  %3379 = vmatprep.subr.mxu0 0.0
  %3380 = vmatpush1.msra.mxu0 0.0
  %3381 = vmatprep.subr.mxu0 0.0
  %3382 = vmatpush1.msra.mxu0 0.0
  %3383 = vmatprep.subr.mxu0 0.0
  %3384 = vmatpush1.msra.mxu0 0.0
  %3385 = vmatprep.subr.mxu0 0.0
  %3386 = vmatpush1.msra.mxu0 0.0
  %3387 = vmatprep.subr.mxu0 0.0
  %3388 = vmatpush1.msra.mxu0 0.0
  %3389 = vmatprep.subr.mxu0 0.0
  %3390 = vmatpush1.msra.mxu0 0.0
  %3391 = vmatprep.subr.mxu0 0.0
  %3392 = vmatpush1.msra.mxu0 0.0
  %3393 = vmatprep.subr.mxu0 0.0
  %3394 = vmatpush1.msra.mxu0 0.0
  %3395 = vmatprep.subr.mxu0 0.0
  %3396 = vmatpush1.msra.mxu0 0.0
  %3397 = vmatprep.subr.mxu0 0.0
  %3398 = vmatpush1.msra.mxu0 0.0
  %3399 = vmatprep.subr.mxu0 0.0
  %3400 = vmatpush1.msra.mxu0 %v2671
  %3401 = vmatprep.subr.mxu0 0.0
  %3402 = vmatpush1.msra.mxu0 %v2670
  %3403 = vmatprep.subr.mxu0 0.0
  %3404 = vmatpush1.msra.mxu0 %v2669
  %3405 = vmatprep.subr.mxu0 0.0
  %3406 = vmatpush1.msra.mxu0 %v2668
  %3407 = vmatprep.subr.mxu0 0.0
  %3408 = vmatpush2.msra.mxu0 0.0
  %3409 = vmatprep.subr.mxu0 0.0
  %3410 = vmatpush2.msra.mxu0 0.0
  %3411 = vmatprep.subr.mxu0 0.0
  %3412 = vmatpush2.msra.mxu0 0.0
  %3413 = vmatprep.subr.mxu0 0.0
  %3414 = vmatpush2.msra.mxu0 0.0
  %3415 = vmatprep.subr.mxu0 0.0
  %3416 = vmatpush2.msra.mxu0 0.0
  %3417 = vmatprep.subr.mxu0 0.0
  %3418 = vmatpush2.msra.mxu0 0.0
  %3419 = vmatprep.subr.mxu0 0.0
  %3420 = vmatpush2.msra.mxu0 0.0
  %3421 = vmatprep.subr.mxu0 0.0
  %3422 = vmatpush2.msra.mxu0 0.0
  %3423 = vmatprep.subr.mxu0 0.0
  %3424 = vmatpush2.msra.mxu0 0.0
  %3425 = vmatprep.subr.mxu0 0.0
  %3426 = vmatpush2.msra.mxu0 0.0
  %3427 = vmatprep.subr.mxu0 0.0
  %3428 = vmatpush2.msra.mxu0 0.0
  %3429 = vmatprep.subr.mxu0 0.0
  %3430 = vmatpush2.msra.mxu0 0.0
  %3431 = vmatprep.subr.mxu0 0.0
  %3432 = vmatpush2.msra.mxu0 0.0
  %3433 = vmatprep.subr.mxu0 0.0
  %3434 = vmatpush2.msra.mxu0 0.0
  %3435 = vmatprep.subr.mxu0 0.0
  %3436 = vmatpush2.msra.mxu0 0.0
  %3437 = vmatprep.subr.mxu0 0.0
  %3438 = vmatpush2.msra.mxu0 0.0
  %3439 = vmatprep.mubr.f32.mxu0 0.0
  %3440 = vmatmul.mubr.f32.gmra.mxu0 %v3373
  %v3441 = vpop.f32.mrf.mxu0
  %v3442 = vadd.f32 %v3372, %v3441
  %v3443 = vpop.f32.mrf.mxu0
  %3444 = vdwg.mxu0
  %v3445 = vmul.f32 %v3442, 0.5
  %v3446 = vtanh.pop %v3445
  %v3447 = vadd.f32 %v3446, 1.0
  %v3448 = vmul.f32 %v3447, 0.5
  %v3449 = vtanh.pop %v3442
  %v3450 = vmul.f32 %v3448, %v3360
  %3452 = vrot.lane.b32.xlu0 %v3449, 64
  %v3453 = vpop.permute.xlu0 %3452
  %v3455 = vmul.f32 %v3448, %v3453
  %3457 = vrot.lane.b32.xlu0 %v3455, 32
  %v3458 = vpop.permute.xlu0 %3457
  %v3460 = vadd.f32 %v3450, %v3458
  %v3461 = vtanh.pop %v3460
  %3463 = vrot.lane.b32.xlu0 %v3461, 64
  %v3464 = vpop.permute.xlu0 %3463
  %v3466 = vmul.f32 %v3448, %v3464
  %3468 = vrot.lane.b32.xlu0 %v3466, 32
  %v3469 = vpop.permute.xlu0 %3468
  %3471 = vst.msk [vmem:[#allocation7 + $0x38] sm:$0xff] %vm195, %v3469
  %v3472 = vld [vmem:[#allocation7] sm:$0xff]
  %v3473 = vld [vmem:[#allocation7 + $0x8] sm:$0xff]
  %v3474 = vld [vmem:[#allocation7 + $0x10] sm:$0xff]
  %v3475 = vld [vmem:[#allocation7 + $0x18] sm:$0xff]
  %v3476 = vld [vmem:[#allocation7 + $0x20] sm:$0xff]
  %v3477 = vld [vmem:[#allocation7 + $0x28] sm:$0xff]
  %v3478 = vld [vmem:[#allocation7 + $0x30] sm:$0xff]
  %v3479 = vld [vmem:[#allocation7 + $0x38] sm:$0xff]
  %v3480 = vld [vmem:[%s15] sm:$0xff]
  %v3481 = vld [vmem:[%s15 + $0x8] sm:$0xff]
  %v3482 = vld [vmem:[%s15 + $0x10] sm:$0xff]
  %v3483 = vld [vmem:[%s15 + $0x18] sm:$0xff]
  %v3484 = vld [vmem:[%s16] sm:$0x1]
  %v3486 = vlaneseq
  %v3487 = vshrl.u32 %v3486, 7
  %v3488 = vsub.s32 0, %v3487
  %v3489 = vrot.slane %v3484, %v3488
  %v3492 = vsel %vm195, %v3472, 0
  %v3495 = vsel %vm195, %v3473, 0
  %v3498 = vsel %vm195, %v3474, 0
  %v3501 = vsel %vm195, %v3475, 0
  %v3504 = vsel %vm195, %v3476, 0
  %v3507 = vsel %vm195, %v3477, 0
  %v3510 = vsel %vm195, %v3478, 0
  %v3513 = vsel %vm195, %v3479, 0
  %3515 = vmatprep.subr.mxu0 0.0
  %3516 = vmatpush1.msra.mxu0 0.0
  %3517 = vmatprep.subr.mxu0 0.0
  %3518 = vmatpush1.msra.mxu0 0.0
  %3519 = vmatprep.subr.mxu0 0.0
  %3520 = vmatpush1.msra.mxu0 0.0
  %3521 = vmatprep.subr.mxu0 0.0
  %3522 = vmatpush1.msra.mxu0 0.0
  %3523 = vmatprep.subr.mxu0 0.0
  %3524 = vmatpush1.msra.mxu0 0.0
  %3525 = vmatprep.subr.mxu0 0.0
  %3526 = vmatpush1.msra.mxu0 0.0
  %3527 = vmatprep.subr.mxu0 0.0
  %3528 = vmatpush1.msra.mxu0 0.0
  %3529 = vmatprep.subr.mxu0 0.0
  %3530 = vmatpush1.msra.mxu0 0.0
  %3531 = vmatprep.subr.mxu0 0.0
  %3532 = vmatpush1.msra.mxu0 0.0
  %3533 = vmatprep.subr.mxu0 0.0
  %3534 = vmatpush1.msra.mxu0 0.0
  %3535 = vmatprep.subr.mxu0 0.0
  %3536 = vmatpush1.msra.mxu0 0.0
  %3537 = vmatprep.subr.mxu0 0.0
  %3538 = vmatpush1.msra.mxu0 0.0
  %3539 = vmatprep.subr.mxu0 0.0
  %3540 = vmatpush1.msra.mxu0 %v3483
  %3541 = vmatprep.subr.mxu0 0.0
  %3542 = vmatpush1.msra.mxu0 %v3482
  %3543 = vmatprep.subr.mxu0 0.0
  %3544 = vmatpush1.msra.mxu0 %v3481
  %3545 = vmatprep.subr.mxu0 0.0
  %3546 = vmatpush1.msra.mxu0 %v3480
  %3547 = vmatprep.subr.mxu0 0.0
  %3548 = vmatpush2.msra.mxu0 0.0
  %3549 = vmatprep.subr.mxu0 0.0
  %3550 = vmatpush2.msra.mxu0 0.0
  %3551 = vmatprep.subr.mxu0 0.0
  %3552 = vmatpush2.msra.mxu0 0.0
  %3553 = vmatprep.subr.mxu0 0.0
  %3554 = vmatpush2.msra.mxu0 0.0
  %3555 = vmatprep.subr.mxu0 0.0
  %3556 = vmatpush2.msra.mxu0 0.0
  %3557 = vmatprep.subr.mxu0 0.0
  %3558 = vmatpush2.msra.mxu0 0.0
  %3559 = vmatprep.subr.mxu0 0.0
  %3560 = vmatpush2.msra.mxu0 0.0
  %3561 = vmatprep.subr.mxu0 0.0
  %3562 = vmatpush2.msra.mxu0 0.0
  %3563 = vmatprep.subr.mxu0 0.0
  %3564 = vmatpush2.msra.mxu0 0.0
  %3565 = vmatprep.subr.mxu0 0.0
  %3566 = vmatpush2.msra.mxu0 0.0
  %3567 = vmatprep.subr.mxu0 0.0
  %3568 = vmatpush2.msra.mxu0 0.0
  %3569 = vmatprep.subr.mxu0 0.0
  %3570 = vmatpush2.msra.mxu0 0.0
  %3571 = vmatprep.subr.mxu0 0.0
  %3572 = vmatpush2.msra.mxu0 0.0
  %3573 = vmatprep.subr.mxu0 0.0
  %3574 = vmatpush2.msra.mxu0 0.0
  %3575 = vmatprep.subr.mxu0 0.0
  %3576 = vmatpush2.msra.mxu0 0.0
  %3577 = vmatprep.subr.mxu0 0.0
  %3578 = vmatpush2.msra.mxu0 0.0
  %3579 = vmatprep.mubr.f32.mxu0 0.0
  %3580 = vmatmul.mubr.f32.gmra.mxu0 %v3492
  %v3581 = vpop.f32.mrf.mxu0
  %v3582 = vadd.f32 %v3489, %v3581
  %v3583 = vpop.f32.mrf.mxu0
  %3584 = vmatprep.mubr.f32.mxu0 0.0
  %3585 = vmatmul.mubr.f32.gmra.mxu0 %v3495
  %v3586 = vpop.f32.mrf.mxu0
  %v3587 = vadd.f32 %v3489, %v3586
  %v3588 = vpop.f32.mrf.mxu0
  %3589 = vmatprep.mubr.f32.mxu0 0.0
  %3590 = vmatmul.mubr.f32.gmra.mxu0 %v3498
  %v3591 = vpop.f32.mrf.mxu0
  %v3592 = vadd.f32 %v3489, %v3591
  %v3593 = vpop.f32.mrf.mxu0
  %3594 = vmatprep.mubr.f32.mxu0 0.0
  %3595 = vmatmul.mubr.f32.gmra.mxu0 %v3501
  %v3596 = vpop.f32.mrf.mxu0
  %v3597 = vadd.f32 %v3489, %v3596
  %v3598 = vpop.f32.mrf.mxu0
  %3599 = vmatprep.mubr.f32.mxu0 0.0
  %3600 = vmatmul.mubr.f32.gmra.mxu0 %v3504
  %v3601 = vpop.f32.mrf.mxu0
  %v3602 = vadd.f32 %v3489, %v3601
  %v3603 = vpop.f32.mrf.mxu0
  %3604 = vmatprep.mubr.f32.mxu0 0.0
  %3605 = vmatmul.mubr.f32.gmra.mxu0 %v3507
  %v3606 = vpop.f32.mrf.mxu0
  %v3607 = vadd.f32 %v3489, %v3606
  %v3608 = vpop.f32.mrf.mxu0
  %3609 = vmatprep.mubr.f32.mxu0 0.0
  %3610 = vmatmul.mubr.f32.gmra.mxu0 %v3510
  %v3611 = vpop.f32.mrf.mxu0
  %v3612 = vadd.f32 %v3489, %v3611
  %v3613 = vpop.f32.mrf.mxu0
  %3614 = vmatprep.mubr.f32.mxu0 0.0
  %3615 = vmatmul.mubr.f32.gmra.mxu0 %v3513
  %v3616 = vpop.f32.mrf.mxu0
  %v3617 = vadd.f32 %v3489, %v3616
  %v3618 = vpop.f32.mrf.mxu0
  %3619 = vdwg.mxu0
  %3620 = vst [vmem:[%s17] sm:$0xff] %v3582
  %3621 = vst [vmem:[%s17 + $0x8] sm:$0xff] %v3587
  %3622 = vst [vmem:[%s17 + $0x10] sm:$0xff] %v3592
  %3623 = vst [vmem:[%s17 + $0x18] sm:$0xff] %v3597
  %3624 = vst [vmem:[%s17 + $0x20] sm:$0xff] %v3602
  %3625 = vst [vmem:[%s17 + $0x28] sm:$0xff] %v3607
  %3626 = vst [vmem:[%s17 + $0x30] sm:$0xff] %v3612
  %3627 = vst [vmem:[%s17 + $0x38] sm:$0xff] %v3617
  // Predicated region
  $region70: #{deepbeats_forward.1} parent=0 // pred_check
    _
  $region71: #{deepbeats_forward.1} parent=0 // pred_check_branch
    %3629 = sbr.rel (0) target = $region73
  $region72: #{deepbeats_forward.1} parent=0 // pred_region
    _
  $region73: #{deepbeats_forward.1} parent=0 // pred_fallthru
    _
  // Predicated region
  $region74: #{deepbeats_forward.1} parent=0 // pred_check
    _
  $region75: #{deepbeats_forward.1} parent=0 // pred_check_branch
    %3631 = sbr.rel (0) target = $region77
  $region76: #{deepbeats_forward.1} parent=0 // pred_region
    _
  $region77: #{deepbeats_forward.1} parent=0 // pred_fallthru
    _

</llo_original>
